<compile_context>
chip_gen: v6e
topology: v6e:2x2x1
jax: 0.10.0
libtpu: 0.0.40
codegen_flags: <defaults>
</compile_context>

<pallas_src>
import jax
import jax.numpy as jnp
from jax.experimental import pallas as pl
from jax.experimental.pallas import tpu as pltpu

PATCH = 4            # stand-in backbone "conv" kernel == stride (patchify)
GRID_HW = 7          # backbone output spatial = 7x7 -> 49 tokens (AvgPool2d(7))
HW = GRID_HW * GRID_HW
FEAT = 2048          # backbone output channels (resnet layer4 width, affine_aa out)
CLIP_DIM = 512       # MedCLIP image-embedding dim (affine_aa in dim)


# --------------------------------------------------------------------------
# Kernel 1: full clip branch for the whole batch in one call.
#   clip_emb = images_flat @ W_clip + b_clip     (stand-in for MedCLIP ViT)
#   clip1    = relu(clip_emb @ W_aff + b_aff)    (affine_aa + ReLU)
# Hoisted out of the per-batch fusion grid: the affine matmul now runs once
# at M=B instead of B times at M=1 (~1% MXU occupancy), and the 4 MiB w_aff
# no longer occupies (double-buffered) VMEM in the fusion kernel.
# --------------------------------------------------------------------------
def _clip_branch_kernel(img_ref, wc_ref, bc_ref, wa_ref, ba_ref, o_ref):
    emb = jnp.dot(img_ref[...], wc_ref[...],
                  preferred_element_type=jnp.float32) + bc_ref[...]
    clip1 = jnp.dot(emb, wa_ref[...],
                    preferred_element_type=jnp.float32) + ba_ref[...]
    o_ref[...] = jnp.maximum(clip1, 0.0).astype(o_ref.dtype)


def clip_branch(images_flat, w_clip, b_clip, w_aff, b_aff):
    B = images_flat.shape[0]
    # Whole-array residency: weights total ~9 MiB, batch is small (per-image
    # processor loop in the original module), so no tiling is needed here.
    # TODO(synk): tile over M (batch) with a BlockSpec grid for very large B.
    return pl.pallas_call(
        _clip_branch_kernel,
        out_shape=jax.ShapeDtypeStruct((B, FEAT), jnp.float32),
    )(images_flat, w_clip, b_clip, w_aff, b_aff)


# --------------------------------------------------------------------------
# Kernel 2: fused backbone matmul + AvgPool2d(7) + broadcast-add epilogue.
# Per image in the batch tile:
#   pf        = patches @ W_bb + b_bb            # (49, 2048) patch features
#   patch_out = pf + clip1                        # repeat(1,49,1) + add
#   avg_out   = mean_tokens(pf) + clip1           # AvgPool2d(7,1,0) + add
# patch_feats never hits HBM between the matmul and the epilogue.  The token
# mean is taken in the tiny K=48 patch space (matmul linearity) instead of
# reducing the (49, 2048) features, minimizing cross-sublane XLU work.
# --------------------------------------------------------------------------
def _fused_backbone_kernel(patch_ref, clip_ref, w_ref, b_ref,
                           pout_ref, aout_ref):
    bt = patch_ref.shape[0]
    w = w_ref[...]                                   # (K, C), resident
    b = b_ref[...]                                   # (1, C)
    for bi in range(bt):                             # static, bt <= 8
        p = patch_ref[bi]                            # (49, K)
        c1 = clip_ref[bi]                            # (1, C)  precomputed clip1
        pf = jnp.dot(p, w, preferred_element_type=jnp.float32) + b   # (49, C)
        pout_ref[bi] = (pf + c1).astype(pout_ref.dtype)
        mp = jnp.mean(p, axis=0, keepdims=True)      # (1, K): cheap reduce
        avg = jnp.dot(mp, w, preferred_element_type=jnp.float32) + b # (1, C)
        aout_ref[bi] = (avg + c1).astype(aout_ref.dtype)


def _pick_batch_tile(B, max_bt=8):
    # Largest divisor of B that is <= max_bt while keeping >= 2 grid steps
    # (so both v7x TensorCores get a share of the parallel batch axis).
    # max_bt=8 keeps the double-buffered (bt, 49, 2048) f32 output blocks
    # (~6.3 MiB) comfortably inside the 32 MiB default scoped VMEM on all gens.
    divs = [d for d in range(1, min(B, max_bt) + 1) if B % d == 0]
    two_step = [d for d in divs if B // d >= 2]
    return max(two_step) if two_step else max(divs)


def fused_backbone(patches, clip1, w_bb, b_bb):
    B, hw, K = patches.shape
    C = w_bb.shape[1]
    bt = _pick_batch_tile(B)
    clip3 = clip1.reshape(B, 1, C)
    pout, aout = pl.pallas_call(
        _fused_backbone_kernel,
        out_shape=(jax.ShapeDtypeStruct((B, hw, C), jnp.float32),
                   jax.ShapeDtypeStruct((B, 1, C), jnp.float32)),
        grid_spec=pltpu.PrefetchScalarGridSpec(
            num_scalar_prefetch=0,
            grid=(B // bt,),
            in_specs=[pl.BlockSpec((bt, hw, K), lambda i: (i, 0, 0)),
                      pl.BlockSpec((bt, 1, C), lambda i: (i, 0, 0)),
                      pl.BlockSpec((K, C), lambda i: (0, 0)),
                      pl.BlockSpec((1, C), lambda i: (0, 0))],
            out_specs=[pl.BlockSpec((bt, hw, C), lambda i: (i, 0, 0)),
                       pl.BlockSpec((bt, 1, C), lambda i: (i, 0, 0))],
        ),
        compiler_params=pltpu.CompilerParams(
            dimension_semantics=("parallel",)),
    )(patches, clip3, w_bb, b_bb)
    return pout, aout.reshape(B, C)


# --------------------------------------------------------------------------
# glue
# --------------------------------------------------------------------------
def patchify(images):
    # NCHW -> (B, gh*gw, Cin*P*P); matches a conv with kernel=stride=PATCH.
    B, Cin, H, W = images.shape
    gh, gw = H // PATCH, W // PATCH
    x = images.reshape(B, Cin, gh, PATCH, gw, PATCH)
    x = x.transpose(0, 2, 4, 1, 3, 5)            # (B, gh, gw, Cin, P, P)
    return x.reshape(B, gh * gw, Cin * PATCH * PATCH)


def init_params(key, cin, h, w):
    k1, k2, k3, k4, k5, k6 = jax.random.split(key, 6)
    kdim = cin * PATCH * PATCH
    return {
        "w_backbone": 0.02 * jax.random.normal(k1, (kdim, FEAT), jnp.float32),
        "b_backbone": 0.02 * jax.random.normal(k2, (1, FEAT), jnp.float32),
        "w_clip": 0.02 * jax.random.normal(k3, (cin * h * w, CLIP_DIM), jnp.float32),
        "b_clip": 0.02 * jax.random.normal(k4, (1, CLIP_DIM), jnp.float32),
        "w_aff": 0.02 * jax.random.normal(k5, (CLIP_DIM, FEAT), jnp.float32),  # affine_aa
        "b_aff": 0.02 * jax.random.normal(k6, (1, FEAT), jnp.float32),
    }


def visual_extractor_forward(images, params):
    B, Cin, H, W = images.shape

    # TODO(synk): real backbone is a pretrained torchvision CNN (children()[:-2]);
    # stand-in is a single patchify-conv (kernel=stride=4) whose matmul is fused
    # into kernel 2 below -> (B, 49, 2048) patch features, never staged in HBM.
    patches = patchify(images)                                   # (B, 49, Cin*P*P)

    # TODO(synk): real clip branch is MedCLIPModel(MedCLIPVisionModelViT)+processor;
    # stand-in is a flatten + linear projection to the 512-d embedding, fused with
    # affine_aa (512->2048) + ReLU in one Pallas call for the whole batch.
    clip1 = clip_branch(images.reshape(B, Cin * H * W),
                        params["w_clip"], params["b_clip"],
                        params["w_aff"], params["b_aff"])        # (B, 2048)

    # Hot path: fused backbone matmul + AvgPool2d(7) + broadcast adds.
    patch_out, avg_out = fused_backbone(patches, clip1,
                                        params["w_backbone"],
                                        params["b_backbone"])
    return patch_out, avg_out                                    # (B,49,2048), (B,2048)


def reference_forward(images, params):
    B = images.shape[0]
    patches = patchify(images)
    patch_feats = patches @ params["w_backbone"] + params["b_backbone"]
    clip = images.reshape(B, -1) @ params["w_clip"] + params["b_clip"]
    clip1 = jax.nn.relu(clip @ params["w_aff"] + params["b_aff"])
    avg = patch_feats.mean(axis=1)
    return patch_feats + clip1[:, None, :], avg + clip1


if __name__ == "__main__":
    key = jax.random.PRNGKey(0)
    k_img, k_par = jax.random.split(key)
    B, Cin, H, W = 2, 3, 28, 28                     # 28/4 = 7 -> 7x7 = 49 tokens
    images = jax.random.normal(k_img, (B, Cin, H, W), jnp.float32)  # NCHW
    params = init_params(k_par, Cin, H, W)

    patch_out, avg_out = visual_extractor_forward(images, params)
    jax.block_until_ready((patch_out, avg_out))

    ref_patch, ref_avg = reference_forward(images, params)
    assert patch_out.shape == (B, HW, FEAT)
    assert avg_out.shape == (B, FEAT)
    assert jnp.allclose(patch_out, ref_patch, atol=1e-3, rtol=1e-3)
    assert jnp.allclose(avg_out, ref_avg, atol=1e-3, rtol=1e-3)

    print("KERNEL_OK")
</pallas_src>

<mosaic_0001>
module attributes {stable_mosaic.version = 11 : i64} {
  func.func @_clip_branch_kernel(%arg0: memref<2x2352xf32, #tpu.memory_space<vmem>>, %arg1: memref<2352x512xf32, #tpu.memory_space<vmem>>, %arg2: memref<1x512xf32, #tpu.memory_space<vmem>>, %arg3: memref<512x2048xf32, #tpu.memory_space<vmem>>, %arg4: memref<1x2048xf32, #tpu.memory_space<vmem>>, %arg5: memref<2x2048xf32, #tpu.memory_space<vmem>>) attributes {dimension_semantics = [], scalar_prefetch = 0 : i64, scratch_operands = 0 : i64, tpu.core_type = #tpu.core_type<tc>} {
    %c0 = arith.constant 0 : index
    %c0_0 = arith.constant 0 : index
    %0 = vector.load %arg0[%c0, %c0_0] : memref<2x2352xf32, #tpu.memory_space<vmem>>, vector<2x2352xf32>
    %c0_1 = arith.constant 0 : index
    %c0_2 = arith.constant 0 : index
    %1 = vector.load %arg1[%c0_1, %c0_2] : memref<2352x512xf32, #tpu.memory_space<vmem>>, vector<2352x512xf32>
    %cst = arith.constant dense<0.000000e+00> : vector<2x512xf32>
    %2 = tpu.matmul %0, %1, %cst {dimension_numbers = #tpu.dot_dimension_numbers<[1], [0], [0], [1], [0, 0, 1, 1], [], []>} : vector<2x2352xf32>, vector<2352x512xf32>, vector<2x512xf32> -> vector<2x512xf32>
    %c0_3 = arith.constant 0 : index
    %c0_4 = arith.constant 0 : index
    %3 = vector.load %arg2[%c0_3, %c0_4] : memref<1x512xf32, #tpu.memory_space<vmem>>, vector<1x512xf32>
    %4 = vector.broadcast %3 : vector<1x512xf32> to vector<2x512xf32>
    %5 = arith.addf %2, %4 : vector<2x512xf32>
    %c0_5 = arith.constant 0 : index
    %c0_6 = arith.constant 0 : index
    %6 = vector.load %arg3[%c0_5, %c0_6] : memref<512x2048xf32, #tpu.memory_space<vmem>>, vector<512x2048xf32>
    %cst_7 = arith.constant dense<0.000000e+00> : vector<2x2048xf32>
    %7 = tpu.matmul %5, %6, %cst_7 {dimension_numbers = #tpu.dot_dimension_numbers<[1], [0], [0], [1], [0, 0, 1, 1], [], []>} : vector<2x512xf32>, vector<512x2048xf32>, vector<2x2048xf32> -> vector<2x2048xf32>
    %c0_8 = arith.constant 0 : index
    %c0_9 = arith.constant 0 : index
    %8 = vector.load %arg4[%c0_8, %c0_9] : memref<1x2048xf32, #tpu.memory_space<vmem>>, vector<1x2048xf32>
    %9 = vector.broadcast %8 : vector<1x2048xf32> to vector<2x2048xf32>
    %10 = arith.addf %7, %9 : vector<2x2048xf32>
    %cst_10 = arith.constant 0.000000e+00 : f32
    %11 = vector.broadcast %cst_10 : f32 to vector<2x2048xf32>
    %12 = arith.maximumf %10, %11 : vector<2x2048xf32>
    %c0_11 = arith.constant 0 : index
    %c0_12 = arith.constant 0 : index
    %13 = vector.load %arg5[%c0_11, %c0_12] : memref<2x2048xf32, #tpu.memory_space<vmem>>, vector<2x2048xf32>
    tpu.vector_store %arg5[%c0_11, %c0_12], %12 {strides = array<i32>} : memref<2x2048xf32, #tpu.memory_space<vmem>>, vector<2x2048xf32>,
    return
  }
}

</mosaic_0001>

<llo_original>
// kernel: tpu_custom_call.1
$region0: #{tpu_custom_call.1}
  #allocation0 [shape = 'u32[]', space=smem, size = 0x4, offset = 0x4, fixed_abs, tag = 'smem constant byte address 0x4 - core index']
  #allocation1 [shape = 'u32[144,128]{1,0:T(1,128)}', space=vmem, size = 0x12000, scoped, tag = 'internal scratch']
  %s0 = inlined_call_operand.hbm [shape: f32[2,2352], index: 0, kind: input, shape index: {}]
  %s1 = inlined_call_operand.hbm [shape: f32[2352,512], index: 1, kind: input, shape index: {}]
  %s2 = inlined_call_operand.hbm [shape: f32[1,512], index: 2, kind: input, shape index: {}]
  %s3 = inlined_call_operand.hbm [shape: f32[512,2048], index: 3, kind: input, shape index: {}]
  %s4 = inlined_call_operand.hbm [shape: f32[1,2048], index: 4, kind: input, shape index: {}]
  %s5 = inlined_call_operand.hbm [shape: f32[2,2048], index: 5, kind: output, shape index: {}]
  %s6 = sld [smem:[#allocation0]]
  $region50: #{tpu_custom_call.1} parent=0
    _
  %s8 = ssub.s32 1, %s6
  %s9 = scalar_select 0, %s8, %s6
  $region1: #{tpu_custom_call.1} parent=0
    #allocation2 [shape = 'u8[19456]{0}', space=vmem, size = 0x4c00, scoped, tag = 'input window, operand 0, single buffered']
    #allocation3 [shape = 's32[1]{0}', space=sflag, size = 0x4, scoped, tag = 'scoped memory for tpu_custom_call.1']
    #allocation4 [shape = 's32[1]{0}', space=sflag, size = 0x4, scoped, tag = 'scoped memory for tpu_custom_call.1']
    #allocation5 [shape = 'u8[4816896]{0}', space=vmem, size = 0x498000, scoped, tag = 'input window, operand 1, single buffered']
    #allocation6 [shape = 's32[1]{0}', space=sflag, size = 0x4, scoped, tag = 'scoped memory for tpu_custom_call.1']
    #allocation7 [shape = 'u8[2048]{0}', space=vmem, size = 0x800, scoped, tag = 'input window, operand 2, single buffered']
    #allocation8 [shape = 'u8[4194304]{0}', space=vmem, size = 0x400000, scoped, tag = 'input window, operand 3, single buffered']
    #allocation9 [shape = 's32[1]{0}', space=sflag, size = 0x4, scoped, tag = 'scoped memory for tpu_custom_call.1']
    #allocation10 [shape = 'u8[8192]{0}', space=vmem, size = 0x2000, scoped, tag = 'input window, operand 4, single buffered']
    #allocation11 [shape = 'u8[16384]{0}', space=vmem, size = 0x4000, scoped, tag = 'output window, operand 0, single buffered']
    %10 = vsyncpa [#allocation3], 0
    %11 = vsyncpa [#allocation6], 0
    %12 = vsyncpa [#allocation9], 0
    %13 = vsyncpa [#allocation4], 0
    // Predicated region
    $region2: #{tpu_custom_call.1} parent=1 // pred_check
      _
    $region3: #{tpu_custom_call.1} parent=1 // pred_check_branch
      %15 = sbr.rel (0) target = $region5
    $region4: #{tpu_custom_call.1} parent=1 // pred_region
      %s17 = ssub.s32 608, 608
      %18 = vsyncadd [#allocation3], %s17
      %s20 = sshll.u32 [#allocation2], 4
      %s21 = int_to_ptr.vmem [resolvable:$true] %s20
      %23 = dma.hbm_to_vmem [thread:$0]  %s0, 608, %s21, [#allocation3]
    $region5: #{tpu_custom_call.1} parent=1 // pred_fallthru
      _
    // Predicated region
    $region6: #{tpu_custom_call.1} parent=1 // pred_check
      _
    $region7: #{tpu_custom_call.1} parent=1 // pred_check_branch
      %25 = sbr.rel (0) target = $region9
    $region8: #{tpu_custom_call.1} parent=1 // pred_region
      %s27 = ssub.s32 150528, 150528
      %28 = vsyncadd [#allocation6], %s27
      %s29 = sshll.u32 [#allocation5], 4
      %s30 = int_to_ptr.vmem [resolvable:$true] %s29
      %35 = dma.hbm_to_vmem [thread:$0]  %s1, 150528, %s30, [#allocation6], 512, 512, 32
    $region9: #{tpu_custom_call.1} parent=1 // pred_fallthru
      _
    // Predicated region
    $region10: #{tpu_custom_call.1} parent=1 // pred_check
      _
    $region11: #{tpu_custom_call.1} parent=1 // pred_check_branch
      %37 = sbr.rel (0) target = $region13
    $region12: #{tpu_custom_call.1} parent=1 // pred_region
      %s39 = ssub.s32 64, 64
      %40 = vsyncadd [#allocation6], %s39
      %s42 = sshll.u32 [#allocation7], 4
      %s43 = int_to_ptr.vmem [resolvable:$true] %s42
      %45 = dma.hbm_to_vmem [thread:$0]  %s2, 64, %s43, [#allocation6]
    $region13: #{tpu_custom_call.1} parent=1 // pred_fallthru
      _
    // Predicated region
    $region14: #{tpu_custom_call.1} parent=1 // pred_check
      _
    $region15: #{tpu_custom_call.1} parent=1 // pred_check_branch
      %47 = sbr.rel (0) target = $region17
    $region16: #{tpu_custom_call.1} parent=1 // pred_region
      %s49 = ssub.s32 131072, 131072
      %50 = vsyncadd [#allocation9], %s49
      %s51 = sshll.u32 [#allocation8], 4
      %s52 = int_to_ptr.vmem [resolvable:$true] %s51
      %57 = dma.hbm_to_vmem [thread:$0]  %s3, 131072, %s52, [#allocation9], 2048, 2048, 128
    $region17: #{tpu_custom_call.1} parent=1 // pred_fallthru
      _
    // Predicated region
    $region18: #{tpu_custom_call.1} parent=1 // pred_check
      _
    $region19: #{tpu_custom_call.1} parent=1 // pred_check_branch
      %59 = sbr.rel (0) target = $region21
    $region20: #{tpu_custom_call.1} parent=1 // pred_region
      %s61 = ssub.s32 256, 256
      %62 = vsyncadd [#allocation9], %s61
      %s64 = sshll.u32 [#allocation10], 4
      %s65 = int_to_ptr.vmem [resolvable:$true] %s64
      %67 = dma.hbm_to_vmem [thread:$0]  %s4, 256, %s65, [#allocation9]
    $region21: #{tpu_custom_call.1} parent=1 // pred_fallthru
      _
    // Predicated region
    $region22: #{tpu_custom_call.1} parent=1 // pred_check
      _
    $region23: #{tpu_custom_call.1} parent=1 // pred_check_branch
      %69 = sbr.rel (0) target = $region25
    $region24: #{tpu_custom_call.1} parent=1 // pred_region
      %70 = dma.done [#allocation3], 608
    $region25: #{tpu_custom_call.1} parent=1 // pred_fallthru
      _
    // Predicated region
    $region26: #{tpu_custom_call.1} parent=1 // pred_check
      _
    $region27: #{tpu_custom_call.1} parent=1 // pred_check_branch
      %72 = sbr.rel (0) target = $region29
    $region28: #{tpu_custom_call.1} parent=1 // pred_region
      %73 = dma.done [#allocation6], 150528
    $region29: #{tpu_custom_call.1} parent=1 // pred_fallthru
      _
    // Predicated region
    $region30: #{tpu_custom_call.1} parent=1 // pred_check
      _
    $region31: #{tpu_custom_call.1} parent=1 // pred_check_branch
      %75 = sbr.rel (0) target = $region33
    $region32: #{tpu_custom_call.1} parent=1 // pred_region
      %76 = dma.done [#allocation6], 64
    $region33: #{tpu_custom_call.1} parent=1 // pred_fallthru
      _
    // Predicated region
    $region34: #{tpu_custom_call.1} parent=1 // pred_check
      _
    $region35: #{tpu_custom_call.1} parent=1 // pred_check_branch
      %78 = sbr.rel (0) target = $region37
    $region36: #{tpu_custom_call.1} parent=1 // pred_region
      %79 = dma.done [#allocation9], 131072
    $region37: #{tpu_custom_call.1} parent=1 // pred_fallthru
      _
    // Predicated region
    $region38: #{tpu_custom_call.1} parent=1 // pred_check
      _
    $region39: #{tpu_custom_call.1} parent=1 // pred_check_branch
      %81 = sbr.rel (0) target = $region41
    $region40: #{tpu_custom_call.1} parent=1 // pred_region
      %82 = dma.done [#allocation9], 256
    $region41: #{tpu_custom_call.1} parent=1 // pred_fallthru
      _
    %v83 = vld [vmem:[#allocation2] sm:$0xff]
    %v84 = vld [vmem:[#allocation2 + $0x8] sm:$0xff]
    %v85 = vld [vmem:[#allocation2 + $0x10] sm:$0xff]
    %v86 = vld [vmem:[#allocation2 + $0x18] sm:$0xff]
    %v87 = vld [vmem:[#allocation2 + $0x20] sm:$0x3f]
    %v88 = vld [vmem:[#allocation5] sm:$0xff]
    %v89 = vld [vmem:[#allocation5 + $0x8] sm:$0xff]
    %v90 = vld [vmem:[#allocation5 + $0x10] sm:$0xff]
    %v91 = vld [vmem:[#allocation5 + $0x18] sm:$0xff]
    %v92 = vld [vmem:[#allocation5 + $0x20] sm:$0xff]
    %v93 = vld [vmem:[#allocation5 + $0x28] sm:$0xff]
    %v94 = vld [vmem:[#allocation5 + $0x30] sm:$0xff]
    %v95 = vld [vmem:[#allocation5 + $0x38] sm:$0xff]
    %v96 = vld [vmem:[#allocation5 + $0x40] sm:$0xff]
    %v97 = vld [vmem:[#allocation5 + $0x48] sm:$0xff]
    %v98 = vld [vmem:[#allocation5 + $0x50] sm:$0xff]
    %v99 = vld [vmem:[#allocation5 + $0x58] sm:$0xff]
    %v100 = vld [vmem:[#allocation5 + $0x60] sm:$0xff]
    %v101 = vld [vmem:[#allocation5 + $0x68] sm:$0xff]
    %v102 = vld [vmem:[#allocation5 + $0x70] sm:$0xff]
    %v103 = vld [vmem:[#allocation5 + $0x78] sm:$0xff]
    %v104 = vld [vmem:[#allocation5 + $0x80] sm:$0xff]
    %v105 = vld [vmem:[#allocation5 + $0x88] sm:$0xff]
    %v106 = vld [vmem:[#allocation5 + $0x90] sm:$0xff]
    %v107 = vld [vmem:[#allocation5 + $0x98] sm:$0xff]
    %v108 = vld [vmem:[#allocation5 + $0xa0] sm:$0xff]
    %v109 = vld [vmem:[#allocation5 + $0xa8] sm:$0xff]
    %v110 = vld [vmem:[#allocation5 + $0xb0] sm:$0xff]
    %v111 = vld [vmem:[#allocation5 + $0xb8] sm:$0xff]
    %v112 = vld [vmem:[#allocation5 + $0xc0] sm:$0xff]
    %v113 = vld [vmem:[#allocation5 + $0xc8] sm:$0xff]
    %v114 = vld [vmem:[#allocation5 + $0xd0] sm:$0xff]
    %v115 = vld [vmem:[#allocation5 + $0xd8] sm:$0xff]
    %v116 = vld [vmem:[#allocation5 + $0xe0] sm:$0xff]
    %v117 = vld [vmem:[#allocation5 + $0xe8] sm:$0xff]
    %v118 = vld [vmem:[#allocation5 + $0xf0] sm:$0xff]
    %v119 = vld [vmem:[#allocation5 + $0xf8] sm:$0xff]
    %v120 = vld [vmem:[#allocation5 + $0x100] sm:$0xff]
    %v121 = vld [vmem:[#allocation5 + $0x108] sm:$0xff]
    %v122 = vld [vmem:[#allocation5 + $0x110] sm:$0xff]
    %v123 = vld [vmem:[#allocation5 + $0x118] sm:$0xff]
    %v124 = vld [vmem:[#allocation5 + $0x120] sm:$0xff]
    %v125 = vld [vmem:[#allocation5 + $0x128] sm:$0xff]
    %v126 = vld [vmem:[#allocation5 + $0x130] sm:$0xff]
    %v127 = vld [vmem:[#allocation5 + $0x138] sm:$0xff]
    %v128 = vld [vmem:[#allocation5 + $0x140] sm:$0xff]
    %v129 = vld [vmem:[#allocation5 + $0x148] sm:$0xff]
    %v130 = vld [vmem:[#allocation5 + $0x150] sm:$0xff]
    %v131 = vld [vmem:[#allocation5 + $0x158] sm:$0xff]
    %v132 = vld [vmem:[#allocation5 + $0x160] sm:$0xff]
    %v133 = vld [vmem:[#allocation5 + $0x168] sm:$0xff]
    %v134 = vld [vmem:[#allocation5 + $0x170] sm:$0xff]
    %v135 = vld [vmem:[#allocation5 + $0x178] sm:$0xff]
    %v136 = vld [vmem:[#allocation5 + $0x180] sm:$0xff]
    %v137 = vld [vmem:[#allocation5 + $0x188] sm:$0xff]
    %v138 = vld [vmem:[#allocation5 + $0x190] sm:$0xff]
    %v139 = vld [vmem:[#allocation5 + $0x198] sm:$0xff]
    %v140 = vld [vmem:[#allocation5 + $0x1a0] sm:$0xff]
    %v141 = vld [vmem:[#allocation5 + $0x1a8] sm:$0xff]
    %v142 = vld [vmem:[#allocation5 + $0x1b0] sm:$0xff]
    %v143 = vld [vmem:[#allocation5 + $0x1b8] sm:$0xff]
    %v144 = vld [vmem:[#allocation5 + $0x1c0] sm:$0xff]
    %v145 = vld [vmem:[#allocation5 + $0x1c8] sm:$0xff]
    %v146 = vld [vmem:[#allocation5 + $0x1d0] sm:$0xff]
    %v147 = vld [vmem:[#allocation5 + $0x1d8] sm:$0xff]
    %v148 = vld [vmem:[#allocation5 + $0x1e0] sm:$0xff]
    %v149 = vld [vmem:[#allocation5 + $0x1e8] sm:$0xff]
    %v150 = vld [vmem:[#allocation5 + $0x1f0] sm:$0xff]
    %v151 = vld [vmem:[#allocation5 + $0x1f8] sm:$0xff]
    %v152 = vld [vmem:[#allocation5 + $0x200] sm:$0xff]
    %v153 = vld [vmem:[#allocation5 + $0x208] sm:$0xff]
    %v154 = vld [vmem:[#allocation5 + $0x210] sm:$0xff]
    %v155 = vld [vmem:[#allocation5 + $0x218] sm:$0xff]
    %v156 = vld [vmem:[#allocation5 + $0x220] sm:$0xff]
    %v157 = vld [vmem:[#allocation5 + $0x228] sm:$0xff]
    %v158 = vld [vmem:[#allocation5 + $0x230] sm:$0xff]
    %v159 = vld [vmem:[#allocation5 + $0x238] sm:$0xff]
    %v160 = vld [vmem:[#allocation5 + $0x240] sm:$0xff]
    %v161 = vld [vmem:[#allocation5 + $0x248] sm:$0xff]
    %v162 = vld [vmem:[#allocation5 + $0x250] sm:$0xff]
    %v163 = vld [vmem:[#allocation5 + $0x258] sm:$0xff]
    %v164 = vld [vmem:[#allocation5 + $0x260] sm:$0xff]
    %v165 = vld [vmem:[#allocation5 + $0x268] sm:$0xff]
    %v166 = vld [vmem:[#allocation5 + $0x270] sm:$0xff]
    %v167 = vld [vmem:[#allocation5 + $0x278] sm:$0xff]
    %v168 = vld [vmem:[#allocation5 + $0x280] sm:$0xff]
    %v169 = vld [vmem:[#allocation5 + $0x288] sm:$0xff]
    %v170 = vld [vmem:[#allocation5 + $0x290] sm:$0xff]
    %v171 = vld [vmem:[#allocation5 + $0x298] sm:$0xff]
    %v172 = vld [vmem:[#allocation5 + $0x2a0] sm:$0xff]
    %v173 = vld [vmem:[#allocation5 + $0x2a8] sm:$0xff]
    %v174 = vld [vmem:[#allocation5 + $0x2b0] sm:$0xff]
    %v175 = vld [vmem:[#allocation5 + $0x2b8] sm:$0xff]
    %v176 = vld [vmem:[#allocation5 + $0x2c0] sm:$0xff]
    %v177 = vld [vmem:[#allocation5 + $0x2c8] sm:$0xff]
    %v178 = vld [vmem:[#allocation5 + $0x2d0] sm:$0xff]
    %v179 = vld [vmem:[#allocation5 + $0x2d8] sm:$0xff]
    %v180 = vld [vmem:[#allocation5 + $0x2e0] sm:$0xff]
    %v181 = vld [vmem:[#allocation5 + $0x2e8] sm:$0xff]
    %v182 = vld [vmem:[#allocation5 + $0x2f0] sm:$0xff]
    %v183 = vld [vmem:[#allocation5 + $0x2f8] sm:$0xff]
    %v184 = vld [vmem:[#allocation5 + $0x300] sm:$0xff]
    %v185 = vld [vmem:[#allocation5 + $0x308] sm:$0xff]
    %v186 = vld [vmem:[#allocation5 + $0x310] sm:$0xff]
    %v187 = vld [vmem:[#allocation5 + $0x318] sm:$0xff]
    %v188 = vld [vmem:[#allocation5 + $0x320] sm:$0xff]
    %v189 = vld [vmem:[#allocation5 + $0x328] sm:$0xff]
    %v190 = vld [vmem:[#allocation5 + $0x330] sm:$0xff]
    %v191 = vld [vmem:[#allocation5 + $0x338] sm:$0xff]
    %v192 = vld [vmem:[#allocation5 + $0x340] sm:$0xff]
    %v193 = vld [vmem:[#allocation5 + $0x348] sm:$0xff]
    %v194 = vld [vmem:[#allocation5 + $0x350] sm:$0xff]
    %v195 = vld [vmem:[#allocation5 + $0x358] sm:$0xff]
    %v196 = vld [vmem:[#allocation5 + $0x360] sm:$0xff]
    %v197 = vld [vmem:[#allocation5 + $0x368] sm:$0xff]
    %v198 = vld [vmem:[#allocation5 + $0x370] sm:$0xff]
    %v199 = vld [vmem:[#allocation5 + $0x378] sm:$0xff]
    %v200 = vld [vmem:[#allocation5 + $0x380] sm:$0xff]
    %v201 = vld [vmem:[#allocation5 + $0x388] sm:$0xff]
    %v202 = vld [vmem:[#allocation5 + $0x390] sm:$0xff]
    %v203 = vld [vmem:[#allocation5 + $0x398] sm:$0xff]
    %v204 = vld [vmem:[#allocation5 + $0x3a0] sm:$0xff]
    %v205 = vld [vmem:[#allocation5 + $0x3a8] sm:$0xff]
    %v206 = vld [vmem:[#allocation5 + $0x3b0] sm:$0xff]
    %v207 = vld [vmem:[#allocation5 + $0x3b8] sm:$0xff]
    %v208 = vld [vmem:[#allocation5 + $0x3c0] sm:$0xff]
    %v209 = vld [vmem:[#allocation5 + $0x3c8] sm:$0xff]
    %v210 = vld [vmem:[#allocation5 + $0x3d0] sm:$0xff]
    %v211 = vld [vmem:[#allocation5 + $0x3d8] sm:$0xff]
    %v212 = vld [vmem:[#allocation5 + $0x3e0] sm:$0xff]
    %v213 = vld [vmem:[#allocation5 + $0x3e8] sm:$0xff]
    %v214 = vld [vmem:[#allocation5 + $0x3f0] sm:$0xff]
    %v215 = vld [vmem:[#allocation5 + $0x3f8] sm:$0xff]
    %v216 = vld [vmem:[#allocation5 + $0x400] sm:$0xff]
    %v217 = vld [vmem:[#allocation5 + $0x408] sm:$0xff]
    %v218 = vld [vmem:[#allocation5 + $0x410] sm:$0xff]
    %v219 = vld [vmem:[#allocation5 + $0x418] sm:$0xff]
    %v220 = vld [vmem:[#allocation5 + $0x420] sm:$0xff]
    %v221 = vld [vmem:[#allocation5 + $0x428] sm:$0xff]
    %v222 = vld [vmem:[#allocation5 + $0x430] sm:$0xff]
    %v223 = vld [vmem:[#allocation5 + $0x438] sm:$0xff]
    %v224 = vld [vmem:[#allocation5 + $0x440] sm:$0xff]
    %v225 = vld [vmem:[#allocation5 + $0x448] sm:$0xff]
    %v226 = vld [vmem:[#allocation5 + $0x450] sm:$0xff]
    %v227 = vld [vmem:[#allocation5 + $0x458] sm:$0xff]
    %v228 = vld [vmem:[#allocation5 + $0x460] sm:$0xff]
    %v229 = vld [vmem:[#allocation5 + $0x468] sm:$0xff]
    %v230 = vld [vmem:[#allocation5 + $0x470] sm:$0xff]
    %v231 = vld [vmem:[#allocation5 + $0x478] sm:$0xff]
    %v232 = vld [vmem:[#allocation5 + $0x480] sm:$0xff]
    %v233 = vld [vmem:[#allocation5 + $0x488] sm:$0xff]
    %v234 = vld [vmem:[#allocation5 + $0x490] sm:$0xff]
    %v235 = vld [vmem:[#allocation5 + $0x498] sm:$0xff]
    %v236 = vld [vmem:[#allocation5 + $0x4a0] sm:$0xff]
    %v237 = vld [vmem:[#allocation5 + $0x4a8] sm:$0xff]
    %v238 = vld [vmem:[#allocation5 + $0x4b0] sm:$0xff]
    %v239 = vld [vmem:[#allocation5 + $0x4b8] sm:$0xff]
    %v240 = vld [vmem:[#allocation5 + $0x4c0] sm:$0xff]
    %v241 = vld [vmem:[#allocation5 + $0x4c8] sm:$0xff]
    %v242 = vld [vmem:[#allocation5 + $0x4d0] sm:$0xff]
    %v243 = vld [vmem:[#allocation5 + $0x4d8] sm:$0xff]
    %v244 = vld [vmem:[#allocation5 + $0x4e0] sm:$0xff]
    %v245 = vld [vmem:[#allocation5 + $0x4e8] sm:$0xff]
    %v246 = vld [vmem:[#allocation5 + $0x4f0] sm:$0xff]
    %v247 = vld [vmem:[#allocation5 + $0x4f8] sm:$0xff]
    %v248 = vld [vmem:[#allocation5 + $0x500] sm:$0xff]
    %v249 = vld [vmem:[#allocation5 + $0x508] sm:$0xff]
    %v250 = vld [vmem:[#allocation5 + $0x510] sm:$0xff]
    %v251 = vld [vmem:[#allocation5 + $0x518] sm:$0xff]
    %v252 = vld [vmem:[#allocation5 + $0x520] sm:$0xff]
    %v253 = vld [vmem:[#allocation5 + $0x528] sm:$0xff]
    %v254 = vld [vmem:[#allocation5 + $0x530] sm:$0xff]
    %v255 = vld [vmem:[#allocation5 + $0x538] sm:$0xff]
    %v256 = vld [vmem:[#allocation5 + $0x540] sm:$0xff]
    %v257 = vld [vmem:[#allocation5 + $0x548] sm:$0xff]
    %v258 = vld [vmem:[#allocation5 + $0x550] sm:$0xff]
    %v259 = vld [vmem:[#allocation5 + $0x558] sm:$0xff]
    %v260 = vld [vmem:[#allocation5 + $0x560] sm:$0xff]
    %v261 = vld [vmem:[#allocation5 + $0x568] sm:$0xff]
    %v262 = vld [vmem:[#allocation5 + $0x570] sm:$0xff]
    %v263 = vld [vmem:[#allocation5 + $0x578] sm:$0xff]
    %v264 = vld [vmem:[#allocation5 + $0x580] sm:$0xff]
    %v265 = vld [vmem:[#allocation5 + $0x588] sm:$0xff]
    %v266 = vld [vmem:[#allocation5 + $0x590] sm:$0xff]
    %v267 = vld [vmem:[#allocation5 + $0x598] sm:$0xff]
    %v268 = vld [vmem:[#allocation5 + $0x5a0] sm:$0xff]
    %v269 = vld [vmem:[#allocation5 + $0x5a8] sm:$0xff]
    %v270 = vld [vmem:[#allocation5 + $0x5b0] sm:$0xff]
    %v271 = vld [vmem:[#allocation5 + $0x5b8] sm:$0xff]
    %v272 = vld [vmem:[#allocation5 + $0x5c0] sm:$0xff]
    %v273 = vld [vmem:[#allocation5 + $0x5c8] sm:$0xff]
    %v274 = vld [vmem:[#allocation5 + $0x5d0] sm:$0xff]
    %v275 = vld [vmem:[#allocation5 + $0x5d8] sm:$0xff]
    %v276 = vld [vmem:[#allocation5 + $0x5e0] sm:$0xff]
    %v277 = vld [vmem:[#allocation5 + $0x5e8] sm:$0xff]
    %v278 = vld [vmem:[#allocation5 + $0x5f0] sm:$0xff]
    %v279 = vld [vmem:[#allocation5 + $0x5f8] sm:$0xff]
    %v280 = vld [vmem:[#allocation5 + $0x600] sm:$0xff]
    %v281 = vld [vmem:[#allocation5 + $0x608] sm:$0xff]
    %v282 = vld [vmem:[#allocation5 + $0x610] sm:$0xff]
    %v283 = vld [vmem:[#allocation5 + $0x618] sm:$0xff]
    %v284 = vld [vmem:[#allocation5 + $0x620] sm:$0xff]
    %v285 = vld [vmem:[#allocation5 + $0x628] sm:$0xff]
    %v286 = vld [vmem:[#allocation5 + $0x630] sm:$0xff]
    %v287 = vld [vmem:[#allocation5 + $0x638] sm:$0xff]
    %v288 = vld [vmem:[#allocation5 + $0x640] sm:$0xff]
    %v289 = vld [vmem:[#allocation5 + $0x648] sm:$0xff]
    %v290 = vld [vmem:[#allocation5 + $0x650] sm:$0xff]
    %v291 = vld [vmem:[#allocation5 + $0x658] sm:$0xff]
    %v292 = vld [vmem:[#allocation5 + $0x660] sm:$0xff]
    %v293 = vld [vmem:[#allocation5 + $0x668] sm:$0xff]
    %v294 = vld [vmem:[#allocation5 + $0x670] sm:$0xff]
    %v295 = vld [vmem:[#allocation5 + $0x678] sm:$0xff]
    %v296 = vld [vmem:[#allocation5 + $0x680] sm:$0xff]
    %v297 = vld [vmem:[#allocation5 + $0x688] sm:$0xff]
    %v298 = vld [vmem:[#allocation5 + $0x690] sm:$0xff]
    %v299 = vld [vmem:[#allocation5 + $0x698] sm:$0xff]
    %v300 = vld [vmem:[#allocation5 + $0x6a0] sm:$0xff]
    %v301 = vld [vmem:[#allocation5 + $0x6a8] sm:$0xff]
    %v302 = vld [vmem:[#allocation5 + $0x6b0] sm:$0xff]
    %v303 = vld [vmem:[#allocation5 + $0x6b8] sm:$0xff]
    %v304 = vld [vmem:[#allocation5 + $0x6c0] sm:$0xff]
    %v305 = vld [vmem:[#allocation5 + $0x6c8] sm:$0xff]
    %v306 = vld [vmem:[#allocation5 + $0x6d0] sm:$0xff]
    %v307 = vld [vmem:[#allocation5 + $0x6d8] sm:$0xff]
    %v308 = vld [vmem:[#allocation5 + $0x6e0] sm:$0xff]
    %v309 = vld [vmem:[#allocation5 + $0x6e8] sm:$0xff]
    %v310 = vld [vmem:[#allocation5 + $0x6f0] sm:$0xff]
    %v311 = vld [vmem:[#allocation5 + $0x6f8] sm:$0xff]
    %v312 = vld [vmem:[#allocation5 + $0x700] sm:$0xff]
    %v313 = vld [vmem:[#allocation5 + $0x708] sm:$0xff]
    %v314 = vld [vmem:[#allocation5 + $0x710] sm:$0xff]
    %v315 = vld [vmem:[#allocation5 + $0x718] sm:$0xff]
    %v316 = vld [vmem:[#allocation5 + $0x720] sm:$0xff]
    %v317 = vld [vmem:[#allocation5 + $0x728] sm:$0xff]
    %v318 = vld [vmem:[#allocation5 + $0x730] sm:$0xff]
    %v319 = vld [vmem:[#allocation5 + $0x738] sm:$0xff]
    %v320 = vld [vmem:[#allocation5 + $0x740] sm:$0xff]
    %v321 = vld [vmem:[#allocation5 + $0x748] sm:$0xff]
    %v322 = vld [vmem:[#allocation5 + $0x750] sm:$0xff]
    %v323 = vld [vmem:[#allocation5 + $0x758] sm:$0xff]
    %v324 = vld [vmem:[#allocation5 + $0x760] sm:$0xff]
    %v325 = vld [vmem:[#allocation5 + $0x768] sm:$0xff]
    %v326 = vld [vmem:[#allocation5 + $0x770] sm:$0xff]
    %v327 = vld [vmem:[#allocation5 + $0x778] sm:$0xff]
    %v328 = vld [vmem:[#allocation5 + $0x780] sm:$0xff]
    %v329 = vld [vmem:[#allocation5 + $0x788] sm:$0xff]
    %v330 = vld [vmem:[#allocation5 + $0x790] sm:$0xff]
    %v331 = vld [vmem:[#allocation5 + $0x798] sm:$0xff]
    %v332 = vld [vmem:[#allocation5 + $0x7a0] sm:$0xff]
    %v333 = vld [vmem:[#allocation5 + $0x7a8] sm:$0xff]
    %v334 = vld [vmem:[#allocation5 + $0x7b0] sm:$0xff]
    %v335 = vld [vmem:[#allocation5 + $0x7b8] sm:$0xff]
    %v336 = vld [vmem:[#allocation5 + $0x7c0] sm:$0xff]
    %v337 = vld [vmem:[#allocation5 + $0x7c8] sm:$0xff]
    %v338 = vld [vmem:[#allocation5 + $0x7d0] sm:$0xff]
    %v339 = vld [vmem:[#allocation5 + $0x7d8] sm:$0xff]
    %v340 = vld [vmem:[#allocation5 + $0x7e0] sm:$0xff]
    %v341 = vld [vmem:[#allocation5 + $0x7e8] sm:$0xff]
    %v342 = vld [vmem:[#allocation5 + $0x7f0] sm:$0xff]
    %v343 = vld [vmem:[#allocation5 + $0x7f8] sm:$0xff]
    %v344 = vld [vmem:[#allocation5 + $0x800] sm:$0xff]
    %v345 = vld [vmem:[#allocation5 + $0x808] sm:$0xff]
    %v346 = vld [vmem:[#allocation5 + $0x810] sm:$0xff]
    %v347 = vld [vmem:[#allocation5 + $0x818] sm:$0xff]
    %v348 = vld [vmem:[#allocation5 + $0x820] sm:$0xff]
    %v349 = vld [vmem:[#allocation5 + $0x828] sm:$0xff]
    %v350 = vld [vmem:[#allocation5 + $0x830] sm:$0xff]
    %v351 = vld [vmem:[#allocation5 + $0x838] sm:$0xff]
    %v352 = vld [vmem:[#allocation5 + $0x840] sm:$0xff]
    %v353 = vld [vmem:[#allocation5 + $0x848] sm:$0xff]
    %v354 = vld [vmem:[#allocation5 + $0x850] sm:$0xff]
    %v355 = vld [vmem:[#allocation5 + $0x858] sm:$0xff]
    %v356 = vld [vmem:[#allocation5 + $0x860] sm:$0xff]
    %v357 = vld [vmem:[#allocation5 + $0x868] sm:$0xff]
    %v358 = vld [vmem:[#allocation5 + $0x870] sm:$0xff]
    %v359 = vld [vmem:[#allocation5 + $0x878] sm:$0xff]
    %v360 = vld [vmem:[#allocation5 + $0x880] sm:$0xff]
    %v361 = vld [vmem:[#allocation5 + $0x888] sm:$0xff]
    %v362 = vld [vmem:[#allocation5 + $0x890] sm:$0xff]
    %v363 = vld [vmem:[#allocation5 + $0x898] sm:$0xff]
    %v364 = vld [vmem:[#allocation5 + $0x8a0] sm:$0xff]
    %v365 = vld [vmem:[#allocation5 + $0x8a8] sm:$0xff]
    %v366 = vld [vmem:[#allocation5 + $0x8b0] sm:$0xff]
    %v367 = vld [vmem:[#allocation5 + $0x8b8] sm:$0xff]
    %v368 = vld [vmem:[#allocation5 + $0x8c0] sm:$0xff]
    %v369 = vld [vmem:[#allocation5 + $0x8c8] sm:$0xff]
    %v370 = vld [vmem:[#allocation5 + $0x8d0] sm:$0xff]
    %v371 = vld [vmem:[#allocation5 + $0x8d8] sm:$0xff]
    %v372 = vld [vmem:[#allocation5 + $0x8e0] sm:$0xff]
    %v373 = vld [vmem:[#allocation5 + $0x8e8] sm:$0xff]
    %v374 = vld [vmem:[#allocation5 + $0x8f0] sm:$0xff]
    %v375 = vld [vmem:[#allocation5 + $0x8f8] sm:$0xff]
    %v376 = vld [vmem:[#allocation5 + $0x900] sm:$0xff]
    %v377 = vld [vmem:[#allocation5 + $0x908] sm:$0xff]
    %v378 = vld [vmem:[#allocation5 + $0x910] sm:$0xff]
    %v379 = vld [vmem:[#allocation5 + $0x918] sm:$0xff]
    %v380 = vld [vmem:[#allocation5 + $0x920] sm:$0xff]
    %v381 = vld [vmem:[#allocation5 + $0x928] sm:$0xff]
    %v382 = vld [vmem:[#allocation5 + $0x930] sm:$0xff]
    %v383 = vld [vmem:[#allocation5 + $0x938] sm:$0xff]
    %v384 = vld [vmem:[#allocation5 + $0x940] sm:$0xff]
    %v385 = vld [vmem:[#allocation5 + $0x948] sm:$0xff]
    %v386 = vld [vmem:[#allocation5 + $0x950] sm:$0xff]
    %v387 = vld [vmem:[#allocation5 + $0x958] sm:$0xff]
    %v388 = vld [vmem:[#allocation5 + $0x960] sm:$0xff]
    %v389 = vld [vmem:[#allocation5 + $0x968] sm:$0xff]
    %v390 = vld [vmem:[#allocation5 + $0x970] sm:$0xff]
    %v391 = vld [vmem:[#allocation5 + $0x978] sm:$0xff]
    %v392 = vld [vmem:[#allocation5 + $0x980] sm:$0xff]
    %v393 = vld [vmem:[#allocation5 + $0x988] sm:$0xff]
    %v394 = vld [vmem:[#allocation5 + $0x990] sm:$0xff]
    %v395 = vld [vmem:[#allocation5 + $0x998] sm:$0xff]
    %v396 = vld [vmem:[#allocation5 + $0x9a0] sm:$0xff]
    %v397 = vld [vmem:[#allocation5 + $0x9a8] sm:$0xff]
    %v398 = vld [vmem:[#allocation5 + $0x9b0] sm:$0xff]
    %v399 = vld [vmem:[#allocation5 + $0x9b8] sm:$0xff]
    %v400 = vld [vmem:[#allocation5 + $0x9c0] sm:$0xff]
    %v401 = vld [vmem:[#allocation5 + $0x9c8] sm:$0xff]
    %v402 = vld [vmem:[#allocation5 + $0x9d0] sm:$0xff]
    %v403 = vld [vmem:[#allocation5 + $0x9d8] sm:$0xff]
    %v404 = vld [vmem:[#allocation5 + $0x9e0] sm:$0xff]
    %v405 = vld [vmem:[#allocation5 + $0x9e8] sm:$0xff]
    %v406 = vld [vmem:[#allocation5 + $0x9f0] sm:$0xff]
    %v407 = vld [vmem:[#allocation5 + $0x9f8] sm:$0xff]
    %v408 = vld [vmem:[#allocation5 + $0xa00] sm:$0xff]
    %v409 = vld [vmem:[#allocation5 + $0xa08] sm:$0xff]
    %v410 = vld [vmem:[#allocation5 + $0xa10] sm:$0xff]
    %v411 = vld [vmem:[#allocation5 + $0xa18] sm:$0xff]
    %v412 = vld [vmem:[#allocation5 + $0xa20] sm:$0xff]
    %v413 = vld [vmem:[#allocation5 + $0xa28] sm:$0xff]
    %v414 = vld [vmem:[#allocation5 + $0xa30] sm:$0xff]
    %v415 = vld [vmem:[#allocation5 + $0xa38] sm:$0xff]
    %v416 = vld [vmem:[#allocation5 + $0xa40] sm:$0xff]
    %v417 = vld [vmem:[#allocation5 + $0xa48] sm:$0xff]
    %v418 = vld [vmem:[#allocation5 + $0xa50] sm:$0xff]
    %v419 = vld [vmem:[#allocation5 + $0xa58] sm:$0xff]
    %v420 = vld [vmem:[#allocation5 + $0xa60] sm:$0xff]
    %v421 = vld [vmem:[#allocation5 + $0xa68] sm:$0xff]
    %v422 = vld [vmem:[#allocation5 + $0xa70] sm:$0xff]
    %v423 = vld [vmem:[#allocation5 + $0xa78] sm:$0xff]
    %v424 = vld [vmem:[#allocation5 + $0xa80] sm:$0xff]
    %v425 = vld [vmem:[#allocation5 + $0xa88] sm:$0xff]
    %v426 = vld [vmem:[#allocation5 + $0xa90] sm:$0xff]
    %v427 = vld [vmem:[#allocation5 + $0xa98] sm:$0xff]
    %v428 = vld [vmem:[#allocation5 + $0xaa0] sm:$0xff]
    %v429 = vld [vmem:[#allocation5 + $0xaa8] sm:$0xff]
    %v430 = vld [vmem:[#allocation5 + $0xab0] sm:$0xff]
    %v431 = vld [vmem:[#allocation5 + $0xab8] sm:$0xff]
    %v432 = vld [vmem:[#allocation5 + $0xac0] sm:$0xff]
    %v433 = vld [vmem:[#allocation5 + $0xac8] sm:$0xff]
    %v434 = vld [vmem:[#allocation5 + $0xad0] sm:$0xff]
    %v435 = vld [vmem:[#allocation5 + $0xad8] sm:$0xff]
    %v436 = vld [vmem:[#allocation5 + $0xae0] sm:$0xff]
    %v437 = vld [vmem:[#allocation5 + $0xae8] sm:$0xff]
    %v438 = vld [vmem:[#allocation5 + $0xaf0] sm:$0xff]
    %v439 = vld [vmem:[#allocation5 + $0xaf8] sm:$0xff]
    %v440 = vld [vmem:[#allocation5 + $0xb00] sm:$0xff]
    %v441 = vld [vmem:[#allocation5 + $0xb08] sm:$0xff]
    %v442 = vld [vmem:[#allocation5 + $0xb10] sm:$0xff]
    %v443 = vld [vmem:[#allocation5 + $0xb18] sm:$0xff]
    %v444 = vld [vmem:[#allocation5 + $0xb20] sm:$0xff]
    %v445 = vld [vmem:[#allocation5 + $0xb28] sm:$0xff]
    %v446 = vld [vmem:[#allocation5 + $0xb30] sm:$0xff]
    %v447 = vld [vmem:[#allocation5 + $0xb38] sm:$0xff]
    %v448 = vld [vmem:[#allocation5 + $0xb40] sm:$0xff]
    %v449 = vld [vmem:[#allocation5 + $0xb48] sm:$0xff]
    %v450 = vld [vmem:[#allocation5 + $0xb50] sm:$0xff]
    %v451 = vld [vmem:[#allocation5 + $0xb58] sm:$0xff]
    %v452 = vld [vmem:[#allocation5 + $0xb60] sm:$0xff]
    %v453 = vld [vmem:[#allocation5 + $0xb68] sm:$0xff]
    %v454 = vld [vmem:[#allocation5 + $0xb70] sm:$0xff]
    %v455 = vld [vmem:[#allocation5 + $0xb78] sm:$0xff]
    %v456 = vld [vmem:[#allocation5 + $0xb80] sm:$0xff]
    %v457 = vld [vmem:[#allocation5 + $0xb88] sm:$0xff]
    %v458 = vld [vmem:[#allocation5 + $0xb90] sm:$0xff]
    %v459 = vld [vmem:[#allocation5 + $0xb98] sm:$0xff]
    %v460 = vld [vmem:[#allocation5 + $0xba0] sm:$0xff]
    %v461 = vld [vmem:[#allocation5 + $0xba8] sm:$0xff]
    %v462 = vld [vmem:[#allocation5 + $0xbb0] sm:$0xff]
    %v463 = vld [vmem:[#allocation5 + $0xbb8] sm:$0xff]
    %v464 = vld [vmem:[#allocation5 + $0xbc0] sm:$0xff]
    %v465 = vld [vmem:[#allocation5 + $0xbc8] sm:$0xff]
    %v466 = vld [vmem:[#allocation5 + $0xbd0] sm:$0xff]
    %v467 = vld [vmem:[#allocation5 + $0xbd8] sm:$0xff]
    %v468 = vld [vmem:[#allocation5 + $0xbe0] sm:$0xff]
    %v469 = vld [vmem:[#allocation5 + $0xbe8] sm:$0xff]
    %v470 = vld [vmem:[#allocation5 + $0xbf0] sm:$0xff]
    %v471 = vld [vmem:[#allocation5 + $0xbf8] sm:$0xff]
    %v472 = vld [vmem:[#allocation5 + $0xc00] sm:$0xff]
    %v473 = vld [vmem:[#allocation5 + $0xc08] sm:$0xff]
    %v474 = vld [vmem:[#allocation5 + $0xc10] sm:$0xff]
    %v475 = vld [vmem:[#allocation5 + $0xc18] sm:$0xff]
    %v476 = vld [vmem:[#allocation5 + $0xc20] sm:$0xff]
    %v477 = vld [vmem:[#allocation5 + $0xc28] sm:$0xff]
    %v478 = vld [vmem:[#allocation5 + $0xc30] sm:$0xff]
    %v479 = vld [vmem:[#allocation5 + $0xc38] sm:$0xff]
    %v480 = vld [vmem:[#allocation5 + $0xc40] sm:$0xff]
    %v481 = vld [vmem:[#allocation5 + $0xc48] sm:$0xff]
    %v482 = vld [vmem:[#allocation5 + $0xc50] sm:$0xff]
    %v483 = vld [vmem:[#allocation5 + $0xc58] sm:$0xff]
    %v484 = vld [vmem:[#allocation5 + $0xc60] sm:$0xff]
    %v485 = vld [vmem:[#allocation5 + $0xc68] sm:$0xff]
    %v486 = vld [vmem:[#allocation5 + $0xc70] sm:$0xff]
    %v487 = vld [vmem:[#allocation5 + $0xc78] sm:$0xff]
    %v488 = vld [vmem:[#allocation5 + $0xc80] sm:$0xff]
    %v489 = vld [vmem:[#allocation5 + $0xc88] sm:$0xff]
    %v490 = vld [vmem:[#allocation5 + $0xc90] sm:$0xff]
    %v491 = vld [vmem:[#allocation5 + $0xc98] sm:$0xff]
    %v492 = vld [vmem:[#allocation5 + $0xca0] sm:$0xff]
    %v493 = vld [vmem:[#allocation5 + $0xca8] sm:$0xff]
    %v494 = vld [vmem:[#allocation5 + $0xcb0] sm:$0xff]
    %v495 = vld [vmem:[#allocation5 + $0xcb8] sm:$0xff]
    %v496 = vld [vmem:[#allocation5 + $0xcc0] sm:$0xff]
    %v497 = vld [vmem:[#allocation5 + $0xcc8] sm:$0xff]
    %v498 = vld [vmem:[#allocation5 + $0xcd0] sm:$0xff]
    %v499 = vld [vmem:[#allocation5 + $0xcd8] sm:$0xff]
    %v500 = vld [vmem:[#allocation5 + $0xce0] sm:$0xff]
    %v501 = vld [vmem:[#allocation5 + $0xce8] sm:$0xff]
    %v502 = vld [vmem:[#allocation5 + $0xcf0] sm:$0xff]
    %v503 = vld [vmem:[#allocation5 + $0xcf8] sm:$0xff]
    %v504 = vld [vmem:[#allocation5 + $0xd00] sm:$0xff]
    %v505 = vld [vmem:[#allocation5 + $0xd08] sm:$0xff]
    %v506 = vld [vmem:[#allocation5 + $0xd10] sm:$0xff]
    %v507 = vld [vmem:[#allocation5 + $0xd18] sm:$0xff]
    %v508 = vld [vmem:[#allocation5 + $0xd20] sm:$0xff]
    %v509 = vld [vmem:[#allocation5 + $0xd28] sm:$0xff]
    %v510 = vld [vmem:[#allocation5 + $0xd30] sm:$0xff]
    %v511 = vld [vmem:[#allocation5 + $0xd38] sm:$0xff]
    %v512 = vld [vmem:[#allocation5 + $0xd40] sm:$0xff]
    %v513 = vld [vmem:[#allocation5 + $0xd48] sm:$0xff]
    %v514 = vld [vmem:[#allocation5 + $0xd50] sm:$0xff]
    %v515 = vld [vmem:[#allocation5 + $0xd58] sm:$0xff]
    %v516 = vld [vmem:[#allocation5 + $0xd60] sm:$0xff]
    %v517 = vld [vmem:[#allocation5 + $0xd68] sm:$0xff]
    %v518 = vld [vmem:[#allocation5 + $0xd70] sm:$0xff]
    %v519 = vld [vmem:[#allocation5 + $0xd78] sm:$0xff]
    %v520 = vld [vmem:[#allocation5 + $0xd80] sm:$0xff]
    %v521 = vld [vmem:[#allocation5 + $0xd88] sm:$0xff]
    %v522 = vld [vmem:[#allocation5 + $0xd90] sm:$0xff]
    %v523 = vld [vmem:[#allocation5 + $0xd98] sm:$0xff]
    %v524 = vld [vmem:[#allocation5 + $0xda0] sm:$0xff]
    %v525 = vld [vmem:[#allocation5 + $0xda8] sm:$0xff]
    %v526 = vld [vmem:[#allocation5 + $0xdb0] sm:$0xff]
    %v527 = vld [vmem:[#allocation5 + $0xdb8] sm:$0xff]
    %v528 = vld [vmem:[#allocation5 + $0xdc0] sm:$0xff]
    %v529 = vld [vmem:[#allocation5 + $0xdc8] sm:$0xff]
    %v530 = vld [vmem:[#allocation5 + $0xdd0] sm:$0xff]
    %v531 = vld [vmem:[#allocation5 + $0xdd8] sm:$0xff]
    %v532 = vld [vmem:[#allocation5 + $0xde0] sm:$0xff]
    %v533 = vld [vmem:[#allocation5 + $0xde8] sm:$0xff]
    %v534 = vld [vmem:[#allocation5 + $0xdf0] sm:$0xff]
    %v535 = vld [vmem:[#allocation5 + $0xdf8] sm:$0xff]
    %v536 = vld [vmem:[#allocation5 + $0xe00] sm:$0xff]
    %v537 = vld [vmem:[#allocation5 + $0xe08] sm:$0xff]
    %v538 = vld [vmem:[#allocation5 + $0xe10] sm:$0xff]
    %v539 = vld [vmem:[#allocation5 + $0xe18] sm:$0xff]
    %v540 = vld [vmem:[#allocation5 + $0xe20] sm:$0xff]
    %v541 = vld [vmem:[#allocation5 + $0xe28] sm:$0xff]
    %v542 = vld [vmem:[#allocation5 + $0xe30] sm:$0xff]
    %v543 = vld [vmem:[#allocation5 + $0xe38] sm:$0xff]
    %v544 = vld [vmem:[#allocation5 + $0xe40] sm:$0xff]
    %v545 = vld [vmem:[#allocation5 + $0xe48] sm:$0xff]
    %v546 = vld [vmem:[#allocation5 + $0xe50] sm:$0xff]
    %v547 = vld [vmem:[#allocation5 + $0xe58] sm:$0xff]
    %v548 = vld [vmem:[#allocation5 + $0xe60] sm:$0xff]
    %v549 = vld [vmem:[#allocation5 + $0xe68] sm:$0xff]
    %v550 = vld [vmem:[#allocation5 + $0xe70] sm:$0xff]
    %v551 = vld [vmem:[#allocation5 + $0xe78] sm:$0xff]
    %v552 = vld [vmem:[#allocation5 + $0xe80] sm:$0xff]
    %v553 = vld [vmem:[#allocation5 + $0xe88] sm:$0xff]
    %v554 = vld [vmem:[#allocation5 + $0xe90] sm:$0xff]
    %v555 = vld [vmem:[#allocation5 + $0xe98] sm:$0xff]
    %v556 = vld [vmem:[#allocation5 + $0xea0] sm:$0xff]
    %v557 = vld [vmem:[#allocation5 + $0xea8] sm:$0xff]
    %v558 = vld [vmem:[#allocation5 + $0xeb0] sm:$0xff]
    %v559 = vld [vmem:[#allocation5 + $0xeb8] sm:$0xff]
    %v560 = vld [vmem:[#allocation5 + $0xec0] sm:$0xff]
    %v561 = vld [vmem:[#allocation5 + $0xec8] sm:$0xff]
    %v562 = vld [vmem:[#allocation5 + $0xed0] sm:$0xff]
    %v563 = vld [vmem:[#allocation5 + $0xed8] sm:$0xff]
    %v564 = vld [vmem:[#allocation5 + $0xee0] sm:$0xff]
    %v565 = vld [vmem:[#allocation5 + $0xee8] sm:$0xff]
    %v566 = vld [vmem:[#allocation5 + $0xef0] sm:$0xff]
    %v567 = vld [vmem:[#allocation5 + $0xef8] sm:$0xff]
    %v568 = vld [vmem:[#allocation5 + $0xf00] sm:$0xff]
    %v569 = vld [vmem:[#allocation5 + $0xf08] sm:$0xff]
    %v570 = vld [vmem:[#allocation5 + $0xf10] sm:$0xff]
    %v571 = vld [vmem:[#allocation5 + $0xf18] sm:$0xff]
    %v572 = vld [vmem:[#allocation5 + $0xf20] sm:$0xff]
    %v573 = vld [vmem:[#allocation5 + $0xf28] sm:$0xff]
    %v574 = vld [vmem:[#allocation5 + $0xf30] sm:$0xff]
    %v575 = vld [vmem:[#allocation5 + $0xf38] sm:$0xff]
    %v576 = vld [vmem:[#allocation5 + $0xf40] sm:$0xff]
    %v577 = vld [vmem:[#allocation5 + $0xf48] sm:$0xff]
    %v578 = vld [vmem:[#allocation5 + $0xf50] sm:$0xff]
    %v579 = vld [vmem:[#allocation5 + $0xf58] sm:$0xff]
    %v580 = vld [vmem:[#allocation5 + $0xf60] sm:$0xff]
    %v581 = vld [vmem:[#allocation5 + $0xf68] sm:$0xff]
    %v582 = vld [vmem:[#allocation5 + $0xf70] sm:$0xff]
    %v583 = vld [vmem:[#allocation5 + $0xf78] sm:$0xff]
    %v584 = vld [vmem:[#allocation5 + $0xf80] sm:$0xff]
    %v585 = vld [vmem:[#allocation5 + $0xf88] sm:$0xff]
    %v586 = vld [vmem:[#allocation5 + $0xf90] sm:$0xff]
    %v587 = vld [vmem:[#allocation5 + $0xf98] sm:$0xff]
    %v588 = vld [vmem:[#allocation5 + $0xfa0] sm:$0xff]
    %v589 = vld [vmem:[#allocation5 + $0xfa8] sm:$0xff]
    %v590 = vld [vmem:[#allocation5 + $0xfb0] sm:$0xff]
    %v591 = vld [vmem:[#allocation5 + $0xfb8] sm:$0xff]
    %v592 = vld [vmem:[#allocation5 + $0xfc0] sm:$0xff]
    %v593 = vld [vmem:[#allocation5 + $0xfc8] sm:$0xff]
    %v594 = vld [vmem:[#allocation5 + $0xfd0] sm:$0xff]
    %v595 = vld [vmem:[#allocation5 + $0xfd8] sm:$0xff]
    %v596 = vld [vmem:[#allocation5 + $0xfe0] sm:$0xff]
    %v597 = vld [vmem:[#allocation5 + $0xfe8] sm:$0xff]
    %v598 = vld [vmem:[#allocation5 + $0xff0] sm:$0xff]
    %v599 = vld [vmem:[#allocation5 + $0xff8] sm:$0xff]
    %v600 = vld [vmem:[#allocation5 + $0x1000] sm:$0xff]
    %v601 = vld [vmem:[#allocation5 + $0x1008] sm:$0xff]
    %v602 = vld [vmem:[#allocation5 + $0x1010] sm:$0xff]
    %v603 = vld [vmem:[#allocation5 + $0x1018] sm:$0xff]
    %v604 = vld [vmem:[#allocation5 + $0x1020] sm:$0xff]
    %v605 = vld [vmem:[#allocation5 + $0x1028] sm:$0xff]
    %v606 = vld [vmem:[#allocation5 + $0x1030] sm:$0xff]
    %v607 = vld [vmem:[#allocation5 + $0x1038] sm:$0xff]
    %v608 = vld [vmem:[#allocation5 + $0x1040] sm:$0xff]
    %v609 = vld [vmem:[#allocation5 + $0x1048] sm:$0xff]
    %v610 = vld [vmem:[#allocation5 + $0x1050] sm:$0xff]
    %v611 = vld [vmem:[#allocation5 + $0x1058] sm:$0xff]
    %v612 = vld [vmem:[#allocation5 + $0x1060] sm:$0xff]
    %v613 = vld [vmem:[#allocation5 + $0x1068] sm:$0xff]
    %v614 = vld [vmem:[#allocation5 + $0x1070] sm:$0xff]
    %v615 = vld [vmem:[#allocation5 + $0x1078] sm:$0xff]
    %v616 = vld [vmem:[#allocation5 + $0x1080] sm:$0xff]
    %v617 = vld [vmem:[#allocation5 + $0x1088] sm:$0xff]
    %v618 = vld [vmem:[#allocation5 + $0x1090] sm:$0xff]
    %v619 = vld [vmem:[#allocation5 + $0x1098] sm:$0xff]
    %v620 = vld [vmem:[#allocation5 + $0x10a0] sm:$0xff]
    %v621 = vld [vmem:[#allocation5 + $0x10a8] sm:$0xff]
    %v622 = vld [vmem:[#allocation5 + $0x10b0] sm:$0xff]
    %v623 = vld [vmem:[#allocation5 + $0x10b8] sm:$0xff]
    %v624 = vld [vmem:[#allocation5 + $0x10c0] sm:$0xff]
    %v625 = vld [vmem:[#allocation5 + $0x10c8] sm:$0xff]
    %v626 = vld [vmem:[#allocation5 + $0x10d0] sm:$0xff]
    %v627 = vld [vmem:[#allocation5 + $0x10d8] sm:$0xff]
    %v628 = vld [vmem:[#allocation5 + $0x10e0] sm:$0xff]
    %v629 = vld [vmem:[#allocation5 + $0x10e8] sm:$0xff]
    %v630 = vld [vmem:[#allocation5 + $0x10f0] sm:$0xff]
    %v631 = vld [vmem:[#allocation5 + $0x10f8] sm:$0xff]
    %v632 = vld [vmem:[#allocation5 + $0x1100] sm:$0xff]
    %v633 = vld [vmem:[#allocation5 + $0x1108] sm:$0xff]
    %v634 = vld [vmem:[#allocation5 + $0x1110] sm:$0xff]
    %v635 = vld [vmem:[#allocation5 + $0x1118] sm:$0xff]
    %v636 = vld [vmem:[#allocation5 + $0x1120] sm:$0xff]
    %v637 = vld [vmem:[#allocation5 + $0x1128] sm:$0xff]
    %v638 = vld [vmem:[#allocation5 + $0x1130] sm:$0xff]
    %v639 = vld [vmem:[#allocation5 + $0x1138] sm:$0xff]
    %v640 = vld [vmem:[#allocation5 + $0x1140] sm:$0xff]
    %v641 = vld [vmem:[#allocation5 + $0x1148] sm:$0xff]
    %v642 = vld [vmem:[#allocation5 + $0x1150] sm:$0xff]
    %v643 = vld [vmem:[#allocation5 + $0x1158] sm:$0xff]
    %v644 = vld [vmem:[#allocation5 + $0x1160] sm:$0xff]
    %v645 = vld [vmem:[#allocation5 + $0x1168] sm:$0xff]
    %v646 = vld [vmem:[#allocation5 + $0x1170] sm:$0xff]
    %v647 = vld [vmem:[#allocation5 + $0x1178] sm:$0xff]
    %v648 = vld [vmem:[#allocation5 + $0x1180] sm:$0xff]
    %v649 = vld [vmem:[#allocation5 + $0x1188] sm:$0xff]
    %v650 = vld [vmem:[#allocation5 + $0x1190] sm:$0xff]
    %v651 = vld [vmem:[#allocation5 + $0x1198] sm:$0xff]
    %v652 = vld [vmem:[#allocation5 + $0x11a0] sm:$0xff]
    %v653 = vld [vmem:[#allocation5 + $0x11a8] sm:$0xff]
    %v654 = vld [vmem:[#allocation5 + $0x11b0] sm:$0xff]
    %v655 = vld [vmem:[#allocation5 + $0x11b8] sm:$0xff]
    %v656 = vld [vmem:[#allocation5 + $0x11c0] sm:$0xff]
    %v657 = vld [vmem:[#allocation5 + $0x11c8] sm:$0xff]
    %v658 = vld [vmem:[#allocation5 + $0x11d0] sm:$0xff]
    %v659 = vld [vmem:[#allocation5 + $0x11d8] sm:$0xff]
    %v660 = vld [vmem:[#allocation5 + $0x11e0] sm:$0xff]
    %v661 = vld [vmem:[#allocation5 + $0x11e8] sm:$0xff]
    %v662 = vld [vmem:[#allocation5 + $0x11f0] sm:$0xff]
    %v663 = vld [vmem:[#allocation5 + $0x11f8] sm:$0xff]
    %v664 = vld [vmem:[#allocation5 + $0x1200] sm:$0xff]
    %v665 = vld [vmem:[#allocation5 + $0x1208] sm:$0xff]
    %v666 = vld [vmem:[#allocation5 + $0x1210] sm:$0xff]
    %v667 = vld [vmem:[#allocation5 + $0x1218] sm:$0xff]
    %v668 = vld [vmem:[#allocation5 + $0x1220] sm:$0xff]
    %v669 = vld [vmem:[#allocation5 + $0x1228] sm:$0xff]
    %v670 = vld [vmem:[#allocation5 + $0x1230] sm:$0xff]
    %v671 = vld [vmem:[#allocation5 + $0x1238] sm:$0xff]
    %v672 = vld [vmem:[#allocation5 + $0x1240] sm:$0xff]
    %v673 = vld [vmem:[#allocation5 + $0x1248] sm:$0xff]
    %v674 = vld [vmem:[#allocation5 + $0x1250] sm:$0xff]
    %v675 = vld [vmem:[#allocation5 + $0x1258] sm:$0xff]
    %v676 = vld [vmem:[#allocation5 + $0x1260] sm:$0xff]
    %v677 = vld [vmem:[#allocation5 + $0x1268] sm:$0xff]
    %v678 = vld [vmem:[#allocation5 + $0x1270] sm:$0xff]
    %v679 = vld [vmem:[#allocation5 + $0x1278] sm:$0xff]
    %v680 = vld [vmem:[#allocation5 + $0x1280] sm:$0xff]
    %v681 = vld [vmem:[#allocation5 + $0x1288] sm:$0xff]
    %v682 = vld [vmem:[#allocation5 + $0x1290] sm:$0xff]
    %v683 = vld [vmem:[#allocation5 + $0x1298] sm:$0xff]
    %v684 = vld [vmem:[#allocation5 + $0x12a0] sm:$0xff]
    %v685 = vld [vmem:[#allocation5 + $0x12a8] sm:$0xff]
    %v686 = vld [vmem:[#allocation5 + $0x12b0] sm:$0xff]
    %v687 = vld [vmem:[#allocation5 + $0x12b8] sm:$0xff]
    %v688 = vld [vmem:[#allocation5 + $0x12c0] sm:$0xff]
    %v689 = vld [vmem:[#allocation5 + $0x12c8] sm:$0xff]
    %v690 = vld [vmem:[#allocation5 + $0x12d0] sm:$0xff]
    %v691 = vld [vmem:[#allocation5 + $0x12d8] sm:$0xff]
    %v692 = vld [vmem:[#allocation5 + $0x12e0] sm:$0xff]
    %v693 = vld [vmem:[#allocation5 + $0x12e8] sm:$0xff]
    %v694 = vld [vmem:[#allocation5 + $0x12f0] sm:$0xff]
    %v695 = vld [vmem:[#allocation5 + $0x12f8] sm:$0xff]
    %v696 = vld [vmem:[#allocation5 + $0x1300] sm:$0xff]
    %v697 = vld [vmem:[#allocation5 + $0x1308] sm:$0xff]
    %v698 = vld [vmem:[#allocation5 + $0x1310] sm:$0xff]
    %v699 = vld [vmem:[#allocation5 + $0x1318] sm:$0xff]
    %v700 = vld [vmem:[#allocation5 + $0x1320] sm:$0xff]
    %v701 = vld [vmem:[#allocation5 + $0x1328] sm:$0xff]
    %v702 = vld [vmem:[#allocation5 + $0x1330] sm:$0xff]
    %v703 = vld [vmem:[#allocation5 + $0x1338] sm:$0xff]
    %v704 = vld [vmem:[#allocation5 + $0x1340] sm:$0xff]
    %v705 = vld [vmem:[#allocation5 + $0x1348] sm:$0xff]
    %v706 = vld [vmem:[#allocation5 + $0x1350] sm:$0xff]
    %v707 = vld [vmem:[#allocation5 + $0x1358] sm:$0xff]
    %v708 = vld [vmem:[#allocation5 + $0x1360] sm:$0xff]
    %v709 = vld [vmem:[#allocation5 + $0x1368] sm:$0xff]
    %v710 = vld [vmem:[#allocation5 + $0x1370] sm:$0xff]
    %v711 = vld [vmem:[#allocation5 + $0x1378] sm:$0xff]
    %v712 = vld [vmem:[#allocation5 + $0x1380] sm:$0xff]
    %v713 = vld [vmem:[#allocation5 + $0x1388] sm:$0xff]
    %v714 = vld [vmem:[#allocation5 + $0x1390] sm:$0xff]
    %v715 = vld [vmem:[#allocation5 + $0x1398] sm:$0xff]
    %v716 = vld [vmem:[#allocation5 + $0x13a0] sm:$0xff]
    %v717 = vld [vmem:[#allocation5 + $0x13a8] sm:$0xff]
    %v718 = vld [vmem:[#allocation5 + $0x13b0] sm:$0xff]
    %v719 = vld [vmem:[#allocation5 + $0x13b8] sm:$0xff]
    %v720 = vld [vmem:[#allocation5 + $0x13c0] sm:$0xff]
    %v721 = vld [vmem:[#allocation5 + $0x13c8] sm:$0xff]
    %v722 = vld [vmem:[#allocation5 + $0x13d0] sm:$0xff]
    %v723 = vld [vmem:[#allocation5 + $0x13d8] sm:$0xff]
    %v724 = vld [vmem:[#allocation5 + $0x13e0] sm:$0xff]
    %v725 = vld [vmem:[#allocation5 + $0x13e8] sm:$0xff]
    %v726 = vld [vmem:[#allocation5 + $0x13f0] sm:$0xff]
    %v727 = vld [vmem:[#allocation5 + $0x13f8] sm:$0xff]
    %v728 = vld [vmem:[#allocation5 + $0x1400] sm:$0xff]
    %v729 = vld [vmem:[#allocation5 + $0x1408] sm:$0xff]
    %v730 = vld [vmem:[#allocation5 + $0x1410] sm:$0xff]
    %v731 = vld [vmem:[#allocation5 + $0x1418] sm:$0xff]
    %v732 = vld [vmem:[#allocation5 + $0x1420] sm:$0xff]
    %v733 = vld [vmem:[#allocation5 + $0x1428] sm:$0xff]
    %v734 = vld [vmem:[#allocation5 + $0x1430] sm:$0xff]
    %v735 = vld [vmem:[#allocation5 + $0x1438] sm:$0xff]
    %v736 = vld [vmem:[#allocation5 + $0x1440] sm:$0xff]
    %v737 = vld [vmem:[#allocation5 + $0x1448] sm:$0xff]
    %v738 = vld [vmem:[#allocation5 + $0x1450] sm:$0xff]
    %v739 = vld [vmem:[#allocation5 + $0x1458] sm:$0xff]
    %v740 = vld [vmem:[#allocation5 + $0x1460] sm:$0xff]
    %v741 = vld [vmem:[#allocation5 + $0x1468] sm:$0xff]
    %v742 = vld [vmem:[#allocation5 + $0x1470] sm:$0xff]
    %v743 = vld [vmem:[#allocation5 + $0x1478] sm:$0xff]
    %v744 = vld [vmem:[#allocation5 + $0x1480] sm:$0xff]
    %v745 = vld [vmem:[#allocation5 + $0x1488] sm:$0xff]
    %v746 = vld [vmem:[#allocation5 + $0x1490] sm:$0xff]
    %v747 = vld [vmem:[#allocation5 + $0x1498] sm:$0xff]
    %v748 = vld [vmem:[#allocation5 + $0x14a0] sm:$0xff]
    %v749 = vld [vmem:[#allocation5 + $0x14a8] sm:$0xff]
    %v750 = vld [vmem:[#allocation5 + $0x14b0] sm:$0xff]
    %v751 = vld [vmem:[#allocation5 + $0x14b8] sm:$0xff]
    %v752 = vld [vmem:[#allocation5 + $0x14c0] sm:$0xff]
    %v753 = vld [vmem:[#allocation5 + $0x14c8] sm:$0xff]
    %v754 = vld [vmem:[#allocation5 + $0x14d0] sm:$0xff]
    %v755 = vld [vmem:[#allocation5 + $0x14d8] sm:$0xff]
    %v756 = vld [vmem:[#allocation5 + $0x14e0] sm:$0xff]
    %v757 = vld [vmem:[#allocation5 + $0x14e8] sm:$0xff]
    %v758 = vld [vmem:[#allocation5 + $0x14f0] sm:$0xff]
    %v759 = vld [vmem:[#allocation5 + $0x14f8] sm:$0xff]
    %v760 = vld [vmem:[#allocation5 + $0x1500] sm:$0xff]
    %v761 = vld [vmem:[#allocation5 + $0x1508] sm:$0xff]
    %v762 = vld [vmem:[#allocation5 + $0x1510] sm:$0xff]
    %v763 = vld [vmem:[#allocation5 + $0x1518] sm:$0xff]
    %v764 = vld [vmem:[#allocation5 + $0x1520] sm:$0xff]
    %v765 = vld [vmem:[#allocation5 + $0x1528] sm:$0xff]
    %v766 = vld [vmem:[#allocation5 + $0x1530] sm:$0xff]
    %v767 = vld [vmem:[#allocation5 + $0x1538] sm:$0xff]
    %v768 = vld [vmem:[#allocation5 + $0x1540] sm:$0xff]
    %v769 = vld [vmem:[#allocation5 + $0x1548] sm:$0xff]
    %v770 = vld [vmem:[#allocation5 + $0x1550] sm:$0xff]
    %v771 = vld [vmem:[#allocation5 + $0x1558] sm:$0xff]
    %v772 = vld [vmem:[#allocation5 + $0x1560] sm:$0xff]
    %v773 = vld [vmem:[#allocation5 + $0x1568] sm:$0xff]
    %v774 = vld [vmem:[#allocation5 + $0x1570] sm:$0xff]
    %v775 = vld [vmem:[#allocation5 + $0x1578] sm:$0xff]
    %v776 = vld [vmem:[#allocation5 + $0x1580] sm:$0xff]
    %v777 = vld [vmem:[#allocation5 + $0x1588] sm:$0xff]
    %v778 = vld [vmem:[#allocation5 + $0x1590] sm:$0xff]
    %v779 = vld [vmem:[#allocation5 + $0x1598] sm:$0xff]
    %v780 = vld [vmem:[#allocation5 + $0x15a0] sm:$0xff]
    %v781 = vld [vmem:[#allocation5 + $0x15a8] sm:$0xff]
    %v782 = vld [vmem:[#allocation5 + $0x15b0] sm:$0xff]
    %v783 = vld [vmem:[#allocation5 + $0x15b8] sm:$0xff]
    %v784 = vld [vmem:[#allocation5 + $0x15c0] sm:$0xff]
    %v785 = vld [vmem:[#allocation5 + $0x15c8] sm:$0xff]
    %v786 = vld [vmem:[#allocation5 + $0x15d0] sm:$0xff]
    %v787 = vld [vmem:[#allocation5 + $0x15d8] sm:$0xff]
    %v788 = vld [vmem:[#allocation5 + $0x15e0] sm:$0xff]
    %v789 = vld [vmem:[#allocation5 + $0x15e8] sm:$0xff]
    %v790 = vld [vmem:[#allocation5 + $0x15f0] sm:$0xff]
    %v791 = vld [vmem:[#allocation5 + $0x15f8] sm:$0xff]
    %v792 = vld [vmem:[#allocation5 + $0x1600] sm:$0xff]
    %v793 = vld [vmem:[#allocation5 + $0x1608] sm:$0xff]
    %v794 = vld [vmem:[#allocation5 + $0x1610] sm:$0xff]
    %v795 = vld [vmem:[#allocation5 + $0x1618] sm:$0xff]
    %v796 = vld [vmem:[#allocation5 + $0x1620] sm:$0xff]
    %v797 = vld [vmem:[#allocation5 + $0x1628] sm:$0xff]
    %v798 = vld [vmem:[#allocation5 + $0x1630] sm:$0xff]
    %v799 = vld [vmem:[#allocation5 + $0x1638] sm:$0xff]
    %v800 = vld [vmem:[#allocation5 + $0x1640] sm:$0xff]
    %v801 = vld [vmem:[#allocation5 + $0x1648] sm:$0xff]
    %v802 = vld [vmem:[#allocation5 + $0x1650] sm:$0xff]
    %v803 = vld [vmem:[#allocation5 + $0x1658] sm:$0xff]
    %v804 = vld [vmem:[#allocation5 + $0x1660] sm:$0xff]
    %v805 = vld [vmem:[#allocation5 + $0x1668] sm:$0xff]
    %v806 = vld [vmem:[#allocation5 + $0x1670] sm:$0xff]
    %v807 = vld [vmem:[#allocation5 + $0x1678] sm:$0xff]
    %v808 = vld [vmem:[#allocation5 + $0x1680] sm:$0xff]
    %v809 = vld [vmem:[#allocation5 + $0x1688] sm:$0xff]
    %v810 = vld [vmem:[#allocation5 + $0x1690] sm:$0xff]
    %v811 = vld [vmem:[#allocation5 + $0x1698] sm:$0xff]
    %v812 = vld [vmem:[#allocation5 + $0x16a0] sm:$0xff]
    %v813 = vld [vmem:[#allocation5 + $0x16a8] sm:$0xff]
    %v814 = vld [vmem:[#allocation5 + $0x16b0] sm:$0xff]
    %v815 = vld [vmem:[#allocation5 + $0x16b8] sm:$0xff]
    %v816 = vld [vmem:[#allocation5 + $0x16c0] sm:$0xff]
    %v817 = vld [vmem:[#allocation5 + $0x16c8] sm:$0xff]
    %v818 = vld [vmem:[#allocation5 + $0x16d0] sm:$0xff]
    %v819 = vld [vmem:[#allocation5 + $0x16d8] sm:$0xff]
    %v820 = vld [vmem:[#allocation5 + $0x16e0] sm:$0xff]
    %v821 = vld [vmem:[#allocation5 + $0x16e8] sm:$0xff]
    %v822 = vld [vmem:[#allocation5 + $0x16f0] sm:$0xff]
    %v823 = vld [vmem:[#allocation5 + $0x16f8] sm:$0xff]
    %v824 = vld [vmem:[#allocation5 + $0x1700] sm:$0xff]
    %v825 = vld [vmem:[#allocation5 + $0x1708] sm:$0xff]
    %v826 = vld [vmem:[#allocation5 + $0x1710] sm:$0xff]
    %v827 = vld [vmem:[#allocation5 + $0x1718] sm:$0xff]
    %v828 = vld [vmem:[#allocation5 + $0x1720] sm:$0xff]
    %v829 = vld [vmem:[#allocation5 + $0x1728] sm:$0xff]
    %v830 = vld [vmem:[#allocation5 + $0x1730] sm:$0xff]
    %v831 = vld [vmem:[#allocation5 + $0x1738] sm:$0xff]
    %v832 = vld [vmem:[#allocation5 + $0x1740] sm:$0xff]
    %v833 = vld [vmem:[#allocation5 + $0x1748] sm:$0xff]
    %v834 = vld [vmem:[#allocation5 + $0x1750] sm:$0xff]
    %v835 = vld [vmem:[#allocation5 + $0x1758] sm:$0xff]
    %v836 = vld [vmem:[#allocation5 + $0x1760] sm:$0xff]
    %v837 = vld [vmem:[#allocation5 + $0x1768] sm:$0xff]
    %v838 = vld [vmem:[#allocation5 + $0x1770] sm:$0xff]
    %v839 = vld [vmem:[#allocation5 + $0x1778] sm:$0xff]
    %v840 = vld [vmem:[#allocation5 + $0x1780] sm:$0xff]
    %v841 = vld [vmem:[#allocation5 + $0x1788] sm:$0xff]
    %v842 = vld [vmem:[#allocation5 + $0x1790] sm:$0xff]
    %v843 = vld [vmem:[#allocation5 + $0x1798] sm:$0xff]
    %v844 = vld [vmem:[#allocation5 + $0x17a0] sm:$0xff]
    %v845 = vld [vmem:[#allocation5 + $0x17a8] sm:$0xff]
    %v846 = vld [vmem:[#allocation5 + $0x17b0] sm:$0xff]
    %v847 = vld [vmem:[#allocation5 + $0x17b8] sm:$0xff]
    %v848 = vld [vmem:[#allocation5 + $0x17c0] sm:$0xff]
    %v849 = vld [vmem:[#allocation5 + $0x17c8] sm:$0xff]
    %v850 = vld [vmem:[#allocation5 + $0x17d0] sm:$0xff]
    %v851 = vld [vmem:[#allocation5 + $0x17d8] sm:$0xff]
    %v852 = vld [vmem:[#allocation5 + $0x17e0] sm:$0xff]
    %v853 = vld [vmem:[#allocation5 + $0x17e8] sm:$0xff]
    %v854 = vld [vmem:[#allocation5 + $0x17f0] sm:$0xff]
    %v855 = vld [vmem:[#allocation5 + $0x17f8] sm:$0xff]
    %v856 = vld [vmem:[#allocation5 + $0x1800] sm:$0xff]
    %v857 = vld [vmem:[#allocation5 + $0x1808] sm:$0xff]
    %v858 = vld [vmem:[#allocation5 + $0x1810] sm:$0xff]
    %v859 = vld [vmem:[#allocation5 + $0x1818] sm:$0xff]
    %v860 = vld [vmem:[#allocation5 + $0x1820] sm:$0xff]
    %v861 = vld [vmem:[#allocation5 + $0x1828] sm:$0xff]
    %v862 = vld [vmem:[#allocation5 + $0x1830] sm:$0xff]
    %v863 = vld [vmem:[#allocation5 + $0x1838] sm:$0xff]
    %v864 = vld [vmem:[#allocation5 + $0x1840] sm:$0xff]
    %v865 = vld [vmem:[#allocation5 + $0x1848] sm:$0xff]
    %v866 = vld [vmem:[#allocation5 + $0x1850] sm:$0xff]
    %v867 = vld [vmem:[#allocation5 + $0x1858] sm:$0xff]
    %v868 = vld [vmem:[#allocation5 + $0x1860] sm:$0xff]
    %v869 = vld [vmem:[#allocation5 + $0x1868] sm:$0xff]
    %v870 = vld [vmem:[#allocation5 + $0x1870] sm:$0xff]
    %v871 = vld [vmem:[#allocation5 + $0x1878] sm:$0xff]
    %v872 = vld [vmem:[#allocation5 + $0x1880] sm:$0xff]
    %v873 = vld [vmem:[#allocation5 + $0x1888] sm:$0xff]
    %v874 = vld [vmem:[#allocation5 + $0x1890] sm:$0xff]
    %v875 = vld [vmem:[#allocation5 + $0x1898] sm:$0xff]
    %v876 = vld [vmem:[#allocation5 + $0x18a0] sm:$0xff]
    %v877 = vld [vmem:[#allocation5 + $0x18a8] sm:$0xff]
    %v878 = vld [vmem:[#allocation5 + $0x18b0] sm:$0xff]
    %v879 = vld [vmem:[#allocation5 + $0x18b8] sm:$0xff]
    %v880 = vld [vmem:[#allocation5 + $0x18c0] sm:$0xff]
    %v881 = vld [vmem:[#allocation5 + $0x18c8] sm:$0xff]
    %v882 = vld [vmem:[#allocation5 + $0x18d0] sm:$0xff]
    %v883 = vld [vmem:[#allocation5 + $0x18d8] sm:$0xff]
    %v884 = vld [vmem:[#allocation5 + $0x18e0] sm:$0xff]
    %v885 = vld [vmem:[#allocation5 + $0x18e8] sm:$0xff]
    %v886 = vld [vmem:[#allocation5 + $0x18f0] sm:$0xff]
    %v887 = vld [vmem:[#allocation5 + $0x18f8] sm:$0xff]
    %v888 = vld [vmem:[#allocation5 + $0x1900] sm:$0xff]
    %v889 = vld [vmem:[#allocation5 + $0x1908] sm:$0xff]
    %v890 = vld [vmem:[#allocation5 + $0x1910] sm:$0xff]
    %v891 = vld [vmem:[#allocation5 + $0x1918] sm:$0xff]
    %v892 = vld [vmem:[#allocation5 + $0x1920] sm:$0xff]
    %v893 = vld [vmem:[#allocation5 + $0x1928] sm:$0xff]
    %v894 = vld [vmem:[#allocation5 + $0x1930] sm:$0xff]
    %v895 = vld [vmem:[#allocation5 + $0x1938] sm:$0xff]
    %v896 = vld [vmem:[#allocation5 + $0x1940] sm:$0xff]
    %v897 = vld [vmem:[#allocation5 + $0x1948] sm:$0xff]
    %v898 = vld [vmem:[#allocation5 + $0x1950] sm:$0xff]
    %v899 = vld [vmem:[#allocation5 + $0x1958] sm:$0xff]
    %v900 = vld [vmem:[#allocation5 + $0x1960] sm:$0xff]
    %v901 = vld [vmem:[#allocation5 + $0x1968] sm:$0xff]
    %v902 = vld [vmem:[#allocation5 + $0x1970] sm:$0xff]
    %v903 = vld [vmem:[#allocation5 + $0x1978] sm:$0xff]
    %v904 = vld [vmem:[#allocation5 + $0x1980] sm:$0xff]
    %v905 = vld [vmem:[#allocation5 + $0x1988] sm:$0xff]
    %v906 = vld [vmem:[#allocation5 + $0x1990] sm:$0xff]
    %v907 = vld [vmem:[#allocation5 + $0x1998] sm:$0xff]
    %v908 = vld [vmem:[#allocation5 + $0x19a0] sm:$0xff]
    %v909 = vld [vmem:[#allocation5 + $0x19a8] sm:$0xff]
    %v910 = vld [vmem:[#allocation5 + $0x19b0] sm:$0xff]
    %v911 = vld [vmem:[#allocation5 + $0x19b8] sm:$0xff]
    %v912 = vld [vmem:[#allocation5 + $0x19c0] sm:$0xff]
    %v913 = vld [vmem:[#allocation5 + $0x19c8] sm:$0xff]
    %v914 = vld [vmem:[#allocation5 + $0x19d0] sm:$0xff]
    %v915 = vld [vmem:[#allocation5 + $0x19d8] sm:$0xff]
    %v916 = vld [vmem:[#allocation5 + $0x19e0] sm:$0xff]
    %v917 = vld [vmem:[#allocation5 + $0x19e8] sm:$0xff]
    %v918 = vld [vmem:[#allocation5 + $0x19f0] sm:$0xff]
    %v919 = vld [vmem:[#allocation5 + $0x19f8] sm:$0xff]
    %v920 = vld [vmem:[#allocation5 + $0x1a00] sm:$0xff]
    %v921 = vld [vmem:[#allocation5 + $0x1a08] sm:$0xff]
    %v922 = vld [vmem:[#allocation5 + $0x1a10] sm:$0xff]
    %v923 = vld [vmem:[#allocation5 + $0x1a18] sm:$0xff]
    %v924 = vld [vmem:[#allocation5 + $0x1a20] sm:$0xff]
    %v925 = vld [vmem:[#allocation5 + $0x1a28] sm:$0xff]
    %v926 = vld [vmem:[#allocation5 + $0x1a30] sm:$0xff]
    %v927 = vld [vmem:[#allocation5 + $0x1a38] sm:$0xff]
    %v928 = vld [vmem:[#allocation5 + $0x1a40] sm:$0xff]
    %v929 = vld [vmem:[#allocation5 + $0x1a48] sm:$0xff]
    %v930 = vld [vmem:[#allocation5 + $0x1a50] sm:$0xff]
    %v931 = vld [vmem:[#allocation5 + $0x1a58] sm:$0xff]
    %v932 = vld [vmem:[#allocation5 + $0x1a60] sm:$0xff]
    %v933 = vld [vmem:[#allocation5 + $0x1a68] sm:$0xff]
    %v934 = vld [vmem:[#allocation5 + $0x1a70] sm:$0xff]
    %v935 = vld [vmem:[#allocation5 + $0x1a78] sm:$0xff]
    %v936 = vld [vmem:[#allocation5 + $0x1a80] sm:$0xff]
    %v937 = vld [vmem:[#allocation5 + $0x1a88] sm:$0xff]
    %v938 = vld [vmem:[#allocation5 + $0x1a90] sm:$0xff]
    %v939 = vld [vmem:[#allocation5 + $0x1a98] sm:$0xff]
    %v940 = vld [vmem:[#allocation5 + $0x1aa0] sm:$0xff]
    %v941 = vld [vmem:[#allocation5 + $0x1aa8] sm:$0xff]
    %v942 = vld [vmem:[#allocation5 + $0x1ab0] sm:$0xff]
    %v943 = vld [vmem:[#allocation5 + $0x1ab8] sm:$0xff]
    %v944 = vld [vmem:[#allocation5 + $0x1ac0] sm:$0xff]
    %v945 = vld [vmem:[#allocation5 + $0x1ac8] sm:$0xff]
    %v946 = vld [vmem:[#allocation5 + $0x1ad0] sm:$0xff]
    %v947 = vld [vmem:[#allocation5 + $0x1ad8] sm:$0xff]
    %v948 = vld [vmem:[#allocation5 + $0x1ae0] sm:$0xff]
    %v949 = vld [vmem:[#allocation5 + $0x1ae8] sm:$0xff]
    %v950 = vld [vmem:[#allocation5 + $0x1af0] sm:$0xff]
    %v951 = vld [vmem:[#allocation5 + $0x1af8] sm:$0xff]
    %v952 = vld [vmem:[#allocation5 + $0x1b00] sm:$0xff]
    %v953 = vld [vmem:[#allocation5 + $0x1b08] sm:$0xff]
    %v954 = vld [vmem:[#allocation5 + $0x1b10] sm:$0xff]
    %v955 = vld [vmem:[#allocation5 + $0x1b18] sm:$0xff]
    %v956 = vld [vmem:[#allocation5 + $0x1b20] sm:$0xff]
    %v957 = vld [vmem:[#allocation5 + $0x1b28] sm:$0xff]
    %v958 = vld [vmem:[#allocation5 + $0x1b30] sm:$0xff]
    %v959 = vld [vmem:[#allocation5 + $0x1b38] sm:$0xff]
    %v960 = vld [vmem:[#allocation5 + $0x1b40] sm:$0xff]
    %v961 = vld [vmem:[#allocation5 + $0x1b48] sm:$0xff]
    %v962 = vld [vmem:[#allocation5 + $0x1b50] sm:$0xff]
    %v963 = vld [vmem:[#allocation5 + $0x1b58] sm:$0xff]
    %v964 = vld [vmem:[#allocation5 + $0x1b60] sm:$0xff]
    %v965 = vld [vmem:[#allocation5 + $0x1b68] sm:$0xff]
    %v966 = vld [vmem:[#allocation5 + $0x1b70] sm:$0xff]
    %v967 = vld [vmem:[#allocation5 + $0x1b78] sm:$0xff]
    %v968 = vld [vmem:[#allocation5 + $0x1b80] sm:$0xff]
    %v969 = vld [vmem:[#allocation5 + $0x1b88] sm:$0xff]
    %v970 = vld [vmem:[#allocation5 + $0x1b90] sm:$0xff]
    %v971 = vld [vmem:[#allocation5 + $0x1b98] sm:$0xff]
    %v972 = vld [vmem:[#allocation5 + $0x1ba0] sm:$0xff]
    %v973 = vld [vmem:[#allocation5 + $0x1ba8] sm:$0xff]
    %v974 = vld [vmem:[#allocation5 + $0x1bb0] sm:$0xff]
    %v975 = vld [vmem:[#allocation5 + $0x1bb8] sm:$0xff]
    %v976 = vld [vmem:[#allocation5 + $0x1bc0] sm:$0xff]
    %v977 = vld [vmem:[#allocation5 + $0x1bc8] sm:$0xff]
    %v978 = vld [vmem:[#allocation5 + $0x1bd0] sm:$0xff]
    %v979 = vld [vmem:[#allocation5 + $0x1bd8] sm:$0xff]
    %v980 = vld [vmem:[#allocation5 + $0x1be0] sm:$0xff]
    %v981 = vld [vmem:[#allocation5 + $0x1be8] sm:$0xff]
    %v982 = vld [vmem:[#allocation5 + $0x1bf0] sm:$0xff]
    %v983 = vld [vmem:[#allocation5 + $0x1bf8] sm:$0xff]
    %v984 = vld [vmem:[#allocation5 + $0x1c00] sm:$0xff]
    %v985 = vld [vmem:[#allocation5 + $0x1c08] sm:$0xff]
    %v986 = vld [vmem:[#allocation5 + $0x1c10] sm:$0xff]
    %v987 = vld [vmem:[#allocation5 + $0x1c18] sm:$0xff]
    %v988 = vld [vmem:[#allocation5 + $0x1c20] sm:$0xff]
    %v989 = vld [vmem:[#allocation5 + $0x1c28] sm:$0xff]
    %v990 = vld [vmem:[#allocation5 + $0x1c30] sm:$0xff]
    %v991 = vld [vmem:[#allocation5 + $0x1c38] sm:$0xff]
    %v992 = vld [vmem:[#allocation5 + $0x1c40] sm:$0xff]
    %v993 = vld [vmem:[#allocation5 + $0x1c48] sm:$0xff]
    %v994 = vld [vmem:[#allocation5 + $0x1c50] sm:$0xff]
    %v995 = vld [vmem:[#allocation5 + $0x1c58] sm:$0xff]
    %v996 = vld [vmem:[#allocation5 + $0x1c60] sm:$0xff]
    %v997 = vld [vmem:[#allocation5 + $0x1c68] sm:$0xff]
    %v998 = vld [vmem:[#allocation5 + $0x1c70] sm:$0xff]
    %v999 = vld [vmem:[#allocation5 + $0x1c78] sm:$0xff]
    %v1000 = vld [vmem:[#allocation5 + $0x1c80] sm:$0xff]
    %v1001 = vld [vmem:[#allocation5 + $0x1c88] sm:$0xff]
    %v1002 = vld [vmem:[#allocation5 + $0x1c90] sm:$0xff]
    %v1003 = vld [vmem:[#allocation5 + $0x1c98] sm:$0xff]
    %v1004 = vld [vmem:[#allocation5 + $0x1ca0] sm:$0xff]
    %v1005 = vld [vmem:[#allocation5 + $0x1ca8] sm:$0xff]
    %v1006 = vld [vmem:[#allocation5 + $0x1cb0] sm:$0xff]
    %v1007 = vld [vmem:[#allocation5 + $0x1cb8] sm:$0xff]
    %v1008 = vld [vmem:[#allocation5 + $0x1cc0] sm:$0xff]
    %v1009 = vld [vmem:[#allocation5 + $0x1cc8] sm:$0xff]
    %v1010 = vld [vmem:[#allocation5 + $0x1cd0] sm:$0xff]
    %v1011 = vld [vmem:[#allocation5 + $0x1cd8] sm:$0xff]
    %v1012 = vld [vmem:[#allocation5 + $0x1ce0] sm:$0xff]
    %v1013 = vld [vmem:[#allocation5 + $0x1ce8] sm:$0xff]
    %v1014 = vld [vmem:[#allocation5 + $0x1cf0] sm:$0xff]
    %v1015 = vld [vmem:[#allocation5 + $0x1cf8] sm:$0xff]
    %v1016 = vld [vmem:[#allocation5 + $0x1d00] sm:$0xff]
    %v1017 = vld [vmem:[#allocation5 + $0x1d08] sm:$0xff]
    %v1018 = vld [vmem:[#allocation5 + $0x1d10] sm:$0xff]
    %v1019 = vld [vmem:[#allocation5 + $0x1d18] sm:$0xff]
    %v1020 = vld [vmem:[#allocation5 + $0x1d20] sm:$0xff]
    %v1021 = vld [vmem:[#allocation5 + $0x1d28] sm:$0xff]
    %v1022 = vld [vmem:[#allocation5 + $0x1d30] sm:$0xff]
    %v1023 = vld [vmem:[#allocation5 + $0x1d38] sm:$0xff]
    %v1024 = vld [vmem:[#allocation5 + $0x1d40] sm:$0xff]
    %v1025 = vld [vmem:[#allocation5 + $0x1d48] sm:$0xff]
    %v1026 = vld [vmem:[#allocation5 + $0x1d50] sm:$0xff]
    %v1027 = vld [vmem:[#allocation5 + $0x1d58] sm:$0xff]
    %v1028 = vld [vmem:[#allocation5 + $0x1d60] sm:$0xff]
    %v1029 = vld [vmem:[#allocation5 + $0x1d68] sm:$0xff]
    %v1030 = vld [vmem:[#allocation5 + $0x1d70] sm:$0xff]
    %v1031 = vld [vmem:[#allocation5 + $0x1d78] sm:$0xff]
    %v1032 = vld [vmem:[#allocation5 + $0x1d80] sm:$0xff]
    %v1033 = vld [vmem:[#allocation5 + $0x1d88] sm:$0xff]
    %v1034 = vld [vmem:[#allocation5 + $0x1d90] sm:$0xff]
    %v1035 = vld [vmem:[#allocation5 + $0x1d98] sm:$0xff]
    %v1036 = vld [vmem:[#allocation5 + $0x1da0] sm:$0xff]
    %v1037 = vld [vmem:[#allocation5 + $0x1da8] sm:$0xff]
    %v1038 = vld [vmem:[#allocation5 + $0x1db0] sm:$0xff]
    %v1039 = vld [vmem:[#allocation5 + $0x1db8] sm:$0xff]
    %v1040 = vld [vmem:[#allocation5 + $0x1dc0] sm:$0xff]
    %v1041 = vld [vmem:[#allocation5 + $0x1dc8] sm:$0xff]
    %v1042 = vld [vmem:[#allocation5 + $0x1dd0] sm:$0xff]
    %v1043 = vld [vmem:[#allocation5 + $0x1dd8] sm:$0xff]
    %v1044 = vld [vmem:[#allocation5 + $0x1de0] sm:$0xff]
    %v1045 = vld [vmem:[#allocation5 + $0x1de8] sm:$0xff]
    %v1046 = vld [vmem:[#allocation5 + $0x1df0] sm:$0xff]
    %v1047 = vld [vmem:[#allocation5 + $0x1df8] sm:$0xff]
    %v1048 = vld [vmem:[#allocation5 + $0x1e00] sm:$0xff]
    %v1049 = vld [vmem:[#allocation5 + $0x1e08] sm:$0xff]
    %v1050 = vld [vmem:[#allocation5 + $0x1e10] sm:$0xff]
    %v1051 = vld [vmem:[#allocation5 + $0x1e18] sm:$0xff]
    %v1052 = vld [vmem:[#allocation5 + $0x1e20] sm:$0xff]
    %v1053 = vld [vmem:[#allocation5 + $0x1e28] sm:$0xff]
    %v1054 = vld [vmem:[#allocation5 + $0x1e30] sm:$0xff]
    %v1055 = vld [vmem:[#allocation5 + $0x1e38] sm:$0xff]
    %v1056 = vld [vmem:[#allocation5 + $0x1e40] sm:$0xff]
    %v1057 = vld [vmem:[#allocation5 + $0x1e48] sm:$0xff]
    %v1058 = vld [vmem:[#allocation5 + $0x1e50] sm:$0xff]
    %v1059 = vld [vmem:[#allocation5 + $0x1e58] sm:$0xff]
    %v1060 = vld [vmem:[#allocation5 + $0x1e60] sm:$0xff]
    %v1061 = vld [vmem:[#allocation5 + $0x1e68] sm:$0xff]
    %v1062 = vld [vmem:[#allocation5 + $0x1e70] sm:$0xff]
    %v1063 = vld [vmem:[#allocation5 + $0x1e78] sm:$0xff]
    %v1064 = vld [vmem:[#allocation5 + $0x1e80] sm:$0xff]
    %v1065 = vld [vmem:[#allocation5 + $0x1e88] sm:$0xff]
    %v1066 = vld [vmem:[#allocation5 + $0x1e90] sm:$0xff]
    %v1067 = vld [vmem:[#allocation5 + $0x1e98] sm:$0xff]
    %v1068 = vld [vmem:[#allocation5 + $0x1ea0] sm:$0xff]
    %v1069 = vld [vmem:[#allocation5 + $0x1ea8] sm:$0xff]
    %v1070 = vld [vmem:[#allocation5 + $0x1eb0] sm:$0xff]
    %v1071 = vld [vmem:[#allocation5 + $0x1eb8] sm:$0xff]
    %v1072 = vld [vmem:[#allocation5 + $0x1ec0] sm:$0xff]
    %v1073 = vld [vmem:[#allocation5 + $0x1ec8] sm:$0xff]
    %v1074 = vld [vmem:[#allocation5 + $0x1ed0] sm:$0xff]
    %v1075 = vld [vmem:[#allocation5 + $0x1ed8] sm:$0xff]
    %v1076 = vld [vmem:[#allocation5 + $0x1ee0] sm:$0xff]
    %v1077 = vld [vmem:[#allocation5 + $0x1ee8] sm:$0xff]
    %v1078 = vld [vmem:[#allocation5 + $0x1ef0] sm:$0xff]
    %v1079 = vld [vmem:[#allocation5 + $0x1ef8] sm:$0xff]
    %v1080 = vld [vmem:[#allocation5 + $0x1f00] sm:$0xff]
    %v1081 = vld [vmem:[#allocation5 + $0x1f08] sm:$0xff]
    %v1082 = vld [vmem:[#allocation5 + $0x1f10] sm:$0xff]
    %v1083 = vld [vmem:[#allocation5 + $0x1f18] sm:$0xff]
    %v1084 = vld [vmem:[#allocation5 + $0x1f20] sm:$0xff]
    %v1085 = vld [vmem:[#allocation5 + $0x1f28] sm:$0xff]
    %v1086 = vld [vmem:[#allocation5 + $0x1f30] sm:$0xff]
    %v1087 = vld [vmem:[#allocation5 + $0x1f38] sm:$0xff]
    %v1088 = vld [vmem:[#allocation5 + $0x1f40] sm:$0xff]
    %v1089 = vld [vmem:[#allocation5 + $0x1f48] sm:$0xff]
    %v1090 = vld [vmem:[#allocation5 + $0x1f50] sm:$0xff]
    %v1091 = vld [vmem:[#allocation5 + $0x1f58] sm:$0xff]
    %v1092 = vld [vmem:[#allocation5 + $0x1f60] sm:$0xff]
    %v1093 = vld [vmem:[#allocation5 + $0x1f68] sm:$0xff]
    %v1094 = vld [vmem:[#allocation5 + $0x1f70] sm:$0xff]
    %v1095 = vld [vmem:[#allocation5 + $0x1f78] sm:$0xff]
    %v1096 = vld [vmem:[#allocation5 + $0x1f80] sm:$0xff]
    %v1097 = vld [vmem:[#allocation5 + $0x1f88] sm:$0xff]
    %v1098 = vld [vmem:[#allocation5 + $0x1f90] sm:$0xff]
    %v1099 = vld [vmem:[#allocation5 + $0x1f98] sm:$0xff]
    %v1100 = vld [vmem:[#allocation5 + $0x1fa0] sm:$0xff]
    %v1101 = vld [vmem:[#allocation5 + $0x1fa8] sm:$0xff]
    %v1102 = vld [vmem:[#allocation5 + $0x1fb0] sm:$0xff]
    %v1103 = vld [vmem:[#allocation5 + $0x1fb8] sm:$0xff]
    %v1104 = vld [vmem:[#allocation5 + $0x1fc0] sm:$0xff]
    %v1105 = vld [vmem:[#allocation5 + $0x1fc8] sm:$0xff]
    %v1106 = vld [vmem:[#allocation5 + $0x1fd0] sm:$0xff]
    %v1107 = vld [vmem:[#allocation5 + $0x1fd8] sm:$0xff]
    %v1108 = vld [vmem:[#allocation5 + $0x1fe0] sm:$0xff]
    %v1109 = vld [vmem:[#allocation5 + $0x1fe8] sm:$0xff]
    %v1110 = vld [vmem:[#allocation5 + $0x1ff0] sm:$0xff]
    %v1111 = vld [vmem:[#allocation5 + $0x1ff8] sm:$0xff]
    %v1112 = vld [vmem:[#allocation5 + $0x2000] sm:$0xff]
    %v1113 = vld [vmem:[#allocation5 + $0x2008] sm:$0xff]
    %v1114 = vld [vmem:[#allocation5 + $0x2010] sm:$0xff]
    %v1115 = vld [vmem:[#allocation5 + $0x2018] sm:$0xff]
    %v1116 = vld [vmem:[#allocation5 + $0x2020] sm:$0xff]
    %v1117 = vld [vmem:[#allocation5 + $0x2028] sm:$0xff]
    %v1118 = vld [vmem:[#allocation5 + $0x2030] sm:$0xff]
    %v1119 = vld [vmem:[#allocation5 + $0x2038] sm:$0xff]
    %v1120 = vld [vmem:[#allocation5 + $0x2040] sm:$0xff]
    %v1121 = vld [vmem:[#allocation5 + $0x2048] sm:$0xff]
    %v1122 = vld [vmem:[#allocation5 + $0x2050] sm:$0xff]
    %v1123 = vld [vmem:[#allocation5 + $0x2058] sm:$0xff]
    %v1124 = vld [vmem:[#allocation5 + $0x2060] sm:$0xff]
    %v1125 = vld [vmem:[#allocation5 + $0x2068] sm:$0xff]
    %v1126 = vld [vmem:[#allocation5 + $0x2070] sm:$0xff]
    %v1127 = vld [vmem:[#allocation5 + $0x2078] sm:$0xff]
    %v1128 = vld [vmem:[#allocation5 + $0x2080] sm:$0xff]
    %v1129 = vld [vmem:[#allocation5 + $0x2088] sm:$0xff]
    %v1130 = vld [vmem:[#allocation5 + $0x2090] sm:$0xff]
    %v1131 = vld [vmem:[#allocation5 + $0x2098] sm:$0xff]
    %v1132 = vld [vmem:[#allocation5 + $0x20a0] sm:$0xff]
    %v1133 = vld [vmem:[#allocation5 + $0x20a8] sm:$0xff]
    %v1134 = vld [vmem:[#allocation5 + $0x20b0] sm:$0xff]
    %v1135 = vld [vmem:[#allocation5 + $0x20b8] sm:$0xff]
    %v1136 = vld [vmem:[#allocation5 + $0x20c0] sm:$0xff]
    %v1137 = vld [vmem:[#allocation5 + $0x20c8] sm:$0xff]
    %v1138 = vld [vmem:[#allocation5 + $0x20d0] sm:$0xff]
    %v1139 = vld [vmem:[#allocation5 + $0x20d8] sm:$0xff]
    %v1140 = vld [vmem:[#allocation5 + $0x20e0] sm:$0xff]
    %v1141 = vld [vmem:[#allocation5 + $0x20e8] sm:$0xff]
    %v1142 = vld [vmem:[#allocation5 + $0x20f0] sm:$0xff]
    %v1143 = vld [vmem:[#allocation5 + $0x20f8] sm:$0xff]
    %v1144 = vld [vmem:[#allocation5 + $0x2100] sm:$0xff]
    %v1145 = vld [vmem:[#allocation5 + $0x2108] sm:$0xff]
    %v1146 = vld [vmem:[#allocation5 + $0x2110] sm:$0xff]
    %v1147 = vld [vmem:[#allocation5 + $0x2118] sm:$0xff]
    %v1148 = vld [vmem:[#allocation5 + $0x2120] sm:$0xff]
    %v1149 = vld [vmem:[#allocation5 + $0x2128] sm:$0xff]
    %v1150 = vld [vmem:[#allocation5 + $0x2130] sm:$0xff]
    %v1151 = vld [vmem:[#allocation5 + $0x2138] sm:$0xff]
    %v1152 = vld [vmem:[#allocation5 + $0x2140] sm:$0xff]
    %v1153 = vld [vmem:[#allocation5 + $0x2148] sm:$0xff]
    %v1154 = vld [vmem:[#allocation5 + $0x2150] sm:$0xff]
    %v1155 = vld [vmem:[#allocation5 + $0x2158] sm:$0xff]
    %v1156 = vld [vmem:[#allocation5 + $0x2160] sm:$0xff]
    %v1157 = vld [vmem:[#allocation5 + $0x2168] sm:$0xff]
    %v1158 = vld [vmem:[#allocation5 + $0x2170] sm:$0xff]
    %v1159 = vld [vmem:[#allocation5 + $0x2178] sm:$0xff]
    %v1160 = vld [vmem:[#allocation5 + $0x2180] sm:$0xff]
    %v1161 = vld [vmem:[#allocation5 + $0x2188] sm:$0xff]
    %v1162 = vld [vmem:[#allocation5 + $0x2190] sm:$0xff]
    %v1163 = vld [vmem:[#allocation5 + $0x2198] sm:$0xff]
    %v1164 = vld [vmem:[#allocation5 + $0x21a0] sm:$0xff]
    %v1165 = vld [vmem:[#allocation5 + $0x21a8] sm:$0xff]
    %v1166 = vld [vmem:[#allocation5 + $0x21b0] sm:$0xff]
    %v1167 = vld [vmem:[#allocation5 + $0x21b8] sm:$0xff]
    %v1168 = vld [vmem:[#allocation5 + $0x21c0] sm:$0xff]
    %v1169 = vld [vmem:[#allocation5 + $0x21c8] sm:$0xff]
    %v1170 = vld [vmem:[#allocation5 + $0x21d0] sm:$0xff]
    %v1171 = vld [vmem:[#allocation5 + $0x21d8] sm:$0xff]
    %v1172 = vld [vmem:[#allocation5 + $0x21e0] sm:$0xff]
    %v1173 = vld [vmem:[#allocation5 + $0x21e8] sm:$0xff]
    %v1174 = vld [vmem:[#allocation5 + $0x21f0] sm:$0xff]
    %v1175 = vld [vmem:[#allocation5 + $0x21f8] sm:$0xff]
    %v1176 = vld [vmem:[#allocation5 + $0x2200] sm:$0xff]
    %v1177 = vld [vmem:[#allocation5 + $0x2208] sm:$0xff]
    %v1178 = vld [vmem:[#allocation5 + $0x2210] sm:$0xff]
    %v1179 = vld [vmem:[#allocation5 + $0x2218] sm:$0xff]
    %v1180 = vld [vmem:[#allocation5 + $0x2220] sm:$0xff]
    %v1181 = vld [vmem:[#allocation5 + $0x2228] sm:$0xff]
    %v1182 = vld [vmem:[#allocation5 + $0x2230] sm:$0xff]
    %v1183 = vld [vmem:[#allocation5 + $0x2238] sm:$0xff]
    %v1184 = vld [vmem:[#allocation5 + $0x2240] sm:$0xff]
    %v1185 = vld [vmem:[#allocation5 + $0x2248] sm:$0xff]
    %v1186 = vld [vmem:[#allocation5 + $0x2250] sm:$0xff]
    %v1187 = vld [vmem:[#allocation5 + $0x2258] sm:$0xff]
    %v1188 = vld [vmem:[#allocation5 + $0x2260] sm:$0xff]
    %v1189 = vld [vmem:[#allocation5 + $0x2268] sm:$0xff]
    %v1190 = vld [vmem:[#allocation5 + $0x2270] sm:$0xff]
    %v1191 = vld [vmem:[#allocation5 + $0x2278] sm:$0xff]
    %v1192 = vld [vmem:[#allocation5 + $0x2280] sm:$0xff]
    %v1193 = vld [vmem:[#allocation5 + $0x2288] sm:$0xff]
    %v1194 = vld [vmem:[#allocation5 + $0x2290] sm:$0xff]
    %v1195 = vld [vmem:[#allocation5 + $0x2298] sm:$0xff]
    %v1196 = vld [vmem:[#allocation5 + $0x22a0] sm:$0xff]
    %v1197 = vld [vmem:[#allocation5 + $0x22a8] sm:$0xff]
    %v1198 = vld [vmem:[#allocation5 + $0x22b0] sm:$0xff]
    %v1199 = vld [vmem:[#allocation5 + $0x22b8] sm:$0xff]
    %v1200 = vld [vmem:[#allocation5 + $0x22c0] sm:$0xff]
    %v1201 = vld [vmem:[#allocation5 + $0x22c8] sm:$0xff]
    %v1202 = vld [vmem:[#allocation5 + $0x22d0] sm:$0xff]
    %v1203 = vld [vmem:[#allocation5 + $0x22d8] sm:$0xff]
    %v1204 = vld [vmem:[#allocation5 + $0x22e0] sm:$0xff]
    %v1205 = vld [vmem:[#allocation5 + $0x22e8] sm:$0xff]
    %v1206 = vld [vmem:[#allocation5 + $0x22f0] sm:$0xff]
    %v1207 = vld [vmem:[#allocation5 + $0x22f8] sm:$0xff]
    %v1208 = vld [vmem:[#allocation5 + $0x2300] sm:$0xff]
    %v1209 = vld [vmem:[#allocation5 + $0x2308] sm:$0xff]
    %v1210 = vld [vmem:[#allocation5 + $0x2310] sm:$0xff]
    %v1211 = vld [vmem:[#allocation5 + $0x2318] sm:$0xff]
    %v1212 = vld [vmem:[#allocation5 + $0x2320] sm:$0xff]
    %v1213 = vld [vmem:[#allocation5 + $0x2328] sm:$0xff]
    %v1214 = vld [vmem:[#allocation5 + $0x2330] sm:$0xff]
    %v1215 = vld [vmem:[#allocation5 + $0x2338] sm:$0xff]
    %v1216 = vld [vmem:[#allocation5 + $0x2340] sm:$0xff]
    %v1217 = vld [vmem:[#allocation5 + $0x2348] sm:$0xff]
    %v1218 = vld [vmem:[#allocation5 + $0x2350] sm:$0xff]
    %v1219 = vld [vmem:[#allocation5 + $0x2358] sm:$0xff]
    %v1220 = vld [vmem:[#allocation5 + $0x2360] sm:$0xff]
    %v1221 = vld [vmem:[#allocation5 + $0x2368] sm:$0xff]
    %v1222 = vld [vmem:[#allocation5 + $0x2370] sm:$0xff]
    %v1223 = vld [vmem:[#allocation5 + $0x2378] sm:$0xff]
    %v1224 = vld [vmem:[#allocation5 + $0x2380] sm:$0xff]
    %v1225 = vld [vmem:[#allocation5 + $0x2388] sm:$0xff]
    %v1226 = vld [vmem:[#allocation5 + $0x2390] sm:$0xff]
    %v1227 = vld [vmem:[#allocation5 + $0x2398] sm:$0xff]
    %v1228 = vld [vmem:[#allocation5 + $0x23a0] sm:$0xff]
    %v1229 = vld [vmem:[#allocation5 + $0x23a8] sm:$0xff]
    %v1230 = vld [vmem:[#allocation5 + $0x23b0] sm:$0xff]
    %v1231 = vld [vmem:[#allocation5 + $0x23b8] sm:$0xff]
    %v1232 = vld [vmem:[#allocation5 + $0x23c0] sm:$0xff]
    %v1233 = vld [vmem:[#allocation5 + $0x23c8] sm:$0xff]
    %v1234 = vld [vmem:[#allocation5 + $0x23d0] sm:$0xff]
    %v1235 = vld [vmem:[#allocation5 + $0x23d8] sm:$0xff]
    %v1236 = vld [vmem:[#allocation5 + $0x23e0] sm:$0xff]
    %v1237 = vld [vmem:[#allocation5 + $0x23e8] sm:$0xff]
    %v1238 = vld [vmem:[#allocation5 + $0x23f0] sm:$0xff]
    %v1239 = vld [vmem:[#allocation5 + $0x23f8] sm:$0xff]
    %v1240 = vld [vmem:[#allocation5 + $0x2400] sm:$0xff]
    %v1241 = vld [vmem:[#allocation5 + $0x2408] sm:$0xff]
    %v1242 = vld [vmem:[#allocation5 + $0x2410] sm:$0xff]
    %v1243 = vld [vmem:[#allocation5 + $0x2418] sm:$0xff]
    %v1244 = vld [vmem:[#allocation5 + $0x2420] sm:$0xff]
    %v1245 = vld [vmem:[#allocation5 + $0x2428] sm:$0xff]
    %v1246 = vld [vmem:[#allocation5 + $0x2430] sm:$0xff]
    %v1247 = vld [vmem:[#allocation5 + $0x2438] sm:$0xff]
    %v1248 = vld [vmem:[#allocation5 + $0x2440] sm:$0xff]
    %v1249 = vld [vmem:[#allocation5 + $0x2448] sm:$0xff]
    %v1250 = vld [vmem:[#allocation5 + $0x2450] sm:$0xff]
    %v1251 = vld [vmem:[#allocation5 + $0x2458] sm:$0xff]
    %v1252 = vld [vmem:[#allocation5 + $0x2460] sm:$0xff]
    %v1253 = vld [vmem:[#allocation5 + $0x2468] sm:$0xff]
    %v1254 = vld [vmem:[#allocation5 + $0x2470] sm:$0xff]
    %v1255 = vld [vmem:[#allocation5 + $0x2478] sm:$0xff]
    %v1256 = vld [vmem:[#allocation5 + $0x2480] sm:$0xff]
    %v1257 = vld [vmem:[#allocation5 + $0x2488] sm:$0xff]
    %v1258 = vld [vmem:[#allocation5 + $0x2490] sm:$0xff]
    %v1259 = vld [vmem:[#allocation5 + $0x2498] sm:$0xff]
    %v1260 = vld [vmem:[#allocation5 + $0x24a0] sm:$0xff]
    %v1261 = vld [vmem:[#allocation5 + $0x24a8] sm:$0xff]
    %v1262 = vld [vmem:[#allocation5 + $0x24b0] sm:$0xff]
    %v1263 = vld [vmem:[#allocation5 + $0x24b8] sm:$0xff]
    %v1264 = vld [vmem:[#allocation7] sm:$0xf]
    %v1266 = vlaneseq
    %v1267 = vshrl.u32 %v1266, 7
    %v1268 = vsub.s32 0, %v1267
    %v1269 = vrot.slane %v1264, %v1268
    %v1270 = vlaneseq
    %v1271 = vshrl.u32 %v1270, 7
    %v1272 = vsub.s32 1, %v1271
    %v1273 = vrot.slane %v1264, %v1272
    %v1274 = vlaneseq
    %v1275 = vshrl.u32 %v1274, 7
    %v1276 = vsub.s32 2, %v1275
    %v1277 = vrot.slane %v1264, %v1276
    %v1278 = vlaneseq
    %v1279 = vshrl.u32 %v1278, 7
    %v1280 = vsub.s32 3, %v1279
    %v1281 = vrot.slane %v1264, %v1280
    %v1291 = vcombine.high %v83, %v83
    %v1293 = vunpack.c.l.s4 1983009808
    %v1294 = vunpack.c.0.s8 %v1293
    %v1295 = vlaneseq
    %v1296 = vshrl.u32 %v1295, 7
    %v1297 = vsub.s32 %v1294, %v1296
    %v1298 = vrot.slane %v83, %v1297
    %v1300 = vunpack.c.l.s4 1983009808
    %v1301 = vunpack.c.0.s8 %v1300
    %v1302 = vlaneseq
    %v1303 = vshrl.u32 %v1302, 7
    %v1304 = vsub.s32 %v1301, %v1303
    %v1305 = vrot.slane %v1291, %v1304
    %v1306 = vcombine.high %v1298, %v1298
    %v1307 = vcombine.high %v1305, %v1305
    %v1308 = vcombine.high %v84, %v84
    %v1310 = vunpack.c.l.s4 1983009808
    %v1311 = vunpack.c.0.s8 %v1310
    %v1312 = vlaneseq
    %v1313 = vshrl.u32 %v1312, 7
    %v1314 = vsub.s32 %v1311, %v1313
    %v1315 = vrot.slane %v84, %v1314
    %v1317 = vunpack.c.l.s4 1983009808
    %v1318 = vunpack.c.0.s8 %v1317
    %v1319 = vlaneseq
    %v1320 = vshrl.u32 %v1319, 7
    %v1321 = vsub.s32 %v1318, %v1320
    %v1322 = vrot.slane %v1308, %v1321
    %v1323 = vcombine.high %v1315, %v1315
    %v1324 = vcombine.high %v1322, %v1322
    %v1325 = vcombine.high %v85, %v85
    %v1327 = vunpack.c.l.s4 1983009808
    %v1328 = vunpack.c.0.s8 %v1327
    %v1329 = vlaneseq
    %v1330 = vshrl.u32 %v1329, 7
    %v1331 = vsub.s32 %v1328, %v1330
    %v1332 = vrot.slane %v85, %v1331
    %v1334 = vunpack.c.l.s4 1983009808
    %v1335 = vunpack.c.0.s8 %v1334
    %v1336 = vlaneseq
    %v1337 = vshrl.u32 %v1336, 7
    %v1338 = vsub.s32 %v1335, %v1337
    %v1339 = vrot.slane %v1325, %v1338
    %v1340 = vcombine.high %v1332, %v1332
    %v1341 = vcombine.high %v1339, %v1339
    %v1342 = vcombine.high %v86, %v86
    %v1344 = vunpack.c.l.s4 1983009808
    %v1345 = vunpack.c.0.s8 %v1344
    %v1346 = vlaneseq
    %v1347 = vshrl.u32 %v1346, 7
    %v1348 = vsub.s32 %v1345, %v1347
    %v1349 = vrot.slane %v86, %v1348
    %v1351 = vunpack.c.l.s4 1983009808
    %v1352 = vunpack.c.0.s8 %v1351
    %v1353 = vlaneseq
    %v1354 = vshrl.u32 %v1353, 7
    %v1355 = vsub.s32 %v1352, %v1354
    %v1356 = vrot.slane %v1342, %v1355
    %v1357 = vcombine.high %v1349, %v1349
    %v1358 = vcombine.high %v1356, %v1356
    %v1359 = vcombine.high %v87, %v87
    %v1361 = vunpack.c.l.s4 1983009808
    %v1362 = vunpack.c.0.s8 %v1361
    %v1363 = vlaneseq
    %v1364 = vshrl.u32 %v1363, 7
    %v1365 = vsub.s32 %v1362, %v1364
    %v1366 = vrot.slane %v87, %v1365
    %v1368 = vunpack.c.l.s4 1983009808
    %v1369 = vunpack.c.0.s8 %v1368
    %v1370 = vlaneseq
    %v1371 = vshrl.u32 %v1370, 7
    %v1372 = vsub.s32 %v1369, %v1371
    %v1373 = vrot.slane %v1359, %v1372
    %v1374 = vcombine.high %v1366, %v1366
    %vm1393 = vcmask 392192
    %v1394 = vsel %vm1393, %v1373, 0
    %1396 = vmatprep.subr.mxu0 %v149
    %1397 = vmatpush1.msra.mxu0 %v148
    %1398 = vmatprep.subr.mxu0 %v145
    %1399 = vmatpush1.msra.mxu0 %v144
    %1400 = vmatprep.subr.mxu0 %v141
    %1401 = vmatpush1.msra.mxu0 %v140
    %1402 = vmatprep.subr.mxu0 %v137
    %1403 = vmatpush1.msra.mxu0 %v136
    %1404 = vmatprep.subr.mxu0 %v133
    %1405 = vmatpush1.msra.mxu0 %v132
    %1406 = vmatprep.subr.mxu0 %v129
    %1407 = vmatpush1.msra.mxu0 %v128
    %1408 = vmatprep.subr.mxu0 %v125
    %1409 = vmatpush1.msra.mxu0 %v124
    %1410 = vmatprep.subr.mxu0 %v121
    %1411 = vmatpush1.msra.mxu0 %v120
    %1412 = vmatprep.subr.mxu0 %v117
    %1413 = vmatpush1.msra.mxu0 %v116
    %1414 = vmatprep.subr.mxu0 %v113
    %1415 = vmatpush1.msra.mxu0 %v112
    %1416 = vmatprep.subr.mxu0 %v109
    %1417 = vmatpush1.msra.mxu0 %v108
    %1418 = vmatprep.subr.mxu0 %v105
    %1419 = vmatpush1.msra.mxu0 %v104
    %1420 = vmatprep.subr.mxu0 %v101
    %1421 = vmatpush1.msra.mxu0 %v100
    %1422 = vmatprep.subr.mxu0 %v97
    %1423 = vmatpush1.msra.mxu0 %v96
    %1424 = vmatprep.subr.mxu0 %v93
    %1425 = vmatpush1.msra.mxu0 %v92
    %1426 = vmatprep.subr.mxu0 %v89
    %1427 = vmatpush1.msra.mxu0 %v88
    %1428 = vmatprep.subr.mxu0 %v213
    %1429 = vmatpush2.msra.mxu0 %v212
    %1430 = vmatprep.subr.mxu0 %v209
    %1431 = vmatpush2.msra.mxu0 %v208
    %1432 = vmatprep.subr.mxu0 %v205
    %1433 = vmatpush2.msra.mxu0 %v204
    %1434 = vmatprep.subr.mxu0 %v201
    %1435 = vmatpush2.msra.mxu0 %v200
    %1436 = vmatprep.subr.mxu0 %v197
    %1437 = vmatpush2.msra.mxu0 %v196
    %1438 = vmatprep.subr.mxu0 %v193
    %1439 = vmatpush2.msra.mxu0 %v192
    %1440 = vmatprep.subr.mxu0 %v189
    %1441 = vmatpush2.msra.mxu0 %v188
    %1442 = vmatprep.subr.mxu0 %v185
    %1443 = vmatpush2.msra.mxu0 %v184
    %1444 = vmatprep.subr.mxu0 %v181
    %1445 = vmatpush2.msra.mxu0 %v180
    %1446 = vmatprep.subr.mxu0 %v177
    %1447 = vmatpush2.msra.mxu0 %v176
    %1448 = vmatprep.subr.mxu0 %v173
    %1449 = vmatpush2.msra.mxu0 %v172
    %1450 = vmatprep.subr.mxu0 %v169
    %1451 = vmatpush2.msra.mxu0 %v168
    %1452 = vmatprep.subr.mxu0 %v165
    %1453 = vmatpush2.msra.mxu0 %v164
    %1454 = vmatprep.subr.mxu0 %v161
    %1455 = vmatpush2.msra.mxu0 %v160
    %1456 = vmatprep.subr.mxu0 %v157
    %1457 = vmatpush2.msra.mxu0 %v156
    %1458 = vmatprep.subr.mxu0 %v153
    %1459 = vmatpush2.msra.mxu0 %v152
    %1460 = vmatprep.mubr.f32.mxu0 %v1306
    %1461 = vmatmul.mubr.f32.gmra.mxu0 %v1298
    %v1462 = vpop.f32.mrf.mxu0
    %v1463 = vadd.f32 %v1269, %v1462
    %v1464 = vpop.f32.mrf.mxu0
    %v1465 = vadd.f32 %v1273, %v1464
    %1466 = vdwg.mxu0
    %1467 = vmatprep.subr.mxu0 %v277
    %1468 = vmatpush1.msra.mxu0 %v276
    %1469 = vmatprep.subr.mxu0 %v273
    %1470 = vmatpush1.msra.mxu0 %v272
    %1471 = vmatprep.subr.mxu0 %v269
    %1472 = vmatpush1.msra.mxu0 %v268
    %1473 = vmatprep.subr.mxu0 %v265
    %1474 = vmatpush1.msra.mxu0 %v264
    %1475 = vmatprep.subr.mxu0 %v261
    %1476 = vmatpush1.msra.mxu0 %v260
    %1477 = vmatprep.subr.mxu0 %v257
    %1478 = vmatpush1.msra.mxu0 %v256
    %1479 = vmatprep.subr.mxu0 %v253
    %1480 = vmatpush1.msra.mxu0 %v252
    %1481 = vmatprep.subr.mxu0 %v249
    %1482 = vmatpush1.msra.mxu0 %v248
    %1483 = vmatprep.subr.mxu0 %v245
    %1484 = vmatpush1.msra.mxu0 %v244
    %1485 = vmatprep.subr.mxu0 %v241
    %1486 = vmatpush1.msra.mxu0 %v240
    %1487 = vmatprep.subr.mxu0 %v237
    %1488 = vmatpush1.msra.mxu0 %v236
    %1489 = vmatprep.subr.mxu0 %v233
    %1490 = vmatpush1.msra.mxu0 %v232
    %1491 = vmatprep.subr.mxu0 %v229
    %1492 = vmatpush1.msra.mxu0 %v228
    %1493 = vmatprep.subr.mxu0 %v225
    %1494 = vmatpush1.msra.mxu0 %v224
    %1495 = vmatprep.subr.mxu0 %v221
    %1496 = vmatpush1.msra.mxu0 %v220
    %1497 = vmatprep.subr.mxu0 %v217
    %1498 = vmatpush1.msra.mxu0 %v216
    %1499 = vmatprep.subr.mxu0 %v341
    %1500 = vmatpush2.msra.mxu0 %v340
    %1501 = vmatprep.subr.mxu0 %v337
    %1502 = vmatpush2.msra.mxu0 %v336
    %1503 = vmatprep.subr.mxu0 %v333
    %1504 = vmatpush2.msra.mxu0 %v332
    %1505 = vmatprep.subr.mxu0 %v329
    %1506 = vmatpush2.msra.mxu0 %v328
    %1507 = vmatprep.subr.mxu0 %v325
    %1508 = vmatpush2.msra.mxu0 %v324
    %1509 = vmatprep.subr.mxu0 %v321
    %1510 = vmatpush2.msra.mxu0 %v320
    %1511 = vmatprep.subr.mxu0 %v317
    %1512 = vmatpush2.msra.mxu0 %v316
    %1513 = vmatprep.subr.mxu0 %v313
    %1514 = vmatpush2.msra.mxu0 %v312
    %1515 = vmatprep.subr.mxu0 %v309
    %1516 = vmatpush2.msra.mxu0 %v308
    %1517 = vmatprep.subr.mxu0 %v305
    %1518 = vmatpush2.msra.mxu0 %v304
    %1519 = vmatprep.subr.mxu0 %v301
    %1520 = vmatpush2.msra.mxu0 %v300
    %1521 = vmatprep.subr.mxu0 %v297
    %1522 = vmatpush2.msra.mxu0 %v296
    %1523 = vmatprep.subr.mxu0 %v293
    %1524 = vmatpush2.msra.mxu0 %v292
    %1525 = vmatprep.subr.mxu0 %v289
    %1526 = vmatpush2.msra.mxu0 %v288
    %1527 = vmatprep.subr.mxu0 %v285
    %1528 = vmatpush2.msra.mxu0 %v284
    %1529 = vmatprep.subr.mxu0 %v281
    %1530 = vmatpush2.msra.mxu0 %v280
    %1531 = vmatprep.mubr.f32.mxu0 %v1307
    %1532 = vmatmul.mubr.f32.gmra.mxu0 %v1305
    %v1533 = vpop.f32.mrf.mxu0
    %v1534 = vadd.f32 %v1463, %v1533
    %v1535 = vpop.f32.mrf.mxu0
    %v1536 = vadd.f32 %v1465, %v1535
    %1537 = vdwg.mxu0
    %1538 = vmatprep.subr.mxu0 %v405
    %1539 = vmatpush1.msra.mxu0 %v404
    %1540 = vmatprep.subr.mxu0 %v401
    %1541 = vmatpush1.msra.mxu0 %v400
    %1542 = vmatprep.subr.mxu0 %v397
    %1543 = vmatpush1.msra.mxu0 %v396
    %1544 = vmatprep.subr.mxu0 %v393
    %1545 = vmatpush1.msra.mxu0 %v392
    %1546 = vmatprep.subr.mxu0 %v389
    %1547 = vmatpush1.msra.mxu0 %v388
    %1548 = vmatprep.subr.mxu0 %v385
    %1549 = vmatpush1.msra.mxu0 %v384
    %1550 = vmatprep.subr.mxu0 %v381
    %1551 = vmatpush1.msra.mxu0 %v380
    %1552 = vmatprep.subr.mxu0 %v377
    %1553 = vmatpush1.msra.mxu0 %v376
    %1554 = vmatprep.subr.mxu0 %v373
    %1555 = vmatpush1.msra.mxu0 %v372
    %1556 = vmatprep.subr.mxu0 %v369
    %1557 = vmatpush1.msra.mxu0 %v368
    %1558 = vmatprep.subr.mxu0 %v365
    %1559 = vmatpush1.msra.mxu0 %v364
    %1560 = vmatprep.subr.mxu0 %v361
    %1561 = vmatpush1.msra.mxu0 %v360
    %1562 = vmatprep.subr.mxu0 %v357
    %1563 = vmatpush1.msra.mxu0 %v356
    %1564 = vmatprep.subr.mxu0 %v353
    %1565 = vmatpush1.msra.mxu0 %v352
    %1566 = vmatprep.subr.mxu0 %v349
    %1567 = vmatpush1.msra.mxu0 %v348
    %1568 = vmatprep.subr.mxu0 %v345
    %1569 = vmatpush1.msra.mxu0 %v344
    %1570 = vmatprep.subr.mxu0 %v469
    %1571 = vmatpush2.msra.mxu0 %v468
    %1572 = vmatprep.subr.mxu0 %v465
    %1573 = vmatpush2.msra.mxu0 %v464
    %1574 = vmatprep.subr.mxu0 %v461
    %1575 = vmatpush2.msra.mxu0 %v460
    %1576 = vmatprep.subr.mxu0 %v457
    %1577 = vmatpush2.msra.mxu0 %v456
    %1578 = vmatprep.subr.mxu0 %v453
    %1579 = vmatpush2.msra.mxu0 %v452
    %1580 = vmatprep.subr.mxu0 %v449
    %1581 = vmatpush2.msra.mxu0 %v448
    %1582 = vmatprep.subr.mxu0 %v445
    %1583 = vmatpush2.msra.mxu0 %v444
    %1584 = vmatprep.subr.mxu0 %v441
    %1585 = vmatpush2.msra.mxu0 %v440
    %1586 = vmatprep.subr.mxu0 %v437
    %1587 = vmatpush2.msra.mxu0 %v436
    %1588 = vmatprep.subr.mxu0 %v433
    %1589 = vmatpush2.msra.mxu0 %v432
    %1590 = vmatprep.subr.mxu0 %v429
    %1591 = vmatpush2.msra.mxu0 %v428
    %1592 = vmatprep.subr.mxu0 %v425
    %1593 = vmatpush2.msra.mxu0 %v424
    %1594 = vmatprep.subr.mxu0 %v421
    %1595 = vmatpush2.msra.mxu0 %v420
    %1596 = vmatprep.subr.mxu0 %v417
    %1597 = vmatpush2.msra.mxu0 %v416
    %1598 = vmatprep.subr.mxu0 %v413
    %1599 = vmatpush2.msra.mxu0 %v412
    %1600 = vmatprep.subr.mxu0 %v409
    %1601 = vmatpush2.msra.mxu0 %v408
    %1602 = vmatprep.mubr.f32.mxu0 %v1323
    %1603 = vmatmul.mubr.f32.gmra.mxu0 %v1315
    %v1604 = vpop.f32.mrf.mxu0
    %v1605 = vadd.f32 %v1534, %v1604
    %v1606 = vpop.f32.mrf.mxu0
    %v1607 = vadd.f32 %v1536, %v1606
    %1608 = vdwg.mxu0
    %1609 = vmatprep.subr.mxu0 %v533
    %1610 = vmatpush1.msra.mxu0 %v532
    %1611 = vmatprep.subr.mxu0 %v529
    %1612 = vmatpush1.msra.mxu0 %v528
    %1613 = vmatprep.subr.mxu0 %v525
    %1614 = vmatpush1.msra.mxu0 %v524
    %1615 = vmatprep.subr.mxu0 %v521
    %1616 = vmatpush1.msra.mxu0 %v520
    %1617 = vmatprep.subr.mxu0 %v517
    %1618 = vmatpush1.msra.mxu0 %v516
    %1619 = vmatprep.subr.mxu0 %v513
    %1620 = vmatpush1.msra.mxu0 %v512
    %1621 = vmatprep.subr.mxu0 %v509
    %1622 = vmatpush1.msra.mxu0 %v508
    %1623 = vmatprep.subr.mxu0 %v505
    %1624 = vmatpush1.msra.mxu0 %v504
    %1625 = vmatprep.subr.mxu0 %v501
    %1626 = vmatpush1.msra.mxu0 %v500
    %1627 = vmatprep.subr.mxu0 %v497
    %1628 = vmatpush1.msra.mxu0 %v496
    %1629 = vmatprep.subr.mxu0 %v493
    %1630 = vmatpush1.msra.mxu0 %v492
    %1631 = vmatprep.subr.mxu0 %v489
    %1632 = vmatpush1.msra.mxu0 %v488
    %1633 = vmatprep.subr.mxu0 %v485
    %1634 = vmatpush1.msra.mxu0 %v484
    %1635 = vmatprep.subr.mxu0 %v481
    %1636 = vmatpush1.msra.mxu0 %v480
    %1637 = vmatprep.subr.mxu0 %v477
    %1638 = vmatpush1.msra.mxu0 %v476
    %1639 = vmatprep.subr.mxu0 %v473
    %1640 = vmatpush1.msra.mxu0 %v472
    %1641 = vmatprep.subr.mxu0 %v597
    %1642 = vmatpush2.msra.mxu0 %v596
    %1643 = vmatprep.subr.mxu0 %v593
    %1644 = vmatpush2.msra.mxu0 %v592
    %1645 = vmatprep.subr.mxu0 %v589
    %1646 = vmatpush2.msra.mxu0 %v588
    %1647 = vmatprep.subr.mxu0 %v585
    %1648 = vmatpush2.msra.mxu0 %v584
    %1649 = vmatprep.subr.mxu0 %v581
    %1650 = vmatpush2.msra.mxu0 %v580
    %1651 = vmatprep.subr.mxu0 %v577
    %1652 = vmatpush2.msra.mxu0 %v576
    %1653 = vmatprep.subr.mxu0 %v573
    %1654 = vmatpush2.msra.mxu0 %v572
    %1655 = vmatprep.subr.mxu0 %v569
    %1656 = vmatpush2.msra.mxu0 %v568
    %1657 = vmatprep.subr.mxu0 %v565
    %1658 = vmatpush2.msra.mxu0 %v564
    %1659 = vmatprep.subr.mxu0 %v561
    %1660 = vmatpush2.msra.mxu0 %v560
    %1661 = vmatprep.subr.mxu0 %v557
    %1662 = vmatpush2.msra.mxu0 %v556
    %1663 = vmatprep.subr.mxu0 %v553
    %1664 = vmatpush2.msra.mxu0 %v552
    %1665 = vmatprep.subr.mxu0 %v549
    %1666 = vmatpush2.msra.mxu0 %v548
    %1667 = vmatprep.subr.mxu0 %v545
    %1668 = vmatpush2.msra.mxu0 %v544
    %1669 = vmatprep.subr.mxu0 %v541
    %1670 = vmatpush2.msra.mxu0 %v540
    %1671 = vmatprep.subr.mxu0 %v537
    %1672 = vmatpush2.msra.mxu0 %v536
    %1673 = vmatprep.mubr.f32.mxu0 %v1324
    %1674 = vmatmul.mubr.f32.gmra.mxu0 %v1322
    %v1675 = vpop.f32.mrf.mxu0
    %v1676 = vadd.f32 %v1605, %v1675
    %v1677 = vpop.f32.mrf.mxu0
    %v1678 = vadd.f32 %v1607, %v1677
    %1679 = vdwg.mxu0
    %1680 = vmatprep.subr.mxu0 %v661
    %1681 = vmatpush1.msra.mxu0 %v660
    %1682 = vmatprep.subr.mxu0 %v657
    %1683 = vmatpush1.msra.mxu0 %v656
    %1684 = vmatprep.subr.mxu0 %v653
    %1685 = vmatpush1.msra.mxu0 %v652
    %1686 = vmatprep.subr.mxu0 %v649
    %1687 = vmatpush1.msra.mxu0 %v648
    %1688 = vmatprep.subr.mxu0 %v645
    %1689 = vmatpush1.msra.mxu0 %v644
    %1690 = vmatprep.subr.mxu0 %v641
    %1691 = vmatpush1.msra.mxu0 %v640
    %1692 = vmatprep.subr.mxu0 %v637
    %1693 = vmatpush1.msra.mxu0 %v636
    %1694 = vmatprep.subr.mxu0 %v633
    %1695 = vmatpush1.msra.mxu0 %v632
    %1696 = vmatprep.subr.mxu0 %v629
    %1697 = vmatpush1.msra.mxu0 %v628
    %1698 = vmatprep.subr.mxu0 %v625
    %1699 = vmatpush1.msra.mxu0 %v624
    %1700 = vmatprep.subr.mxu0 %v621
    %1701 = vmatpush1.msra.mxu0 %v620
    %1702 = vmatprep.subr.mxu0 %v617
    %1703 = vmatpush1.msra.mxu0 %v616
    %1704 = vmatprep.subr.mxu0 %v613
    %1705 = vmatpush1.msra.mxu0 %v612
    %1706 = vmatprep.subr.mxu0 %v609
    %1707 = vmatpush1.msra.mxu0 %v608
    %1708 = vmatprep.subr.mxu0 %v605
    %1709 = vmatpush1.msra.mxu0 %v604
    %1710 = vmatprep.subr.mxu0 %v601
    %1711 = vmatpush1.msra.mxu0 %v600
    %1712 = vmatprep.subr.mxu0 %v725
    %1713 = vmatpush2.msra.mxu0 %v724
    %1714 = vmatprep.subr.mxu0 %v721
    %1715 = vmatpush2.msra.mxu0 %v720
    %1716 = vmatprep.subr.mxu0 %v717
    %1717 = vmatpush2.msra.mxu0 %v716
    %1718 = vmatprep.subr.mxu0 %v713
    %1719 = vmatpush2.msra.mxu0 %v712
    %1720 = vmatprep.subr.mxu0 %v709
    %1721 = vmatpush2.msra.mxu0 %v708
    %1722 = vmatprep.subr.mxu0 %v705
    %1723 = vmatpush2.msra.mxu0 %v704
    %1724 = vmatprep.subr.mxu0 %v701
    %1725 = vmatpush2.msra.mxu0 %v700
    %1726 = vmatprep.subr.mxu0 %v697
    %1727 = vmatpush2.msra.mxu0 %v696
    %1728 = vmatprep.subr.mxu0 %v693
    %1729 = vmatpush2.msra.mxu0 %v692
    %1730 = vmatprep.subr.mxu0 %v689
    %1731 = vmatpush2.msra.mxu0 %v688
    %1732 = vmatprep.subr.mxu0 %v685
    %1733 = vmatpush2.msra.mxu0 %v684
    %1734 = vmatprep.subr.mxu0 %v681
    %1735 = vmatpush2.msra.mxu0 %v680
    %1736 = vmatprep.subr.mxu0 %v677
    %1737 = vmatpush2.msra.mxu0 %v676
    %1738 = vmatprep.subr.mxu0 %v673
    %1739 = vmatpush2.msra.mxu0 %v672
    %1740 = vmatprep.subr.mxu0 %v669
    %1741 = vmatpush2.msra.mxu0 %v668
    %1742 = vmatprep.subr.mxu0 %v665
    %1743 = vmatpush2.msra.mxu0 %v664
    %1744 = vmatprep.mubr.f32.mxu0 %v1340
    %1745 = vmatmul.mubr.f32.gmra.mxu0 %v1332
    %v1746 = vpop.f32.mrf.mxu0
    %v1747 = vadd.f32 %v1676, %v1746
    %v1748 = vpop.f32.mrf.mxu0
    %v1749 = vadd.f32 %v1678, %v1748
    %1750 = vdwg.mxu0
    %1751 = vmatprep.subr.mxu0 %v789
    %1752 = vmatpush1.msra.mxu0 %v788
    %1753 = vmatprep.subr.mxu0 %v785
    %1754 = vmatpush1.msra.mxu0 %v784
    %1755 = vmatprep.subr.mxu0 %v781
    %1756 = vmatpush1.msra.mxu0 %v780
    %1757 = vmatprep.subr.mxu0 %v777
    %1758 = vmatpush1.msra.mxu0 %v776
    %1759 = vmatprep.subr.mxu0 %v773
    %1760 = vmatpush1.msra.mxu0 %v772
    %1761 = vmatprep.subr.mxu0 %v769
    %1762 = vmatpush1.msra.mxu0 %v768
    %1763 = vmatprep.subr.mxu0 %v765
    %1764 = vmatpush1.msra.mxu0 %v764
    %1765 = vmatprep.subr.mxu0 %v761
    %1766 = vmatpush1.msra.mxu0 %v760
    %1767 = vmatprep.subr.mxu0 %v757
    %1768 = vmatpush1.msra.mxu0 %v756
    %1769 = vmatprep.subr.mxu0 %v753
    %1770 = vmatpush1.msra.mxu0 %v752
    %1771 = vmatprep.subr.mxu0 %v749
    %1772 = vmatpush1.msra.mxu0 %v748
    %1773 = vmatprep.subr.mxu0 %v745
    %1774 = vmatpush1.msra.mxu0 %v744
    %1775 = vmatprep.subr.mxu0 %v741
    %1776 = vmatpush1.msra.mxu0 %v740
    %1777 = vmatprep.subr.mxu0 %v737
    %1778 = vmatpush1.msra.mxu0 %v736
    %1779 = vmatprep.subr.mxu0 %v733
    %1780 = vmatpush1.msra.mxu0 %v732
    %1781 = vmatprep.subr.mxu0 %v729
    %1782 = vmatpush1.msra.mxu0 %v728
    %1783 = vmatprep.subr.mxu0 %v853
    %1784 = vmatpush2.msra.mxu0 %v852
    %1785 = vmatprep.subr.mxu0 %v849
    %1786 = vmatpush2.msra.mxu0 %v848
    %1787 = vmatprep.subr.mxu0 %v845
    %1788 = vmatpush2.msra.mxu0 %v844
    %1789 = vmatprep.subr.mxu0 %v841
    %1790 = vmatpush2.msra.mxu0 %v840
    %1791 = vmatprep.subr.mxu0 %v837
    %1792 = vmatpush2.msra.mxu0 %v836
    %1793 = vmatprep.subr.mxu0 %v833
    %1794 = vmatpush2.msra.mxu0 %v832
    %1795 = vmatprep.subr.mxu0 %v829
    %1796 = vmatpush2.msra.mxu0 %v828
    %1797 = vmatprep.subr.mxu0 %v825
    %1798 = vmatpush2.msra.mxu0 %v824
    %1799 = vmatprep.subr.mxu0 %v821
    %1800 = vmatpush2.msra.mxu0 %v820
    %1801 = vmatprep.subr.mxu0 %v817
    %1802 = vmatpush2.msra.mxu0 %v816
    %1803 = vmatprep.subr.mxu0 %v813
    %1804 = vmatpush2.msra.mxu0 %v812
    %1805 = vmatprep.subr.mxu0 %v809
    %1806 = vmatpush2.msra.mxu0 %v808
    %1807 = vmatprep.subr.mxu0 %v805
    %1808 = vmatpush2.msra.mxu0 %v804
    %1809 = vmatprep.subr.mxu0 %v801
    %1810 = vmatpush2.msra.mxu0 %v800
    %1811 = vmatprep.subr.mxu0 %v797
    %1812 = vmatpush2.msra.mxu0 %v796
    %1813 = vmatprep.subr.mxu0 %v793
    %1814 = vmatpush2.msra.mxu0 %v792
    %1815 = vmatprep.mubr.f32.mxu0 %v1341
    %1816 = vmatmul.mubr.f32.gmra.mxu0 %v1339
    %v1817 = vpop.f32.mrf.mxu0
    %v1818 = vadd.f32 %v1747, %v1817
    %v1819 = vpop.f32.mrf.mxu0
    %v1820 = vadd.f32 %v1749, %v1819
    %1821 = vdwg.mxu0
    %1822 = vmatprep.subr.mxu0 %v917
    %1823 = vmatpush1.msra.mxu0 %v916
    %1824 = vmatprep.subr.mxu0 %v913
    %1825 = vmatpush1.msra.mxu0 %v912
    %1826 = vmatprep.subr.mxu0 %v909
    %1827 = vmatpush1.msra.mxu0 %v908
    %1828 = vmatprep.subr.mxu0 %v905
    %1829 = vmatpush1.msra.mxu0 %v904
    %1830 = vmatprep.subr.mxu0 %v901
    %1831 = vmatpush1.msra.mxu0 %v900
    %1832 = vmatprep.subr.mxu0 %v897
    %1833 = vmatpush1.msra.mxu0 %v896
    %1834 = vmatprep.subr.mxu0 %v893
    %1835 = vmatpush1.msra.mxu0 %v892
    %1836 = vmatprep.subr.mxu0 %v889
    %1837 = vmatpush1.msra.mxu0 %v888
    %1838 = vmatprep.subr.mxu0 %v885
    %1839 = vmatpush1.msra.mxu0 %v884
    %1840 = vmatprep.subr.mxu0 %v881
    %1841 = vmatpush1.msra.mxu0 %v880
    %1842 = vmatprep.subr.mxu0 %v877
    %1843 = vmatpush1.msra.mxu0 %v876
    %1844 = vmatprep.subr.mxu0 %v873
    %1845 = vmatpush1.msra.mxu0 %v872
    %1846 = vmatprep.subr.mxu0 %v869
    %1847 = vmatpush1.msra.mxu0 %v868
    %1848 = vmatprep.subr.mxu0 %v865
    %1849 = vmatpush1.msra.mxu0 %v864
    %1850 = vmatprep.subr.mxu0 %v861
    %1851 = vmatpush1.msra.mxu0 %v860
    %1852 = vmatprep.subr.mxu0 %v857
    %1853 = vmatpush1.msra.mxu0 %v856
    %1854 = vmatprep.subr.mxu0 %v981
    %1855 = vmatpush2.msra.mxu0 %v980
    %1856 = vmatprep.subr.mxu0 %v977
    %1857 = vmatpush2.msra.mxu0 %v976
    %1858 = vmatprep.subr.mxu0 %v973
    %1859 = vmatpush2.msra.mxu0 %v972
    %1860 = vmatprep.subr.mxu0 %v969
    %1861 = vmatpush2.msra.mxu0 %v968
    %1862 = vmatprep.subr.mxu0 %v965
    %1863 = vmatpush2.msra.mxu0 %v964
    %1864 = vmatprep.subr.mxu0 %v961
    %1865 = vmatpush2.msra.mxu0 %v960
    %1866 = vmatprep.subr.mxu0 %v957
    %1867 = vmatpush2.msra.mxu0 %v956
    %1868 = vmatprep.subr.mxu0 %v953
    %1869 = vmatpush2.msra.mxu0 %v952
    %1870 = vmatprep.subr.mxu0 %v949
    %1871 = vmatpush2.msra.mxu0 %v948
    %1872 = vmatprep.subr.mxu0 %v945
    %1873 = vmatpush2.msra.mxu0 %v944
    %1874 = vmatprep.subr.mxu0 %v941
    %1875 = vmatpush2.msra.mxu0 %v940
    %1876 = vmatprep.subr.mxu0 %v937
    %1877 = vmatpush2.msra.mxu0 %v936
    %1878 = vmatprep.subr.mxu0 %v933
    %1879 = vmatpush2.msra.mxu0 %v932
    %1880 = vmatprep.subr.mxu0 %v929
    %1881 = vmatpush2.msra.mxu0 %v928
    %1882 = vmatprep.subr.mxu0 %v925
    %1883 = vmatpush2.msra.mxu0 %v924
    %1884 = vmatprep.subr.mxu0 %v921
    %1885 = vmatpush2.msra.mxu0 %v920
    %1886 = vmatprep.mubr.f32.mxu0 %v1357
    %1887 = vmatmul.mubr.f32.gmra.mxu0 %v1349
    %v1888 = vpop.f32.mrf.mxu0
    %v1889 = vadd.f32 %v1818, %v1888
    %v1890 = vpop.f32.mrf.mxu0
    %v1891 = vadd.f32 %v1820, %v1890
    %1892 = vdwg.mxu0
    %1893 = vmatprep.subr.mxu0 %v1045
    %1894 = vmatpush1.msra.mxu0 %v1044
    %1895 = vmatprep.subr.mxu0 %v1041
    %1896 = vmatpush1.msra.mxu0 %v1040
    %1897 = vmatprep.subr.mxu0 %v1037
    %1898 = vmatpush1.msra.mxu0 %v1036
    %1899 = vmatprep.subr.mxu0 %v1033
    %1900 = vmatpush1.msra.mxu0 %v1032
    %1901 = vmatprep.subr.mxu0 %v1029
    %1902 = vmatpush1.msra.mxu0 %v1028
    %1903 = vmatprep.subr.mxu0 %v1025
    %1904 = vmatpush1.msra.mxu0 %v1024
    %1905 = vmatprep.subr.mxu0 %v1021
    %1906 = vmatpush1.msra.mxu0 %v1020
    %1907 = vmatprep.subr.mxu0 %v1017
    %1908 = vmatpush1.msra.mxu0 %v1016
    %1909 = vmatprep.subr.mxu0 %v1013
    %1910 = vmatpush1.msra.mxu0 %v1012
    %1911 = vmatprep.subr.mxu0 %v1009
    %1912 = vmatpush1.msra.mxu0 %v1008
    %1913 = vmatprep.subr.mxu0 %v1005
    %1914 = vmatpush1.msra.mxu0 %v1004
    %1915 = vmatprep.subr.mxu0 %v1001
    %1916 = vmatpush1.msra.mxu0 %v1000
    %1917 = vmatprep.subr.mxu0 %v997
    %1918 = vmatpush1.msra.mxu0 %v996
    %1919 = vmatprep.subr.mxu0 %v993
    %1920 = vmatpush1.msra.mxu0 %v992
    %1921 = vmatprep.subr.mxu0 %v989
    %1922 = vmatpush1.msra.mxu0 %v988
    %1923 = vmatprep.subr.mxu0 %v985
    %1924 = vmatpush1.msra.mxu0 %v984
    %1925 = vmatprep.subr.mxu0 %v1109
    %1926 = vmatpush2.msra.mxu0 %v1108
    %1927 = vmatprep.subr.mxu0 %v1105
    %1928 = vmatpush2.msra.mxu0 %v1104
    %1929 = vmatprep.subr.mxu0 %v1101
    %1930 = vmatpush2.msra.mxu0 %v1100
    %1931 = vmatprep.subr.mxu0 %v1097
    %1932 = vmatpush2.msra.mxu0 %v1096
    %1933 = vmatprep.subr.mxu0 %v1093
    %1934 = vmatpush2.msra.mxu0 %v1092
    %1935 = vmatprep.subr.mxu0 %v1089
    %1936 = vmatpush2.msra.mxu0 %v1088
    %1937 = vmatprep.subr.mxu0 %v1085
    %1938 = vmatpush2.msra.mxu0 %v1084
    %1939 = vmatprep.subr.mxu0 %v1081
    %1940 = vmatpush2.msra.mxu0 %v1080
    %1941 = vmatprep.subr.mxu0 %v1077
    %1942 = vmatpush2.msra.mxu0 %v1076
    %1943 = vmatprep.subr.mxu0 %v1073
    %1944 = vmatpush2.msra.mxu0 %v1072
    %1945 = vmatprep.subr.mxu0 %v1069
    %1946 = vmatpush2.msra.mxu0 %v1068
    %1947 = vmatprep.subr.mxu0 %v1065
    %1948 = vmatpush2.msra.mxu0 %v1064
    %1949 = vmatprep.subr.mxu0 %v1061
    %1950 = vmatpush2.msra.mxu0 %v1060
    %1951 = vmatprep.subr.mxu0 %v1057
    %1952 = vmatpush2.msra.mxu0 %v1056
    %1953 = vmatprep.subr.mxu0 %v1053
    %1954 = vmatpush2.msra.mxu0 %v1052
    %1955 = vmatprep.subr.mxu0 %v1049
    %1956 = vmatpush2.msra.mxu0 %v1048
    %1957 = vmatprep.mubr.f32.mxu0 %v1358
    %1958 = vmatmul.mubr.f32.gmra.mxu0 %v1356
    %v1959 = vpop.f32.mrf.mxu0
    %v1960 = vadd.f32 %v1889, %v1959
    %v1961 = vpop.f32.mrf.mxu0
    %v1962 = vadd.f32 %v1891, %v1961
    %1963 = vdwg.mxu0
    %1964 = vmatprep.subr.mxu0 %v1173
    %1965 = vmatpush1.msra.mxu0 %v1172
    %1966 = vmatprep.subr.mxu0 %v1169
    %1967 = vmatpush1.msra.mxu0 %v1168
    %1968 = vmatprep.subr.mxu0 %v1165
    %1969 = vmatpush1.msra.mxu0 %v1164
    %1970 = vmatprep.subr.mxu0 %v1161
    %1971 = vmatpush1.msra.mxu0 %v1160
    %1972 = vmatprep.subr.mxu0 %v1157
    %1973 = vmatpush1.msra.mxu0 %v1156
    %1974 = vmatprep.subr.mxu0 %v1153
    %1975 = vmatpush1.msra.mxu0 %v1152
    %1976 = vmatprep.subr.mxu0 %v1149
    %1977 = vmatpush1.msra.mxu0 %v1148
    %1978 = vmatprep.subr.mxu0 %v1145
    %1979 = vmatpush1.msra.mxu0 %v1144
    %1980 = vmatprep.subr.mxu0 %v1141
    %1981 = vmatpush1.msra.mxu0 %v1140
    %1982 = vmatprep.subr.mxu0 %v1137
    %1983 = vmatpush1.msra.mxu0 %v1136
    %1984 = vmatprep.subr.mxu0 %v1133
    %1985 = vmatpush1.msra.mxu0 %v1132
    %1986 = vmatprep.subr.mxu0 %v1129
    %1987 = vmatpush1.msra.mxu0 %v1128
    %1988 = vmatprep.subr.mxu0 %v1125
    %1989 = vmatpush1.msra.mxu0 %v1124
    %1990 = vmatprep.subr.mxu0 %v1121
    %1991 = vmatpush1.msra.mxu0 %v1120
    %1992 = vmatprep.subr.mxu0 %v1117
    %1993 = vmatpush1.msra.mxu0 %v1116
    %1994 = vmatprep.subr.mxu0 %v1113
    %1995 = vmatpush1.msra.mxu0 %v1112
    %1996 = vmatprep.subr.mxu0 %v1237
    %1997 = vmatpush2.msra.mxu0 %v1236
    %1998 = vmatprep.subr.mxu0 %v1233
    %1999 = vmatpush2.msra.mxu0 %v1232
    %2000 = vmatprep.subr.mxu0 %v1229
    %2001 = vmatpush2.msra.mxu0 %v1228
    %2002 = vmatprep.subr.mxu0 %v1225
    %2003 = vmatpush2.msra.mxu0 %v1224
    %2004 = vmatprep.subr.mxu0 %v1221
    %2005 = vmatpush2.msra.mxu0 %v1220
    %2006 = vmatprep.subr.mxu0 %v1217
    %2007 = vmatpush2.msra.mxu0 %v1216
    %2008 = vmatprep.subr.mxu0 %v1213
    %2009 = vmatpush2.msra.mxu0 %v1212
    %2010 = vmatprep.subr.mxu0 %v1209
    %2011 = vmatpush2.msra.mxu0 %v1208
    %2012 = vmatprep.subr.mxu0 %v1205
    %2013 = vmatpush2.msra.mxu0 %v1204
    %2014 = vmatprep.subr.mxu0 %v1201
    %2015 = vmatpush2.msra.mxu0 %v1200
    %2016 = vmatprep.subr.mxu0 %v1197
    %2017 = vmatpush2.msra.mxu0 %v1196
    %2018 = vmatprep.subr.mxu0 %v1193
    %2019 = vmatpush2.msra.mxu0 %v1192
    %2020 = vmatprep.subr.mxu0 %v1189
    %2021 = vmatpush2.msra.mxu0 %v1188
    %2022 = vmatprep.subr.mxu0 %v1185
    %2023 = vmatpush2.msra.mxu0 %v1184
    %2024 = vmatprep.subr.mxu0 %v1181
    %2025 = vmatpush2.msra.mxu0 %v1180
    %2026 = vmatprep.subr.mxu0 %v1177
    %2027 = vmatpush2.msra.mxu0 %v1176
    %2028 = vmatprep.mubr.f32.mxu0 %v1374
    %2029 = vmatmul.mubr.f32.gmra.mxu0 %v1366
    %v2030 = vpop.f32.mrf.mxu0
    %v2031 = vadd.f32 %v1960, %v2030
    %v2032 = vpop.f32.mrf.mxu0
    %v2033 = vadd.f32 %v1962, %v2032
    %2034 = vdwg.mxu0
    %2035 = vmatprep.subr.mxu0 0.0
    %2036 = vmatpush1.msra.mxu0 0.0
    %2037 = vmatprep.subr.mxu0 0.0
    %2038 = vmatpush1.msra.mxu0 0.0
    %2039 = vmatprep.subr.mxu0 0.0
    %2040 = vmatpush1.msra.mxu0 0.0
    %2041 = vmatprep.subr.mxu0 0.0
    %2042 = vmatpush1.msra.mxu0 0.0
    %2043 = vmatprep.subr.mxu0 0.0
    %2044 = vmatpush1.msra.mxu0 0.0
    %2045 = vmatprep.subr.mxu0 0.0
    %2046 = vmatpush1.msra.mxu0 0.0
    %2047 = vmatprep.subr.mxu0 0.0
    %2048 = vmatpush1.msra.mxu0 0.0
    %2049 = vmatprep.subr.mxu0 0.0
    %2050 = vmatpush1.msra.mxu0 0.0
    %2051 = vmatprep.subr.mxu0 0.0
    %2052 = vmatpush1.msra.mxu0 0.0
    %2053 = vmatprep.subr.mxu0 0.0
    %2054 = vmatpush1.msra.mxu0 0.0
    %2055 = vmatprep.subr.mxu0 %v1261
    %2056 = vmatpush1.msra.mxu0 %v1260
    %2057 = vmatprep.subr.mxu0 %v1257
    %2058 = vmatpush1.msra.mxu0 %v1256
    %2059 = vmatprep.subr.mxu0 %v1253
    %2060 = vmatpush1.msra.mxu0 %v1252
    %2061 = vmatprep.subr.mxu0 %v1249
    %2062 = vmatpush1.msra.mxu0 %v1248
    %2063 = vmatprep.subr.mxu0 %v1245
    %2064 = vmatpush1.msra.mxu0 %v1244
    %2065 = vmatprep.subr.mxu0 %v1241
    %2066 = vmatpush1.msra.mxu0 %v1240
    %2067 = vmatprep.subr.mxu0 0.0
    %2068 = vmatpush2.msra.mxu0 0.0
    %2069 = vmatprep.subr.mxu0 0.0
    %2070 = vmatpush2.msra.mxu0 0.0
    %2071 = vmatprep.subr.mxu0 0.0
    %2072 = vmatpush2.msra.mxu0 0.0
    %2073 = vmatprep.subr.mxu0 0.0
    %2074 = vmatpush2.msra.mxu0 0.0
    %2075 = vmatprep.subr.mxu0 0.0
    %2076 = vmatpush2.msra.mxu0 0.0
    %2077 = vmatprep.subr.mxu0 0.0
    %2078 = vmatpush2.msra.mxu0 0.0
    %2079 = vmatprep.subr.mxu0 0.0
    %2080 = vmatpush2.msra.mxu0 0.0
    %2081 = vmatprep.subr.mxu0 0.0
    %2082 = vmatpush2.msra.mxu0 0.0
    %2083 = vmatprep.subr.mxu0 0.0
    %2084 = vmatpush2.msra.mxu0 0.0
    %2085 = vmatprep.subr.mxu0 0.0
    %2086 = vmatpush2.msra.mxu0 0.0
    %2087 = vmatprep.subr.mxu0 0.0
    %2088 = vmatpush2.msra.mxu0 0.0
    %2089 = vmatprep.subr.mxu0 0.0
    %2090 = vmatpush2.msra.mxu0 0.0
    %2091 = vmatprep.subr.mxu0 0.0
    %2092 = vmatpush2.msra.mxu0 0.0
    %2093 = vmatprep.subr.mxu0 0.0
    %2094 = vmatpush2.msra.mxu0 0.0
    %2095 = vmatprep.subr.mxu0 0.0
    %2096 = vmatpush2.msra.mxu0 0.0
    %2097 = vmatprep.subr.mxu0 0.0
    %2098 = vmatpush2.msra.mxu0 0.0
    %2099 = vmatprep.mubr.f32.mxu0 0.0
    %2100 = vmatmul.mubr.f32.gmra.mxu0 %v1394
    %v2101 = vpop.f32.mrf.mxu0
    %v2102 = vadd.f32 %v2031, %v2101
    %v2103 = vpop.f32.mrf.mxu0
    %v2104 = vadd.f32 %v2033, %v2103
    %2105 = vdwg.mxu0
    %2106 = vmatprep.subr.mxu0 %v151
    %2107 = vmatpush1.msra.mxu0 %v150
    %2108 = vmatprep.subr.mxu0 %v147
    %2109 = vmatpush1.msra.mxu0 %v146
    %2110 = vmatprep.subr.mxu0 %v143
    %2111 = vmatpush1.msra.mxu0 %v142
    %2112 = vmatprep.subr.mxu0 %v139
    %2113 = vmatpush1.msra.mxu0 %v138
    %2114 = vmatprep.subr.mxu0 %v135
    %2115 = vmatpush1.msra.mxu0 %v134
    %2116 = vmatprep.subr.mxu0 %v131
    %2117 = vmatpush1.msra.mxu0 %v130
    %2118 = vmatprep.subr.mxu0 %v127
    %2119 = vmatpush1.msra.mxu0 %v126
    %2120 = vmatprep.subr.mxu0 %v123
    %2121 = vmatpush1.msra.mxu0 %v122
    %2122 = vmatprep.subr.mxu0 %v119
    %2123 = vmatpush1.msra.mxu0 %v118
    %2124 = vmatprep.subr.mxu0 %v115
    %2125 = vmatpush1.msra.mxu0 %v114
    %2126 = vmatprep.subr.mxu0 %v111
    %2127 = vmatpush1.msra.mxu0 %v110
    %2128 = vmatprep.subr.mxu0 %v107
    %2129 = vmatpush1.msra.mxu0 %v106
    %2130 = vmatprep.subr.mxu0 %v103
    %2131 = vmatpush1.msra.mxu0 %v102
    %2132 = vmatprep.subr.mxu0 %v99
    %2133 = vmatpush1.msra.mxu0 %v98
    %2134 = vmatprep.subr.mxu0 %v95
    %2135 = vmatpush1.msra.mxu0 %v94
    %2136 = vmatprep.subr.mxu0 %v91
    %2137 = vmatpush1.msra.mxu0 %v90
    %2138 = vmatprep.subr.mxu0 %v215
    %2139 = vmatpush2.msra.mxu0 %v214
    %2140 = vmatprep.subr.mxu0 %v211
    %2141 = vmatpush2.msra.mxu0 %v210
    %2142 = vmatprep.subr.mxu0 %v207
    %2143 = vmatpush2.msra.mxu0 %v206
    %2144 = vmatprep.subr.mxu0 %v203
    %2145 = vmatpush2.msra.mxu0 %v202
    %2146 = vmatprep.subr.mxu0 %v199
    %2147 = vmatpush2.msra.mxu0 %v198
    %2148 = vmatprep.subr.mxu0 %v195
    %2149 = vmatpush2.msra.mxu0 %v194
    %2150 = vmatprep.subr.mxu0 %v191
    %2151 = vmatpush2.msra.mxu0 %v190
    %2152 = vmatprep.subr.mxu0 %v187
    %2153 = vmatpush2.msra.mxu0 %v186
    %2154 = vmatprep.subr.mxu0 %v183
    %2155 = vmatpush2.msra.mxu0 %v182
    %2156 = vmatprep.subr.mxu0 %v179
    %2157 = vmatpush2.msra.mxu0 %v178
    %2158 = vmatprep.subr.mxu0 %v175
    %2159 = vmatpush2.msra.mxu0 %v174
    %2160 = vmatprep.subr.mxu0 %v171
    %2161 = vmatpush2.msra.mxu0 %v170
    %2162 = vmatprep.subr.mxu0 %v167
    %2163 = vmatpush2.msra.mxu0 %v166
    %2164 = vmatprep.subr.mxu0 %v163
    %2165 = vmatpush2.msra.mxu0 %v162
    %2166 = vmatprep.subr.mxu0 %v159
    %2167 = vmatpush2.msra.mxu0 %v158
    %2168 = vmatprep.subr.mxu0 %v155
    %2169 = vmatpush2.msra.mxu0 %v154
    %2170 = vmatprep.mubr.f32.mxu0 %v1306
    %2171 = vmatmul.mubr.f32.gmra.mxu0 %v1298
    %v2172 = vpop.f32.mrf.mxu0
    %v2173 = vadd.f32 %v1277, %v2172
    %v2174 = vpop.f32.mrf.mxu0
    %v2175 = vadd.f32 %v1281, %v2174
    %2176 = vdwg.mxu0
    %2177 = vmatprep.subr.mxu0 %v279
    %2178 = vmatpush1.msra.mxu0 %v278
    %2179 = vmatprep.subr.mxu0 %v275
    %2180 = vmatpush1.msra.mxu0 %v274
    %2181 = vmatprep.subr.mxu0 %v271
    %2182 = vmatpush1.msra.mxu0 %v270
    %2183 = vmatprep.subr.mxu0 %v267
    %2184 = vmatpush1.msra.mxu0 %v266
    %2185 = vmatprep.subr.mxu0 %v263
    %2186 = vmatpush1.msra.mxu0 %v262
    %2187 = vmatprep.subr.mxu0 %v259
    %2188 = vmatpush1.msra.mxu0 %v258
    %2189 = vmatprep.subr.mxu0 %v255
    %2190 = vmatpush1.msra.mxu0 %v254
    %2191 = vmatprep.subr.mxu0 %v251
    %2192 = vmatpush1.msra.mxu0 %v250
    %2193 = vmatprep.subr.mxu0 %v247
    %2194 = vmatpush1.msra.mxu0 %v246
    %2195 = vmatprep.subr.mxu0 %v243
    %2196 = vmatpush1.msra.mxu0 %v242
    %2197 = vmatprep.subr.mxu0 %v239
    %2198 = vmatpush1.msra.mxu0 %v238
    %2199 = vmatprep.subr.mxu0 %v235
    %2200 = vmatpush1.msra.mxu0 %v234
    %2201 = vmatprep.subr.mxu0 %v231
    %2202 = vmatpush1.msra.mxu0 %v230
    %2203 = vmatprep.subr.mxu0 %v227
    %2204 = vmatpush1.msra.mxu0 %v226
    %2205 = vmatprep.subr.mxu0 %v223
    %2206 = vmatpush1.msra.mxu0 %v222
    %2207 = vmatprep.subr.mxu0 %v219
    %2208 = vmatpush1.msra.mxu0 %v218
    %2209 = vmatprep.subr.mxu0 %v343
    %2210 = vmatpush2.msra.mxu0 %v342
    %2211 = vmatprep.subr.mxu0 %v339
    %2212 = vmatpush2.msra.mxu0 %v338
    %2213 = vmatprep.subr.mxu0 %v335
    %2214 = vmatpush2.msra.mxu0 %v334
    %2215 = vmatprep.subr.mxu0 %v331
    %2216 = vmatpush2.msra.mxu0 %v330
    %2217 = vmatprep.subr.mxu0 %v327
    %2218 = vmatpush2.msra.mxu0 %v326
    %2219 = vmatprep.subr.mxu0 %v323
    %2220 = vmatpush2.msra.mxu0 %v322
    %2221 = vmatprep.subr.mxu0 %v319
    %2222 = vmatpush2.msra.mxu0 %v318
    %2223 = vmatprep.subr.mxu0 %v315
    %2224 = vmatpush2.msra.mxu0 %v314
    %2225 = vmatprep.subr.mxu0 %v311
    %2226 = vmatpush2.msra.mxu0 %v310
    %2227 = vmatprep.subr.mxu0 %v307
    %2228 = vmatpush2.msra.mxu0 %v306
    %2229 = vmatprep.subr.mxu0 %v303
    %2230 = vmatpush2.msra.mxu0 %v302
    %2231 = vmatprep.subr.mxu0 %v299
    %2232 = vmatpush2.msra.mxu0 %v298
    %2233 = vmatprep.subr.mxu0 %v295
    %2234 = vmatpush2.msra.mxu0 %v294
    %2235 = vmatprep.subr.mxu0 %v291
    %2236 = vmatpush2.msra.mxu0 %v290
    %2237 = vmatprep.subr.mxu0 %v287
    %2238 = vmatpush2.msra.mxu0 %v286
    %2239 = vmatprep.subr.mxu0 %v283
    %2240 = vmatpush2.msra.mxu0 %v282
    %2241 = vmatprep.mubr.f32.mxu0 %v1307
    %2242 = vmatmul.mubr.f32.gmra.mxu0 %v1305
    %v2243 = vpop.f32.mrf.mxu0
    %v2244 = vadd.f32 %v2173, %v2243
    %v2245 = vpop.f32.mrf.mxu0
    %v2246 = vadd.f32 %v2175, %v2245
    %2247 = vdwg.mxu0
    %2248 = vmatprep.subr.mxu0 %v407
    %2249 = vmatpush1.msra.mxu0 %v406
    %2250 = vmatprep.subr.mxu0 %v403
    %2251 = vmatpush1.msra.mxu0 %v402
    %2252 = vmatprep.subr.mxu0 %v399
    %2253 = vmatpush1.msra.mxu0 %v398
    %2254 = vmatprep.subr.mxu0 %v395
    %2255 = vmatpush1.msra.mxu0 %v394
    %2256 = vmatprep.subr.mxu0 %v391
    %2257 = vmatpush1.msra.mxu0 %v390
    %2258 = vmatprep.subr.mxu0 %v387
    %2259 = vmatpush1.msra.mxu0 %v386
    %2260 = vmatprep.subr.mxu0 %v383
    %2261 = vmatpush1.msra.mxu0 %v382
    %2262 = vmatprep.subr.mxu0 %v379
    %2263 = vmatpush1.msra.mxu0 %v378
    %2264 = vmatprep.subr.mxu0 %v375
    %2265 = vmatpush1.msra.mxu0 %v374
    %2266 = vmatprep.subr.mxu0 %v371
    %2267 = vmatpush1.msra.mxu0 %v370
    %2268 = vmatprep.subr.mxu0 %v367
    %2269 = vmatpush1.msra.mxu0 %v366
    %2270 = vmatprep.subr.mxu0 %v363
    %2271 = vmatpush1.msra.mxu0 %v362
    %2272 = vmatprep.subr.mxu0 %v359
    %2273 = vmatpush1.msra.mxu0 %v358
    %2274 = vmatprep.subr.mxu0 %v355
    %2275 = vmatpush1.msra.mxu0 %v354
    %2276 = vmatprep.subr.mxu0 %v351
    %2277 = vmatpush1.msra.mxu0 %v350
    %2278 = vmatprep.subr.mxu0 %v347
    %2279 = vmatpush1.msra.mxu0 %v346
    %2280 = vmatprep.subr.mxu0 %v471
    %2281 = vmatpush2.msra.mxu0 %v470
    %2282 = vmatprep.subr.mxu0 %v467
    %2283 = vmatpush2.msra.mxu0 %v466
    %2284 = vmatprep.subr.mxu0 %v463
    %2285 = vmatpush2.msra.mxu0 %v462
    %2286 = vmatprep.subr.mxu0 %v459
    %2287 = vmatpush2.msra.mxu0 %v458
    %2288 = vmatprep.subr.mxu0 %v455
    %2289 = vmatpush2.msra.mxu0 %v454
    %2290 = vmatprep.subr.mxu0 %v451
    %2291 = vmatpush2.msra.mxu0 %v450
    %2292 = vmatprep.subr.mxu0 %v447
    %2293 = vmatpush2.msra.mxu0 %v446
    %2294 = vmatprep.subr.mxu0 %v443
    %2295 = vmatpush2.msra.mxu0 %v442
    %2296 = vmatprep.subr.mxu0 %v439
    %2297 = vmatpush2.msra.mxu0 %v438
    %2298 = vmatprep.subr.mxu0 %v435
    %2299 = vmatpush2.msra.mxu0 %v434
    %2300 = vmatprep.subr.mxu0 %v431
    %2301 = vmatpush2.msra.mxu0 %v430
    %2302 = vmatprep.subr.mxu0 %v427
    %2303 = vmatpush2.msra.mxu0 %v426
    %2304 = vmatprep.subr.mxu0 %v423
    %2305 = vmatpush2.msra.mxu0 %v422
    %2306 = vmatprep.subr.mxu0 %v419
    %2307 = vmatpush2.msra.mxu0 %v418
    %2308 = vmatprep.subr.mxu0 %v415
    %2309 = vmatpush2.msra.mxu0 %v414
    %2310 = vmatprep.subr.mxu0 %v411
    %2311 = vmatpush2.msra.mxu0 %v410
    %2312 = vmatprep.mubr.f32.mxu0 %v1323
    %2313 = vmatmul.mubr.f32.gmra.mxu0 %v1315
    %v2314 = vpop.f32.mrf.mxu0
    %v2315 = vadd.f32 %v2244, %v2314
    %v2316 = vpop.f32.mrf.mxu0
    %v2317 = vadd.f32 %v2246, %v2316
    %2318 = vdwg.mxu0
    %2319 = vmatprep.subr.mxu0 %v535
    %2320 = vmatpush1.msra.mxu0 %v534
    %2321 = vmatprep.subr.mxu0 %v531
    %2322 = vmatpush1.msra.mxu0 %v530
    %2323 = vmatprep.subr.mxu0 %v527
    %2324 = vmatpush1.msra.mxu0 %v526
    %2325 = vmatprep.subr.mxu0 %v523
    %2326 = vmatpush1.msra.mxu0 %v522
    %2327 = vmatprep.subr.mxu0 %v519
    %2328 = vmatpush1.msra.mxu0 %v518
    %2329 = vmatprep.subr.mxu0 %v515
    %2330 = vmatpush1.msra.mxu0 %v514
    %2331 = vmatprep.subr.mxu0 %v511
    %2332 = vmatpush1.msra.mxu0 %v510
    %2333 = vmatprep.subr.mxu0 %v507
    %2334 = vmatpush1.msra.mxu0 %v506
    %2335 = vmatprep.subr.mxu0 %v503
    %2336 = vmatpush1.msra.mxu0 %v502
    %2337 = vmatprep.subr.mxu0 %v499
    %2338 = vmatpush1.msra.mxu0 %v498
    %2339 = vmatprep.subr.mxu0 %v495
    %2340 = vmatpush1.msra.mxu0 %v494
    %2341 = vmatprep.subr.mxu0 %v491
    %2342 = vmatpush1.msra.mxu0 %v490
    %2343 = vmatprep.subr.mxu0 %v487
    %2344 = vmatpush1.msra.mxu0 %v486
    %2345 = vmatprep.subr.mxu0 %v483
    %2346 = vmatpush1.msra.mxu0 %v482
    %2347 = vmatprep.subr.mxu0 %v479
    %2348 = vmatpush1.msra.mxu0 %v478
    %2349 = vmatprep.subr.mxu0 %v475
    %2350 = vmatpush1.msra.mxu0 %v474
    %2351 = vmatprep.subr.mxu0 %v599
    %2352 = vmatpush2.msra.mxu0 %v598
    %2353 = vmatprep.subr.mxu0 %v595
    %2354 = vmatpush2.msra.mxu0 %v594
    %2355 = vmatprep.subr.mxu0 %v591
    %2356 = vmatpush2.msra.mxu0 %v590
    %2357 = vmatprep.subr.mxu0 %v587
    %2358 = vmatpush2.msra.mxu0 %v586
    %2359 = vmatprep.subr.mxu0 %v583
    %2360 = vmatpush2.msra.mxu0 %v582
    %2361 = vmatprep.subr.mxu0 %v579
    %2362 = vmatpush2.msra.mxu0 %v578
    %2363 = vmatprep.subr.mxu0 %v575
    %2364 = vmatpush2.msra.mxu0 %v574
    %2365 = vmatprep.subr.mxu0 %v571
    %2366 = vmatpush2.msra.mxu0 %v570
    %2367 = vmatprep.subr.mxu0 %v567
    %2368 = vmatpush2.msra.mxu0 %v566
    %2369 = vmatprep.subr.mxu0 %v563
    %2370 = vmatpush2.msra.mxu0 %v562
    %2371 = vmatprep.subr.mxu0 %v559
    %2372 = vmatpush2.msra.mxu0 %v558
    %2373 = vmatprep.subr.mxu0 %v555
    %2374 = vmatpush2.msra.mxu0 %v554
    %2375 = vmatprep.subr.mxu0 %v551
    %2376 = vmatpush2.msra.mxu0 %v550
    %2377 = vmatprep.subr.mxu0 %v547
    %2378 = vmatpush2.msra.mxu0 %v546
    %2379 = vmatprep.subr.mxu0 %v543
    %2380 = vmatpush2.msra.mxu0 %v542
    %2381 = vmatprep.subr.mxu0 %v539
    %2382 = vmatpush2.msra.mxu0 %v538
    %2383 = vmatprep.mubr.f32.mxu0 %v1324
    %2384 = vmatmul.mubr.f32.gmra.mxu0 %v1322
    %v2385 = vpop.f32.mrf.mxu0
    %v2386 = vadd.f32 %v2315, %v2385
    %v2387 = vpop.f32.mrf.mxu0
    %v2388 = vadd.f32 %v2317, %v2387
    %2389 = vdwg.mxu0
    %2390 = vmatprep.subr.mxu0 %v663
    %2391 = vmatpush1.msra.mxu0 %v662
    %2392 = vmatprep.subr.mxu0 %v659
    %2393 = vmatpush1.msra.mxu0 %v658
    %2394 = vmatprep.subr.mxu0 %v655
    %2395 = vmatpush1.msra.mxu0 %v654
    %2396 = vmatprep.subr.mxu0 %v651
    %2397 = vmatpush1.msra.mxu0 %v650
    %2398 = vmatprep.subr.mxu0 %v647
    %2399 = vmatpush1.msra.mxu0 %v646
    %2400 = vmatprep.subr.mxu0 %v643
    %2401 = vmatpush1.msra.mxu0 %v642
    %2402 = vmatprep.subr.mxu0 %v639
    %2403 = vmatpush1.msra.mxu0 %v638
    %2404 = vmatprep.subr.mxu0 %v635
    %2405 = vmatpush1.msra.mxu0 %v634
    %2406 = vmatprep.subr.mxu0 %v631
    %2407 = vmatpush1.msra.mxu0 %v630
    %2408 = vmatprep.subr.mxu0 %v627
    %2409 = vmatpush1.msra.mxu0 %v626
    %2410 = vmatprep.subr.mxu0 %v623
    %2411 = vmatpush1.msra.mxu0 %v622
    %2412 = vmatprep.subr.mxu0 %v619
    %2413 = vmatpush1.msra.mxu0 %v618
    %2414 = vmatprep.subr.mxu0 %v615
    %2415 = vmatpush1.msra.mxu0 %v614
    %2416 = vmatprep.subr.mxu0 %v611
    %2417 = vmatpush1.msra.mxu0 %v610
    %2418 = vmatprep.subr.mxu0 %v607
    %2419 = vmatpush1.msra.mxu0 %v606
    %2420 = vmatprep.subr.mxu0 %v603
    %2421 = vmatpush1.msra.mxu0 %v602
    %2422 = vmatprep.subr.mxu0 %v727
    %2423 = vmatpush2.msra.mxu0 %v726
    %2424 = vmatprep.subr.mxu0 %v723
    %2425 = vmatpush2.msra.mxu0 %v722
    %2426 = vmatprep.subr.mxu0 %v719
    %2427 = vmatpush2.msra.mxu0 %v718
    %2428 = vmatprep.subr.mxu0 %v715
    %2429 = vmatpush2.msra.mxu0 %v714
    %2430 = vmatprep.subr.mxu0 %v711
    %2431 = vmatpush2.msra.mxu0 %v710
    %2432 = vmatprep.subr.mxu0 %v707
    %2433 = vmatpush2.msra.mxu0 %v706
    %2434 = vmatprep.subr.mxu0 %v703
    %2435 = vmatpush2.msra.mxu0 %v702
    %2436 = vmatprep.subr.mxu0 %v699
    %2437 = vmatpush2.msra.mxu0 %v698
    %2438 = vmatprep.subr.mxu0 %v695
    %2439 = vmatpush2.msra.mxu0 %v694
    %2440 = vmatprep.subr.mxu0 %v691
    %2441 = vmatpush2.msra.mxu0 %v690
    %2442 = vmatprep.subr.mxu0 %v687
    %2443 = vmatpush2.msra.mxu0 %v686
    %2444 = vmatprep.subr.mxu0 %v683
    %2445 = vmatpush2.msra.mxu0 %v682
    %2446 = vmatprep.subr.mxu0 %v679
    %2447 = vmatpush2.msra.mxu0 %v678
    %2448 = vmatprep.subr.mxu0 %v675
    %2449 = vmatpush2.msra.mxu0 %v674
    %2450 = vmatprep.subr.mxu0 %v671
    %2451 = vmatpush2.msra.mxu0 %v670
    %2452 = vmatprep.subr.mxu0 %v667
    %2453 = vmatpush2.msra.mxu0 %v666
    %2454 = vmatprep.mubr.f32.mxu0 %v1340
    %2455 = vmatmul.mubr.f32.gmra.mxu0 %v1332
    %v2456 = vpop.f32.mrf.mxu0
    %v2457 = vadd.f32 %v2386, %v2456
    %v2458 = vpop.f32.mrf.mxu0
    %v2459 = vadd.f32 %v2388, %v2458
    %2460 = vdwg.mxu0
    %2461 = vmatprep.subr.mxu0 %v791
    %2462 = vmatpush1.msra.mxu0 %v790
    %2463 = vmatprep.subr.mxu0 %v787
    %2464 = vmatpush1.msra.mxu0 %v786
    %2465 = vmatprep.subr.mxu0 %v783
    %2466 = vmatpush1.msra.mxu0 %v782
    %2467 = vmatprep.subr.mxu0 %v779
    %2468 = vmatpush1.msra.mxu0 %v778
    %2469 = vmatprep.subr.mxu0 %v775
    %2470 = vmatpush1.msra.mxu0 %v774
    %2471 = vmatprep.subr.mxu0 %v771
    %2472 = vmatpush1.msra.mxu0 %v770
    %2473 = vmatprep.subr.mxu0 %v767
    %2474 = vmatpush1.msra.mxu0 %v766
    %2475 = vmatprep.subr.mxu0 %v763
    %2476 = vmatpush1.msra.mxu0 %v762
    %2477 = vmatprep.subr.mxu0 %v759
    %2478 = vmatpush1.msra.mxu0 %v758
    %2479 = vmatprep.subr.mxu0 %v755
    %2480 = vmatpush1.msra.mxu0 %v754
    %2481 = vmatprep.subr.mxu0 %v751
    %2482 = vmatpush1.msra.mxu0 %v750
    %2483 = vmatprep.subr.mxu0 %v747
    %2484 = vmatpush1.msra.mxu0 %v746
    %2485 = vmatprep.subr.mxu0 %v743
    %2486 = vmatpush1.msra.mxu0 %v742
    %2487 = vmatprep.subr.mxu0 %v739
    %2488 = vmatpush1.msra.mxu0 %v738
    %2489 = vmatprep.subr.mxu0 %v735
    %2490 = vmatpush1.msra.mxu0 %v734
    %2491 = vmatprep.subr.mxu0 %v731
    %2492 = vmatpush1.msra.mxu0 %v730
    %2493 = vmatprep.subr.mxu0 %v855
    %2494 = vmatpush2.msra.mxu0 %v854
    %2495 = vmatprep.subr.mxu0 %v851
    %2496 = vmatpush2.msra.mxu0 %v850
    %2497 = vmatprep.subr.mxu0 %v847
    %2498 = vmatpush2.msra.mxu0 %v846
    %2499 = vmatprep.subr.mxu0 %v843
    %2500 = vmatpush2.msra.mxu0 %v842
    %2501 = vmatprep.subr.mxu0 %v839
    %2502 = vmatpush2.msra.mxu0 %v838
    %2503 = vmatprep.subr.mxu0 %v835
    %2504 = vmatpush2.msra.mxu0 %v834
    %2505 = vmatprep.subr.mxu0 %v831
    %2506 = vmatpush2.msra.mxu0 %v830
    %2507 = vmatprep.subr.mxu0 %v827
    %2508 = vmatpush2.msra.mxu0 %v826
    %2509 = vmatprep.subr.mxu0 %v823
    %2510 = vmatpush2.msra.mxu0 %v822
    %2511 = vmatprep.subr.mxu0 %v819
    %2512 = vmatpush2.msra.mxu0 %v818
    %2513 = vmatprep.subr.mxu0 %v815
    %2514 = vmatpush2.msra.mxu0 %v814
    %2515 = vmatprep.subr.mxu0 %v811
    %2516 = vmatpush2.msra.mxu0 %v810
    %2517 = vmatprep.subr.mxu0 %v807
    %2518 = vmatpush2.msra.mxu0 %v806
    %2519 = vmatprep.subr.mxu0 %v803
    %2520 = vmatpush2.msra.mxu0 %v802
    %2521 = vmatprep.subr.mxu0 %v799
    %2522 = vmatpush2.msra.mxu0 %v798
    %2523 = vmatprep.subr.mxu0 %v795
    %2524 = vmatpush2.msra.mxu0 %v794
    %2525 = vmatprep.mubr.f32.mxu0 %v1341
    %2526 = vmatmul.mubr.f32.gmra.mxu0 %v1339
    %v2527 = vpop.f32.mrf.mxu0
    %v2528 = vadd.f32 %v2457, %v2527
    %v2529 = vpop.f32.mrf.mxu0
    %v2530 = vadd.f32 %v2459, %v2529
    %2531 = vdwg.mxu0
    %2532 = vmatprep.subr.mxu0 %v919
    %2533 = vmatpush1.msra.mxu0 %v918
    %2534 = vmatprep.subr.mxu0 %v915
    %2535 = vmatpush1.msra.mxu0 %v914
    %2536 = vmatprep.subr.mxu0 %v911
    %2537 = vmatpush1.msra.mxu0 %v910
    %2538 = vmatprep.subr.mxu0 %v907
    %2539 = vmatpush1.msra.mxu0 %v906
    %2540 = vmatprep.subr.mxu0 %v903
    %2541 = vmatpush1.msra.mxu0 %v902
    %2542 = vmatprep.subr.mxu0 %v899
    %2543 = vmatpush1.msra.mxu0 %v898
    %2544 = vmatprep.subr.mxu0 %v895
    %2545 = vmatpush1.msra.mxu0 %v894
    %2546 = vmatprep.subr.mxu0 %v891
    %2547 = vmatpush1.msra.mxu0 %v890
    %2548 = vmatprep.subr.mxu0 %v887
    %2549 = vmatpush1.msra.mxu0 %v886
    %2550 = vmatprep.subr.mxu0 %v883
    %2551 = vmatpush1.msra.mxu0 %v882
    %2552 = vmatprep.subr.mxu0 %v879
    %2553 = vmatpush1.msra.mxu0 %v878
    %2554 = vmatprep.subr.mxu0 %v875
    %2555 = vmatpush1.msra.mxu0 %v874
    %2556 = vmatprep.subr.mxu0 %v871
    %2557 = vmatpush1.msra.mxu0 %v870
    %2558 = vmatprep.subr.mxu0 %v867
    %2559 = vmatpush1.msra.mxu0 %v866
    %2560 = vmatprep.subr.mxu0 %v863
    %2561 = vmatpush1.msra.mxu0 %v862
    %2562 = vmatprep.subr.mxu0 %v859
    %2563 = vmatpush1.msra.mxu0 %v858
    %2564 = vmatprep.subr.mxu0 %v983
    %2565 = vmatpush2.msra.mxu0 %v982
    %2566 = vmatprep.subr.mxu0 %v979
    %2567 = vmatpush2.msra.mxu0 %v978
    %2568 = vmatprep.subr.mxu0 %v975
    %2569 = vmatpush2.msra.mxu0 %v974
    %2570 = vmatprep.subr.mxu0 %v971
    %2571 = vmatpush2.msra.mxu0 %v970
    %2572 = vmatprep.subr.mxu0 %v967
    %2573 = vmatpush2.msra.mxu0 %v966
    %2574 = vmatprep.subr.mxu0 %v963
    %2575 = vmatpush2.msra.mxu0 %v962
    %2576 = vmatprep.subr.mxu0 %v959
    %2577 = vmatpush2.msra.mxu0 %v958
    %2578 = vmatprep.subr.mxu0 %v955
    %2579 = vmatpush2.msra.mxu0 %v954
    %2580 = vmatprep.subr.mxu0 %v951
    %2581 = vmatpush2.msra.mxu0 %v950
    %2582 = vmatprep.subr.mxu0 %v947
    %2583 = vmatpush2.msra.mxu0 %v946
    %2584 = vmatprep.subr.mxu0 %v943
    %2585 = vmatpush2.msra.mxu0 %v942
    %2586 = vmatprep.subr.mxu0 %v939
    %2587 = vmatpush2.msra.mxu0 %v938
    %2588 = vmatprep.subr.mxu0 %v935
    %2589 = vmatpush2.msra.mxu0 %v934
    %2590 = vmatprep.subr.mxu0 %v931
    %2591 = vmatpush2.msra.mxu0 %v930
    %2592 = vmatprep.subr.mxu0 %v927
    %2593 = vmatpush2.msra.mxu0 %v926
    %2594 = vmatprep.subr.mxu0 %v923
    %2595 = vmatpush2.msra.mxu0 %v922
    %2596 = vmatprep.mubr.f32.mxu0 %v1357
    %2597 = vmatmul.mubr.f32.gmra.mxu0 %v1349
    %v2598 = vpop.f32.mrf.mxu0
    %v2599 = vadd.f32 %v2528, %v2598
    %v2600 = vpop.f32.mrf.mxu0
    %v2601 = vadd.f32 %v2530, %v2600
    %2602 = vdwg.mxu0
    %2603 = vmatprep.subr.mxu0 %v1047
    %2604 = vmatpush1.msra.mxu0 %v1046
    %2605 = vmatprep.subr.mxu0 %v1043
    %2606 = vmatpush1.msra.mxu0 %v1042
    %2607 = vmatprep.subr.mxu0 %v1039
    %2608 = vmatpush1.msra.mxu0 %v1038
    %2609 = vmatprep.subr.mxu0 %v1035
    %2610 = vmatpush1.msra.mxu0 %v1034
    %2611 = vmatprep.subr.mxu0 %v1031
    %2612 = vmatpush1.msra.mxu0 %v1030
    %2613 = vmatprep.subr.mxu0 %v1027
    %2614 = vmatpush1.msra.mxu0 %v1026
    %2615 = vmatprep.subr.mxu0 %v1023
    %2616 = vmatpush1.msra.mxu0 %v1022
    %2617 = vmatprep.subr.mxu0 %v1019
    %2618 = vmatpush1.msra.mxu0 %v1018
    %2619 = vmatprep.subr.mxu0 %v1015
    %2620 = vmatpush1.msra.mxu0 %v1014
    %2621 = vmatprep.subr.mxu0 %v1011
    %2622 = vmatpush1.msra.mxu0 %v1010
    %2623 = vmatprep.subr.mxu0 %v1007
    %2624 = vmatpush1.msra.mxu0 %v1006
    %2625 = vmatprep.subr.mxu0 %v1003
    %2626 = vmatpush1.msra.mxu0 %v1002
    %2627 = vmatprep.subr.mxu0 %v999
    %2628 = vmatpush1.msra.mxu0 %v998
    %2629 = vmatprep.subr.mxu0 %v995
    %2630 = vmatpush1.msra.mxu0 %v994
    %2631 = vmatprep.subr.mxu0 %v991
    %2632 = vmatpush1.msra.mxu0 %v990
    %2633 = vmatprep.subr.mxu0 %v987
    %2634 = vmatpush1.msra.mxu0 %v986
    %2635 = vmatprep.subr.mxu0 %v1111
    %2636 = vmatpush2.msra.mxu0 %v1110
    %2637 = vmatprep.subr.mxu0 %v1107
    %2638 = vmatpush2.msra.mxu0 %v1106
    %2639 = vmatprep.subr.mxu0 %v1103
    %2640 = vmatpush2.msra.mxu0 %v1102
    %2641 = vmatprep.subr.mxu0 %v1099
    %2642 = vmatpush2.msra.mxu0 %v1098
    %2643 = vmatprep.subr.mxu0 %v1095
    %2644 = vmatpush2.msra.mxu0 %v1094
    %2645 = vmatprep.subr.mxu0 %v1091
    %2646 = vmatpush2.msra.mxu0 %v1090
    %2647 = vmatprep.subr.mxu0 %v1087
    %2648 = vmatpush2.msra.mxu0 %v1086
    %2649 = vmatprep.subr.mxu0 %v1083
    %2650 = vmatpush2.msra.mxu0 %v1082
    %2651 = vmatprep.subr.mxu0 %v1079
    %2652 = vmatpush2.msra.mxu0 %v1078
    %2653 = vmatprep.subr.mxu0 %v1075
    %2654 = vmatpush2.msra.mxu0 %v1074
    %2655 = vmatprep.subr.mxu0 %v1071
    %2656 = vmatpush2.msra.mxu0 %v1070
    %2657 = vmatprep.subr.mxu0 %v1067
    %2658 = vmatpush2.msra.mxu0 %v1066
    %2659 = vmatprep.subr.mxu0 %v1063
    %2660 = vmatpush2.msra.mxu0 %v1062
    %2661 = vmatprep.subr.mxu0 %v1059
    %2662 = vmatpush2.msra.mxu0 %v1058
    %2663 = vmatprep.subr.mxu0 %v1055
    %2664 = vmatpush2.msra.mxu0 %v1054
    %2665 = vmatprep.subr.mxu0 %v1051
    %2666 = vmatpush2.msra.mxu0 %v1050
    %2667 = vmatprep.mubr.f32.mxu0 %v1358
    %2668 = vmatmul.mubr.f32.gmra.mxu0 %v1356
    %v2669 = vpop.f32.mrf.mxu0
    %v2670 = vadd.f32 %v2599, %v2669
    %v2671 = vpop.f32.mrf.mxu0
    %v2672 = vadd.f32 %v2601, %v2671
    %2673 = vdwg.mxu0
    %2674 = vmatprep.subr.mxu0 %v1175
    %2675 = vmatpush1.msra.mxu0 %v1174
    %2676 = vmatprep.subr.mxu0 %v1171
    %2677 = vmatpush1.msra.mxu0 %v1170
    %2678 = vmatprep.subr.mxu0 %v1167
    %2679 = vmatpush1.msra.mxu0 %v1166
    %2680 = vmatprep.subr.mxu0 %v1163
    %2681 = vmatpush1.msra.mxu0 %v1162
    %2682 = vmatprep.subr.mxu0 %v1159
    %2683 = vmatpush1.msra.mxu0 %v1158
    %2684 = vmatprep.subr.mxu0 %v1155
    %2685 = vmatpush1.msra.mxu0 %v1154
    %2686 = vmatprep.subr.mxu0 %v1151
    %2687 = vmatpush1.msra.mxu0 %v1150
    %2688 = vmatprep.subr.mxu0 %v1147
    %2689 = vmatpush1.msra.mxu0 %v1146
    %2690 = vmatprep.subr.mxu0 %v1143
    %2691 = vmatpush1.msra.mxu0 %v1142
    %2692 = vmatprep.subr.mxu0 %v1139
    %2693 = vmatpush1.msra.mxu0 %v1138
    %2694 = vmatprep.subr.mxu0 %v1135
    %2695 = vmatpush1.msra.mxu0 %v1134
    %2696 = vmatprep.subr.mxu0 %v1131
    %2697 = vmatpush1.msra.mxu0 %v1130
    %2698 = vmatprep.subr.mxu0 %v1127
    %2699 = vmatpush1.msra.mxu0 %v1126
    %2700 = vmatprep.subr.mxu0 %v1123
    %2701 = vmatpush1.msra.mxu0 %v1122
    %2702 = vmatprep.subr.mxu0 %v1119
    %2703 = vmatpush1.msra.mxu0 %v1118
    %2704 = vmatprep.subr.mxu0 %v1115
    %2705 = vmatpush1.msra.mxu0 %v1114
    %2706 = vmatprep.subr.mxu0 %v1239
    %2707 = vmatpush2.msra.mxu0 %v1238
    %2708 = vmatprep.subr.mxu0 %v1235
    %2709 = vmatpush2.msra.mxu0 %v1234
    %2710 = vmatprep.subr.mxu0 %v1231
    %2711 = vmatpush2.msra.mxu0 %v1230
    %2712 = vmatprep.subr.mxu0 %v1227
    %2713 = vmatpush2.msra.mxu0 %v1226
    %2714 = vmatprep.subr.mxu0 %v1223
    %2715 = vmatpush2.msra.mxu0 %v1222
    %2716 = vmatprep.subr.mxu0 %v1219
    %2717 = vmatpush2.msra.mxu0 %v1218
    %2718 = vmatprep.subr.mxu0 %v1215
    %2719 = vmatpush2.msra.mxu0 %v1214
    %2720 = vmatprep.subr.mxu0 %v1211
    %2721 = vmatpush2.msra.mxu0 %v1210
    %2722 = vmatprep.subr.mxu0 %v1207
    %2723 = vmatpush2.msra.mxu0 %v1206
    %2724 = vmatprep.subr.mxu0 %v1203
    %2725 = vmatpush2.msra.mxu0 %v1202
    %2726 = vmatprep.subr.mxu0 %v1199
    %2727 = vmatpush2.msra.mxu0 %v1198
    %2728 = vmatprep.subr.mxu0 %v1195
    %2729 = vmatpush2.msra.mxu0 %v1194
    %2730 = vmatprep.subr.mxu0 %v1191
    %2731 = vmatpush2.msra.mxu0 %v1190
    %2732 = vmatprep.subr.mxu0 %v1187
    %2733 = vmatpush2.msra.mxu0 %v1186
    %2734 = vmatprep.subr.mxu0 %v1183
    %2735 = vmatpush2.msra.mxu0 %v1182
    %2736 = vmatprep.subr.mxu0 %v1179
    %2737 = vmatpush2.msra.mxu0 %v1178
    %2738 = vmatprep.mubr.f32.mxu0 %v1374
    %2739 = vmatmul.mubr.f32.gmra.mxu0 %v1366
    %v2740 = vpop.f32.mrf.mxu0
    %v2741 = vadd.f32 %v2670, %v2740
    %v2742 = vpop.f32.mrf.mxu0
    %v2743 = vadd.f32 %v2672, %v2742
    %2744 = vdwg.mxu0
    %2745 = vmatprep.subr.mxu0 0.0
    %2746 = vmatpush1.msra.mxu0 0.0
    %2747 = vmatprep.subr.mxu0 0.0
    %2748 = vmatpush1.msra.mxu0 0.0
    %2749 = vmatprep.subr.mxu0 0.0
    %2750 = vmatpush1.msra.mxu0 0.0
    %2751 = vmatprep.subr.mxu0 0.0
    %2752 = vmatpush1.msra.mxu0 0.0
    %2753 = vmatprep.subr.mxu0 0.0
    %2754 = vmatpush1.msra.mxu0 0.0
    %2755 = vmatprep.subr.mxu0 0.0
    %2756 = vmatpush1.msra.mxu0 0.0
    %2757 = vmatprep.subr.mxu0 0.0
    %2758 = vmatpush1.msra.mxu0 0.0
    %2759 = vmatprep.subr.mxu0 0.0
    %2760 = vmatpush1.msra.mxu0 0.0
    %2761 = vmatprep.subr.mxu0 0.0
    %2762 = vmatpush1.msra.mxu0 0.0
    %2763 = vmatprep.subr.mxu0 0.0
    %2764 = vmatpush1.msra.mxu0 0.0
    %2765 = vmatprep.subr.mxu0 %v1263
    %2766 = vmatpush1.msra.mxu0 %v1262
    %2767 = vmatprep.subr.mxu0 %v1259
    %2768 = vmatpush1.msra.mxu0 %v1258
    %2769 = vmatprep.subr.mxu0 %v1255
    %2770 = vmatpush1.msra.mxu0 %v1254
    %2771 = vmatprep.subr.mxu0 %v1251
    %2772 = vmatpush1.msra.mxu0 %v1250
    %2773 = vmatprep.subr.mxu0 %v1247
    %2774 = vmatpush1.msra.mxu0 %v1246
    %2775 = vmatprep.subr.mxu0 %v1243
    %2776 = vmatpush1.msra.mxu0 %v1242
    %2777 = vmatprep.subr.mxu0 0.0
    %2778 = vmatpush2.msra.mxu0 0.0
    %2779 = vmatprep.subr.mxu0 0.0
    %2780 = vmatpush2.msra.mxu0 0.0
    %2781 = vmatprep.subr.mxu0 0.0
    %2782 = vmatpush2.msra.mxu0 0.0
    %2783 = vmatprep.subr.mxu0 0.0
    %2784 = vmatpush2.msra.mxu0 0.0
    %2785 = vmatprep.subr.mxu0 0.0
    %2786 = vmatpush2.msra.mxu0 0.0
    %2787 = vmatprep.subr.mxu0 0.0
    %2788 = vmatpush2.msra.mxu0 0.0
    %2789 = vmatprep.subr.mxu0 0.0
    %2790 = vmatpush2.msra.mxu0 0.0
    %2791 = vmatprep.subr.mxu0 0.0
    %2792 = vmatpush2.msra.mxu0 0.0
    %2793 = vmatprep.subr.mxu0 0.0
    %2794 = vmatpush2.msra.mxu0 0.0
    %2795 = vmatprep.subr.mxu0 0.0
    %2796 = vmatpush2.msra.mxu0 0.0
    %2797 = vmatprep.subr.mxu0 0.0
    %2798 = vmatpush2.msra.mxu0 0.0
    %2799 = vmatprep.subr.mxu0 0.0
    %2800 = vmatpush2.msra.mxu0 0.0
    %2801 = vmatprep.subr.mxu0 0.0
    %2802 = vmatpush2.msra.mxu0 0.0
    %2803 = vmatprep.subr.mxu0 0.0
    %2804 = vmatpush2.msra.mxu0 0.0
    %2805 = vmatprep.subr.mxu0 0.0
    %2806 = vmatpush2.msra.mxu0 0.0
    %2807 = vmatprep.subr.mxu0 0.0
    %2808 = vmatpush2.msra.mxu0 0.0
    %2809 = vmatprep.mubr.f32.mxu0 0.0
    %2810 = vmatmul.mubr.f32.gmra.mxu0 %v1394
    %v2811 = vpop.f32.mrf.mxu0
    %v2812 = vadd.f32 %v2741, %v2811
    %v2813 = vpop.f32.mrf.mxu0
    %v2814 = vadd.f32 %v2743, %v2813
    %2815 = vdwg.mxu0
    %v2816 = vld [vmem:[#allocation8] sm:$0xff]
    %v2817 = vld [vmem:[#allocation8 + $0x8] sm:$0xff]
    %v2818 = vld [vmem:[#allocation8 + $0x10] sm:$0xff]
    %v2819 = vld [vmem:[#allocation8 + $0x18] sm:$0xff]
    %v2820 = vld [vmem:[#allocation8 + $0x20] sm:$0xff]
    %v2821 = vld [vmem:[#allocation8 + $0x28] sm:$0xff]
    %v2822 = vld [vmem:[#allocation8 + $0x30] sm:$0xff]
    %v2823 = vld [vmem:[#allocation8 + $0x38] sm:$0xff]
    %v2824 = vld [vmem:[#allocation8 + $0x40] sm:$0xff]
    %v2825 = vld [vmem:[#allocation8 + $0x48] sm:$0xff]
    %v2826 = vld [vmem:[#allocation8 + $0x50] sm:$0xff]
    %v2827 = vld [vmem:[#allocation8 + $0x58] sm:$0xff]
    %v2828 = vld [vmem:[#allocation8 + $0x60] sm:$0xff]
    %v2829 = vld [vmem:[#allocation8 + $0x68] sm:$0xff]
    %v2830 = vld [vmem:[#allocation8 + $0x70] sm:$0xff]
    %v2831 = vld [vmem:[#allocation8 + $0x78] sm:$0xff]
    %v2832 = vld [vmem:[#allocation8 + $0x80] sm:$0xff]
    %v2833 = vld [vmem:[#allocation8 + $0x88] sm:$0xff]
    %v2834 = vld [vmem:[#allocation8 + $0x90] sm:$0xff]
    %v2835 = vld [vmem:[#allocation8 + $0x98] sm:$0xff]
    %v2836 = vld [vmem:[#allocation8 + $0xa0] sm:$0xff]
    %v2837 = vld [vmem:[#allocation8 + $0xa8] sm:$0xff]
    %v2838 = vld [vmem:[#allocation8 + $0xb0] sm:$0xff]
    %v2839 = vld [vmem:[#allocation8 + $0xb8] sm:$0xff]
    %v2840 = vld [vmem:[#allocation8 + $0xc0] sm:$0xff]
    %v2841 = vld [vmem:[#allocation8 + $0xc8] sm:$0xff]
    %v2842 = vld [vmem:[#allocation8 + $0xd0] sm:$0xff]
    %v2843 = vld [vmem:[#allocation8 + $0xd8] sm:$0xff]
    %v2844 = vld [vmem:[#allocation8 + $0xe0] sm:$0xff]
    %v2845 = vld [vmem:[#allocation8 + $0xe8] sm:$0xff]
    %v2846 = vld [vmem:[#allocation8 + $0xf0] sm:$0xff]
    %v2847 = vld [vmem:[#allocation8 + $0xf8] sm:$0xff]
    %v2848 = vld [vmem:[#allocation8 + $0x100] sm:$0xff]
    %v2849 = vld [vmem:[#allocation8 + $0x108] sm:$0xff]
    %v2850 = vld [vmem:[#allocation8 + $0x110] sm:$0xff]
    %v2851 = vld [vmem:[#allocation8 + $0x118] sm:$0xff]
    %v2852 = vld [vmem:[#allocation8 + $0x120] sm:$0xff]
    %v2853 = vld [vmem:[#allocation8 + $0x128] sm:$0xff]
    %v2854 = vld [vmem:[#allocation8 + $0x130] sm:$0xff]
    %v2855 = vld [vmem:[#allocation8 + $0x138] sm:$0xff]
    %v2856 = vld [vmem:[#allocation8 + $0x140] sm:$0xff]
    %v2857 = vld [vmem:[#allocation8 + $0x148] sm:$0xff]
    %v2858 = vld [vmem:[#allocation8 + $0x150] sm:$0xff]
    %v2859 = vld [vmem:[#allocation8 + $0x158] sm:$0xff]
    %v2860 = vld [vmem:[#allocation8 + $0x160] sm:$0xff]
    %v2861 = vld [vmem:[#allocation8 + $0x168] sm:$0xff]
    %v2862 = vld [vmem:[#allocation8 + $0x170] sm:$0xff]
    %v2863 = vld [vmem:[#allocation8 + $0x178] sm:$0xff]
    %v2864 = vld [vmem:[#allocation8 + $0x180] sm:$0xff]
    %v2865 = vld [vmem:[#allocation8 + $0x188] sm:$0xff]
    %v2866 = vld [vmem:[#allocation8 + $0x190] sm:$0xff]
    %v2867 = vld [vmem:[#allocation8 + $0x198] sm:$0xff]
    %v2868 = vld [vmem:[#allocation8 + $0x1a0] sm:$0xff]
    %v2869 = vld [vmem:[#allocation8 + $0x1a8] sm:$0xff]
    %v2870 = vld [vmem:[#allocation8 + $0x1b0] sm:$0xff]
    %v2871 = vld [vmem:[#allocation8 + $0x1b8] sm:$0xff]
    %v2872 = vld [vmem:[#allocation8 + $0x1c0] sm:$0xff]
    %v2873 = vld [vmem:[#allocation8 + $0x1c8] sm:$0xff]
    %v2874 = vld [vmem:[#allocation8 + $0x1d0] sm:$0xff]
    %v2875 = vld [vmem:[#allocation8 + $0x1d8] sm:$0xff]
    %v2876 = vld [vmem:[#allocation8 + $0x1e0] sm:$0xff]
    %v2877 = vld [vmem:[#allocation8 + $0x1e8] sm:$0xff]
    %v2878 = vld [vmem:[#allocation8 + $0x1f0] sm:$0xff]
    %v2879 = vld [vmem:[#allocation8 + $0x1f8] sm:$0xff]
    %v2880 = vld [vmem:[#allocation8 + $0x200] sm:$0xff]
    %v2881 = vld [vmem:[#allocation8 + $0x208] sm:$0xff]
    %v2882 = vld [vmem:[#allocation8 + $0x210] sm:$0xff]
    %v2883 = vld [vmem:[#allocation8 + $0x218] sm:$0xff]
    %v2884 = vld [vmem:[#allocation8 + $0x220] sm:$0xff]
    %v2885 = vld [vmem:[#allocation8 + $0x228] sm:$0xff]
    %v2886 = vld [vmem:[#allocation8 + $0x230] sm:$0xff]
    %v2887 = vld [vmem:[#allocation8 + $0x238] sm:$0xff]
    %v2888 = vld [vmem:[#allocation8 + $0x240] sm:$0xff]
    %v2889 = vld [vmem:[#allocation8 + $0x248] sm:$0xff]
    %v2890 = vld [vmem:[#allocation8 + $0x250] sm:$0xff]
    %v2891 = vld [vmem:[#allocation8 + $0x258] sm:$0xff]
    %v2892 = vld [vmem:[#allocation8 + $0x260] sm:$0xff]
    %v2893 = vld [vmem:[#allocation8 + $0x268] sm:$0xff]
    %v2894 = vld [vmem:[#allocation8 + $0x270] sm:$0xff]
    %v2895 = vld [vmem:[#allocation8 + $0x278] sm:$0xff]
    %v2896 = vld [vmem:[#allocation8 + $0x280] sm:$0xff]
    %v2897 = vld [vmem:[#allocation8 + $0x288] sm:$0xff]
    %v2898 = vld [vmem:[#allocation8 + $0x290] sm:$0xff]
    %v2899 = vld [vmem:[#allocation8 + $0x298] sm:$0xff]
    %v2900 = vld [vmem:[#allocation8 + $0x2a0] sm:$0xff]
    %v2901 = vld [vmem:[#allocation8 + $0x2a8] sm:$0xff]
    %v2902 = vld [vmem:[#allocation8 + $0x2b0] sm:$0xff]
    %v2903 = vld [vmem:[#allocation8 + $0x2b8] sm:$0xff]
    %v2904 = vld [vmem:[#allocation8 + $0x2c0] sm:$0xff]
    %v2905 = vld [vmem:[#allocation8 + $0x2c8] sm:$0xff]
    %v2906 = vld [vmem:[#allocation8 + $0x2d0] sm:$0xff]
    %v2907 = vld [vmem:[#allocation8 + $0x2d8] sm:$0xff]
    %v2908 = vld [vmem:[#allocation8 + $0x2e0] sm:$0xff]
    %v2909 = vld [vmem:[#allocation8 + $0x2e8] sm:$0xff]
    %v2910 = vld [vmem:[#allocation8 + $0x2f0] sm:$0xff]
    %v2911 = vld [vmem:[#allocation8 + $0x2f8] sm:$0xff]
    %v2912 = vld [vmem:[#allocation8 + $0x300] sm:$0xff]
    %v2913 = vld [vmem:[#allocation8 + $0x308] sm:$0xff]
    %v2914 = vld [vmem:[#allocation8 + $0x310] sm:$0xff]
    %v2915 = vld [vmem:[#allocation8 + $0x318] sm:$0xff]
    %v2916 = vld [vmem:[#allocation8 + $0x320] sm:$0xff]
    %v2917 = vld [vmem:[#allocation8 + $0x328] sm:$0xff]
    %v2918 = vld [vmem:[#allocation8 + $0x330] sm:$0xff]
    %v2919 = vld [vmem:[#allocation8 + $0x338] sm:$0xff]
    %v2920 = vld [vmem:[#allocation8 + $0x340] sm:$0xff]
    %v2921 = vld [vmem:[#allocation8 + $0x348] sm:$0xff]
    %v2922 = vld [vmem:[#allocation8 + $0x350] sm:$0xff]
    %v2923 = vld [vmem:[#allocation8 + $0x358] sm:$0xff]
    %v2924 = vld [vmem:[#allocation8 + $0x360] sm:$0xff]
    %v2925 = vld [vmem:[#allocation8 + $0x368] sm:$0xff]
    %v2926 = vld [vmem:[#allocation8 + $0x370] sm:$0xff]
    %v2927 = vld [vmem:[#allocation8 + $0x378] sm:$0xff]
    %v2928 = vld [vmem:[#allocation8 + $0x380] sm:$0xff]
    %v2929 = vld [vmem:[#allocation8 + $0x388] sm:$0xff]
    %v2930 = vld [vmem:[#allocation8 + $0x390] sm:$0xff]
    %v2931 = vld [vmem:[#allocation8 + $0x398] sm:$0xff]
    %v2932 = vld [vmem:[#allocation8 + $0x3a0] sm:$0xff]
    %v2933 = vld [vmem:[#allocation8 + $0x3a8] sm:$0xff]
    %v2934 = vld [vmem:[#allocation8 + $0x3b0] sm:$0xff]
    %v2935 = vld [vmem:[#allocation8 + $0x3b8] sm:$0xff]
    %v2936 = vld [vmem:[#allocation8 + $0x3c0] sm:$0xff]
    %v2937 = vld [vmem:[#allocation8 + $0x3c8] sm:$0xff]
    %v2938 = vld [vmem:[#allocation8 + $0x3d0] sm:$0xff]
    %v2939 = vld [vmem:[#allocation8 + $0x3d8] sm:$0xff]
    %v2940 = vld [vmem:[#allocation8 + $0x3e0] sm:$0xff]
    %v2941 = vld [vmem:[#allocation8 + $0x3e8] sm:$0xff]
    %v2942 = vld [vmem:[#allocation8 + $0x3f0] sm:$0xff]
    %v2943 = vld [vmem:[#allocation8 + $0x3f8] sm:$0xff]
    %v2944 = vld [vmem:[#allocation8 + $0x400] sm:$0xff]
    %v2945 = vld [vmem:[#allocation8 + $0x408] sm:$0xff]
    %v2946 = vld [vmem:[#allocation8 + $0x410] sm:$0xff]
    %v2947 = vld [vmem:[#allocation8 + $0x418] sm:$0xff]
    %v2948 = vld [vmem:[#allocation8 + $0x420] sm:$0xff]
    %v2949 = vld [vmem:[#allocation8 + $0x428] sm:$0xff]
    %v2950 = vld [vmem:[#allocation8 + $0x430] sm:$0xff]
    %v2951 = vld [vmem:[#allocation8 + $0x438] sm:$0xff]
    %v2952 = vld [vmem:[#allocation8 + $0x440] sm:$0xff]
    %v2953 = vld [vmem:[#allocation8 + $0x448] sm:$0xff]
    %v2954 = vld [vmem:[#allocation8 + $0x450] sm:$0xff]
    %v2955 = vld [vmem:[#allocation8 + $0x458] sm:$0xff]
    %v2956 = vld [vmem:[#allocation8 + $0x460] sm:$0xff]
    %v2957 = vld [vmem:[#allocation8 + $0x468] sm:$0xff]
    %v2958 = vld [vmem:[#allocation8 + $0x470] sm:$0xff]
    %v2959 = vld [vmem:[#allocation8 + $0x478] sm:$0xff]
    %v2960 = vld [vmem:[#allocation8 + $0x480] sm:$0xff]
    %v2961 = vld [vmem:[#allocation8 + $0x488] sm:$0xff]
    %v2962 = vld [vmem:[#allocation8 + $0x490] sm:$0xff]
    %v2963 = vld [vmem:[#allocation8 + $0x498] sm:$0xff]
    %v2964 = vld [vmem:[#allocation8 + $0x4a0] sm:$0xff]
    %v2965 = vld [vmem:[#allocation8 + $0x4a8] sm:$0xff]
    %v2966 = vld [vmem:[#allocation8 + $0x4b0] sm:$0xff]
    %v2967 = vld [vmem:[#allocation8 + $0x4b8] sm:$0xff]
    %v2968 = vld [vmem:[#allocation8 + $0x4c0] sm:$0xff]
    %v2969 = vld [vmem:[#allocation8 + $0x4c8] sm:$0xff]
    %v2970 = vld [vmem:[#allocation8 + $0x4d0] sm:$0xff]
    %v2971 = vld [vmem:[#allocation8 + $0x4d8] sm:$0xff]
    %v2972 = vld [vmem:[#allocation8 + $0x4e0] sm:$0xff]
    %v2973 = vld [vmem:[#allocation8 + $0x4e8] sm:$0xff]
    %v2974 = vld [vmem:[#allocation8 + $0x4f0] sm:$0xff]
    %v2975 = vld [vmem:[#allocation8 + $0x4f8] sm:$0xff]
    %v2976 = vld [vmem:[#allocation8 + $0x500] sm:$0xff]
    %v2977 = vld [vmem:[#allocation8 + $0x508] sm:$0xff]
    %v2978 = vld [vmem:[#allocation8 + $0x510] sm:$0xff]
    %v2979 = vld [vmem:[#allocation8 + $0x518] sm:$0xff]
    %v2980 = vld [vmem:[#allocation8 + $0x520] sm:$0xff]
    %v2981 = vld [vmem:[#allocation8 + $0x528] sm:$0xff]
    %v2982 = vld [vmem:[#allocation8 + $0x530] sm:$0xff]
    %v2983 = vld [vmem:[#allocation8 + $0x538] sm:$0xff]
    %v2984 = vld [vmem:[#allocation8 + $0x540] sm:$0xff]
    %v2985 = vld [vmem:[#allocation8 + $0x548] sm:$0xff]
    %v2986 = vld [vmem:[#allocation8 + $0x550] sm:$0xff]
    %v2987 = vld [vmem:[#allocation8 + $0x558] sm:$0xff]
    %v2988 = vld [vmem:[#allocation8 + $0x560] sm:$0xff]
    %v2989 = vld [vmem:[#allocation8 + $0x568] sm:$0xff]
    %v2990 = vld [vmem:[#allocation8 + $0x570] sm:$0xff]
    %v2991 = vld [vmem:[#allocation8 + $0x578] sm:$0xff]
    %v2992 = vld [vmem:[#allocation8 + $0x580] sm:$0xff]
    %v2993 = vld [vmem:[#allocation8 + $0x588] sm:$0xff]
    %v2994 = vld [vmem:[#allocation8 + $0x590] sm:$0xff]
    %v2995 = vld [vmem:[#allocation8 + $0x598] sm:$0xff]
    %v2996 = vld [vmem:[#allocation8 + $0x5a0] sm:$0xff]
    %v2997 = vld [vmem:[#allocation8 + $0x5a8] sm:$0xff]
    %v2998 = vld [vmem:[#allocation8 + $0x5b0] sm:$0xff]
    %v2999 = vld [vmem:[#allocation8 + $0x5b8] sm:$0xff]
    %v3000 = vld [vmem:[#allocation8 + $0x5c0] sm:$0xff]
    %v3001 = vld [vmem:[#allocation8 + $0x5c8] sm:$0xff]
    %v3002 = vld [vmem:[#allocation8 + $0x5d0] sm:$0xff]
    %v3003 = vld [vmem:[#allocation8 + $0x5d8] sm:$0xff]
    %v3004 = vld [vmem:[#allocation8 + $0x5e0] sm:$0xff]
    %v3005 = vld [vmem:[#allocation8 + $0x5e8] sm:$0xff]
    %v3006 = vld [vmem:[#allocation8 + $0x5f0] sm:$0xff]
    %v3007 = vld [vmem:[#allocation8 + $0x5f8] sm:$0xff]
    %v3008 = vld [vmem:[#allocation8 + $0x600] sm:$0xff]
    %v3009 = vld [vmem:[#allocation8 + $0x608] sm:$0xff]
    %v3010 = vld [vmem:[#allocation8 + $0x610] sm:$0xff]
    %v3011 = vld [vmem:[#allocation8 + $0x618] sm:$0xff]
    %v3012 = vld [vmem:[#allocation8 + $0x620] sm:$0xff]
    %v3013 = vld [vmem:[#allocation8 + $0x628] sm:$0xff]
    %v3014 = vld [vmem:[#allocation8 + $0x630] sm:$0xff]
    %v3015 = vld [vmem:[#allocation8 + $0x638] sm:$0xff]
    %v3016 = vld [vmem:[#allocation8 + $0x640] sm:$0xff]
    %v3017 = vld [vmem:[#allocation8 + $0x648] sm:$0xff]
    %v3018 = vld [vmem:[#allocation8 + $0x650] sm:$0xff]
    %v3019 = vld [vmem:[#allocation8 + $0x658] sm:$0xff]
    %v3020 = vld [vmem:[#allocation8 + $0x660] sm:$0xff]
    %v3021 = vld [vmem:[#allocation8 + $0x668] sm:$0xff]
    %v3022 = vld [vmem:[#allocation8 + $0x670] sm:$0xff]
    %v3023 = vld [vmem:[#allocation8 + $0x678] sm:$0xff]
    %v3024 = vld [vmem:[#allocation8 + $0x680] sm:$0xff]
    %v3025 = vld [vmem:[#allocation8 + $0x688] sm:$0xff]
    %v3026 = vld [vmem:[#allocation8 + $0x690] sm:$0xff]
    %v3027 = vld [vmem:[#allocation8 + $0x698] sm:$0xff]
    %v3028 = vld [vmem:[#allocation8 + $0x6a0] sm:$0xff]
    %v3029 = vld [vmem:[#allocation8 + $0x6a8] sm:$0xff]
    %v3030 = vld [vmem:[#allocation8 + $0x6b0] sm:$0xff]
    %v3031 = vld [vmem:[#allocation8 + $0x6b8] sm:$0xff]
    %v3032 = vld [vmem:[#allocation8 + $0x6c0] sm:$0xff]
    %v3033 = vld [vmem:[#allocation8 + $0x6c8] sm:$0xff]
    %v3034 = vld [vmem:[#allocation8 + $0x6d0] sm:$0xff]
    %v3035 = vld [vmem:[#allocation8 + $0x6d8] sm:$0xff]
    %v3036 = vld [vmem:[#allocation8 + $0x6e0] sm:$0xff]
    %v3037 = vld [vmem:[#allocation8 + $0x6e8] sm:$0xff]
    %v3038 = vld [vmem:[#allocation8 + $0x6f0] sm:$0xff]
    %v3039 = vld [vmem:[#allocation8 + $0x6f8] sm:$0xff]
    %v3040 = vld [vmem:[#allocation8 + $0x700] sm:$0xff]
    %v3041 = vld [vmem:[#allocation8 + $0x708] sm:$0xff]
    %v3042 = vld [vmem:[#allocation8 + $0x710] sm:$0xff]
    %v3043 = vld [vmem:[#allocation8 + $0x718] sm:$0xff]
    %v3044 = vld [vmem:[#allocation8 + $0x720] sm:$0xff]
    %v3045 = vld [vmem:[#allocation8 + $0x728] sm:$0xff]
    %v3046 = vld [vmem:[#allocation8 + $0x730] sm:$0xff]
    %v3047 = vld [vmem:[#allocation8 + $0x738] sm:$0xff]
    %v3048 = vld [vmem:[#allocation8 + $0x740] sm:$0xff]
    %v3049 = vld [vmem:[#allocation8 + $0x748] sm:$0xff]
    %v3050 = vld [vmem:[#allocation8 + $0x750] sm:$0xff]
    %v3051 = vld [vmem:[#allocation8 + $0x758] sm:$0xff]
    %v3052 = vld [vmem:[#allocation8 + $0x760] sm:$0xff]
    %v3053 = vld [vmem:[#allocation8 + $0x768] sm:$0xff]
    %v3054 = vld [vmem:[#allocation8 + $0x770] sm:$0xff]
    %v3055 = vld [vmem:[#allocation8 + $0x778] sm:$0xff]
    %v3056 = vld [vmem:[#allocation8 + $0x780] sm:$0xff]
    %v3057 = vld [vmem:[#allocation8 + $0x788] sm:$0xff]
    %v3058 = vld [vmem:[#allocation8 + $0x790] sm:$0xff]
    %v3059 = vld [vmem:[#allocation8 + $0x798] sm:$0xff]
    %v3060 = vld [vmem:[#allocation8 + $0x7a0] sm:$0xff]
    %v3061 = vld [vmem:[#allocation8 + $0x7a8] sm:$0xff]
    %v3062 = vld [vmem:[#allocation8 + $0x7b0] sm:$0xff]
    %v3063 = vld [vmem:[#allocation8 + $0x7b8] sm:$0xff]
    %v3064 = vld [vmem:[#allocation8 + $0x7c0] sm:$0xff]
    %v3065 = vld [vmem:[#allocation8 + $0x7c8] sm:$0xff]
    %v3066 = vld [vmem:[#allocation8 + $0x7d0] sm:$0xff]
    %v3067 = vld [vmem:[#allocation8 + $0x7d8] sm:$0xff]
    %v3068 = vld [vmem:[#allocation8 + $0x7e0] sm:$0xff]
    %v3069 = vld [vmem:[#allocation8 + $0x7e8] sm:$0xff]
    %v3070 = vld [vmem:[#allocation8 + $0x7f0] sm:$0xff]
    %v3071 = vld [vmem:[#allocation8 + $0x7f8] sm:$0xff]
    %v3072 = vld [vmem:[#allocation8 + $0x800] sm:$0xff]
    %v3073 = vld [vmem:[#allocation8 + $0x808] sm:$0xff]
    %v3074 = vld [vmem:[#allocation8 + $0x810] sm:$0xff]
    %v3075 = vld [vmem:[#allocation8 + $0x818] sm:$0xff]
    %v3076 = vld [vmem:[#allocation8 + $0x820] sm:$0xff]
    %v3077 = vld [vmem:[#allocation8 + $0x828] sm:$0xff]
    %v3078 = vld [vmem:[#allocation8 + $0x830] sm:$0xff]
    %v3079 = vld [vmem:[#allocation8 + $0x838] sm:$0xff]
    %v3080 = vld [vmem:[#allocation8 + $0x840] sm:$0xff]
    %v3081 = vld [vmem:[#allocation8 + $0x848] sm:$0xff]
    %v3082 = vld [vmem:[#allocation8 + $0x850] sm:$0xff]
    %v3083 = vld [vmem:[#allocation8 + $0x858] sm:$0xff]
    %v3084 = vld [vmem:[#allocation8 + $0x860] sm:$0xff]
    %v3085 = vld [vmem:[#allocation8 + $0x868] sm:$0xff]
    %v3086 = vld [vmem:[#allocation8 + $0x870] sm:$0xff]
    %v3087 = vld [vmem:[#allocation8 + $0x878] sm:$0xff]
    %v3088 = vld [vmem:[#allocation8 + $0x880] sm:$0xff]
    %v3089 = vld [vmem:[#allocation8 + $0x888] sm:$0xff]
    %v3090 = vld [vmem:[#allocation8 + $0x890] sm:$0xff]
    %v3091 = vld [vmem:[#allocation8 + $0x898] sm:$0xff]
    %v3092 = vld [vmem:[#allocation8 + $0x8a0] sm:$0xff]
    %v3093 = vld [vmem:[#allocation8 + $0x8a8] sm:$0xff]
    %v3094 = vld [vmem:[#allocation8 + $0x8b0] sm:$0xff]
    %v3095 = vld [vmem:[#allocation8 + $0x8b8] sm:$0xff]
    %v3096 = vld [vmem:[#allocation8 + $0x8c0] sm:$0xff]
    %v3097 = vld [vmem:[#allocation8 + $0x8c8] sm:$0xff]
    %v3098 = vld [vmem:[#allocation8 + $0x8d0] sm:$0xff]
    %v3099 = vld [vmem:[#allocation8 + $0x8d8] sm:$0xff]
    %v3100 = vld [vmem:[#allocation8 + $0x8e0] sm:$0xff]
    %v3101 = vld [vmem:[#allocation8 + $0x8e8] sm:$0xff]
    %v3102 = vld [vmem:[#allocation8 + $0x8f0] sm:$0xff]
    %v3103 = vld [vmem:[#allocation8 + $0x8f8] sm:$0xff]
    %v3104 = vld [vmem:[#allocation8 + $0x900] sm:$0xff]
    %v3105 = vld [vmem:[#allocation8 + $0x908] sm:$0xff]
    %v3106 = vld [vmem:[#allocation8 + $0x910] sm:$0xff]
    %v3107 = vld [vmem:[#allocation8 + $0x918] sm:$0xff]
    %v3108 = vld [vmem:[#allocation8 + $0x920] sm:$0xff]
    %v3109 = vld [vmem:[#allocation8 + $0x928] sm:$0xff]
    %v3110 = vld [vmem:[#allocation8 + $0x930] sm:$0xff]
    %v3111 = vld [vmem:[#allocation8 + $0x938] sm:$0xff]
    %v3112 = vld [vmem:[#allocation8 + $0x940] sm:$0xff]
    %v3113 = vld [vmem:[#allocation8 + $0x948] sm:$0xff]
    %v3114 = vld [vmem:[#allocation8 + $0x950] sm:$0xff]
    %v3115 = vld [vmem:[#allocation8 + $0x958] sm:$0xff]
    %v3116 = vld [vmem:[#allocation8 + $0x960] sm:$0xff]
    %v3117 = vld [vmem:[#allocation8 + $0x968] sm:$0xff]
    %v3118 = vld [vmem:[#allocation8 + $0x970] sm:$0xff]
    %v3119 = vld [vmem:[#allocation8 + $0x978] sm:$0xff]
    %v3120 = vld [vmem:[#allocation8 + $0x980] sm:$0xff]
    %v3121 = vld [vmem:[#allocation8 + $0x988] sm:$0xff]
    %v3122 = vld [vmem:[#allocation8 + $0x990] sm:$0xff]
    %v3123 = vld [vmem:[#allocation8 + $0x998] sm:$0xff]
    %v3124 = vld [vmem:[#allocation8 + $0x9a0] sm:$0xff]
    %v3125 = vld [vmem:[#allocation8 + $0x9a8] sm:$0xff]
    %v3126 = vld [vmem:[#allocation8 + $0x9b0] sm:$0xff]
    %v3127 = vld [vmem:[#allocation8 + $0x9b8] sm:$0xff]
    %v3128 = vld [vmem:[#allocation8 + $0x9c0] sm:$0xff]
    %v3129 = vld [vmem:[#allocation8 + $0x9c8] sm:$0xff]
    %v3130 = vld [vmem:[#allocation8 + $0x9d0] sm:$0xff]
    %v3131 = vld [vmem:[#allocation8 + $0x9d8] sm:$0xff]
    %v3132 = vld [vmem:[#allocation8 + $0x9e0] sm:$0xff]
    %v3133 = vld [vmem:[#allocation8 + $0x9e8] sm:$0xff]
    %v3134 = vld [vmem:[#allocation8 + $0x9f0] sm:$0xff]
    %v3135 = vld [vmem:[#allocation8 + $0x9f8] sm:$0xff]
    %v3136 = vld [vmem:[#allocation8 + $0xa00] sm:$0xff]
    %v3137 = vld [vmem:[#allocation8 + $0xa08] sm:$0xff]
    %v3138 = vld [vmem:[#allocation8 + $0xa10] sm:$0xff]
    %v3139 = vld [vmem:[#allocation8 + $0xa18] sm:$0xff]
    %v3140 = vld [vmem:[#allocation8 + $0xa20] sm:$0xff]
    %v3141 = vld [vmem:[#allocation8 + $0xa28] sm:$0xff]
    %v3142 = vld [vmem:[#allocation8 + $0xa30] sm:$0xff]
    %v3143 = vld [vmem:[#allocation8 + $0xa38] sm:$0xff]
    %v3144 = vld [vmem:[#allocation8 + $0xa40] sm:$0xff]
    %v3145 = vld [vmem:[#allocation8 + $0xa48] sm:$0xff]
    %v3146 = vld [vmem:[#allocation8 + $0xa50] sm:$0xff]
    %v3147 = vld [vmem:[#allocation8 + $0xa58] sm:$0xff]
    %v3148 = vld [vmem:[#allocation8 + $0xa60] sm:$0xff]
    %v3149 = vld [vmem:[#allocation8 + $0xa68] sm:$0xff]
    %v3150 = vld [vmem:[#allocation8 + $0xa70] sm:$0xff]
    %v3151 = vld [vmem:[#allocation8 + $0xa78] sm:$0xff]
    %v3152 = vld [vmem:[#allocation8 + $0xa80] sm:$0xff]
    %v3153 = vld [vmem:[#allocation8 + $0xa88] sm:$0xff]
    %v3154 = vld [vmem:[#allocation8 + $0xa90] sm:$0xff]
    %v3155 = vld [vmem:[#allocation8 + $0xa98] sm:$0xff]
    %v3156 = vld [vmem:[#allocation8 + $0xaa0] sm:$0xff]
    %v3157 = vld [vmem:[#allocation8 + $0xaa8] sm:$0xff]
    %v3158 = vld [vmem:[#allocation8 + $0xab0] sm:$0xff]
    %v3159 = vld [vmem:[#allocation8 + $0xab8] sm:$0xff]
    %v3160 = vld [vmem:[#allocation8 + $0xac0] sm:$0xff]
    %v3161 = vld [vmem:[#allocation8 + $0xac8] sm:$0xff]
    %v3162 = vld [vmem:[#allocation8 + $0xad0] sm:$0xff]
    %v3163 = vld [vmem:[#allocation8 + $0xad8] sm:$0xff]
    %v3164 = vld [vmem:[#allocation8 + $0xae0] sm:$0xff]
    %v3165 = vld [vmem:[#allocation8 + $0xae8] sm:$0xff]
    %v3166 = vld [vmem:[#allocation8 + $0xaf0] sm:$0xff]
    %v3167 = vld [vmem:[#allocation8 + $0xaf8] sm:$0xff]
    %v3168 = vld [vmem:[#allocation8 + $0xb00] sm:$0xff]
    %v3169 = vld [vmem:[#allocation8 + $0xb08] sm:$0xff]
    %v3170 = vld [vmem:[#allocation8 + $0xb10] sm:$0xff]
    %v3171 = vld [vmem:[#allocation8 + $0xb18] sm:$0xff]
    %v3172 = vld [vmem:[#allocation8 + $0xb20] sm:$0xff]
    %v3173 = vld [vmem:[#allocation8 + $0xb28] sm:$0xff]
    %v3174 = vld [vmem:[#allocation8 + $0xb30] sm:$0xff]
    %v3175 = vld [vmem:[#allocation8 + $0xb38] sm:$0xff]
    %v3176 = vld [vmem:[#allocation8 + $0xb40] sm:$0xff]
    %v3177 = vld [vmem:[#allocation8 + $0xb48] sm:$0xff]
    %v3178 = vld [vmem:[#allocation8 + $0xb50] sm:$0xff]
    %v3179 = vld [vmem:[#allocation8 + $0xb58] sm:$0xff]
    %v3180 = vld [vmem:[#allocation8 + $0xb60] sm:$0xff]
    %v3181 = vld [vmem:[#allocation8 + $0xb68] sm:$0xff]
    %v3182 = vld [vmem:[#allocation8 + $0xb70] sm:$0xff]
    %v3183 = vld [vmem:[#allocation8 + $0xb78] sm:$0xff]
    %v3184 = vld [vmem:[#allocation8 + $0xb80] sm:$0xff]
    %v3185 = vld [vmem:[#allocation8 + $0xb88] sm:$0xff]
    %v3186 = vld [vmem:[#allocation8 + $0xb90] sm:$0xff]
    %v3187 = vld [vmem:[#allocation8 + $0xb98] sm:$0xff]
    %v3188 = vld [vmem:[#allocation8 + $0xba0] sm:$0xff]
    %v3189 = vld [vmem:[#allocation8 + $0xba8] sm:$0xff]
    %v3190 = vld [vmem:[#allocation8 + $0xbb0] sm:$0xff]
    %v3191 = vld [vmem:[#allocation8 + $0xbb8] sm:$0xff]
    %v3192 = vld [vmem:[#allocation8 + $0xbc0] sm:$0xff]
    %v3193 = vld [vmem:[#allocation8 + $0xbc8] sm:$0xff]
    %v3194 = vld [vmem:[#allocation8 + $0xbd0] sm:$0xff]
    %v3195 = vld [vmem:[#allocation8 + $0xbd8] sm:$0xff]
    %v3196 = vld [vmem:[#allocation8 + $0xbe0] sm:$0xff]
    %v3197 = vld [vmem:[#allocation8 + $0xbe8] sm:$0xff]
    %v3198 = vld [vmem:[#allocation8 + $0xbf0] sm:$0xff]
    %v3199 = vld [vmem:[#allocation8 + $0xbf8] sm:$0xff]
    %v3200 = vld [vmem:[#allocation8 + $0xc00] sm:$0xff]
    %v3201 = vld [vmem:[#allocation8 + $0xc08] sm:$0xff]
    %v3202 = vld [vmem:[#allocation8 + $0xc10] sm:$0xff]
    %v3203 = vld [vmem:[#allocation8 + $0xc18] sm:$0xff]
    %v3204 = vld [vmem:[#allocation8 + $0xc20] sm:$0xff]
    %v3205 = vld [vmem:[#allocation8 + $0xc28] sm:$0xff]
    %v3206 = vld [vmem:[#allocation8 + $0xc30] sm:$0xff]
    %v3207 = vld [vmem:[#allocation8 + $0xc38] sm:$0xff]
    %v3208 = vld [vmem:[#allocation8 + $0xc40] sm:$0xff]
    %v3209 = vld [vmem:[#allocation8 + $0xc48] sm:$0xff]
    %v3210 = vld [vmem:[#allocation8 + $0xc50] sm:$0xff]
    %v3211 = vld [vmem:[#allocation8 + $0xc58] sm:$0xff]
    %v3212 = vld [vmem:[#allocation8 + $0xc60] sm:$0xff]
    %v3213 = vld [vmem:[#allocation8 + $0xc68] sm:$0xff]
    %v3214 = vld [vmem:[#allocation8 + $0xc70] sm:$0xff]
    %v3215 = vld [vmem:[#allocation8 + $0xc78] sm:$0xff]
    %v3216 = vld [vmem:[#allocation8 + $0xc80] sm:$0xff]
    %v3217 = vld [vmem:[#allocation8 + $0xc88] sm:$0xff]
    %v3218 = vld [vmem:[#allocation8 + $0xc90] sm:$0xff]
    %v3219 = vld [vmem:[#allocation8 + $0xc98] sm:$0xff]
    %v3220 = vld [vmem:[#allocation8 + $0xca0] sm:$0xff]
    %v3221 = vld [vmem:[#allocation8 + $0xca8] sm:$0xff]
    %v3222 = vld [vmem:[#allocation8 + $0xcb0] sm:$0xff]
    %v3223 = vld [vmem:[#allocation8 + $0xcb8] sm:$0xff]
    %v3224 = vld [vmem:[#allocation8 + $0xcc0] sm:$0xff]
    %v3225 = vld [vmem:[#allocation8 + $0xcc8] sm:$0xff]
    %v3226 = vld [vmem:[#allocation8 + $0xcd0] sm:$0xff]
    %v3227 = vld [vmem:[#allocation8 + $0xcd8] sm:$0xff]
    %v3228 = vld [vmem:[#allocation8 + $0xce0] sm:$0xff]
    %v3229 = vld [vmem:[#allocation8 + $0xce8] sm:$0xff]
    %v3230 = vld [vmem:[#allocation8 + $0xcf0] sm:$0xff]
    %v3231 = vld [vmem:[#allocation8 + $0xcf8] sm:$0xff]
    %v3232 = vld [vmem:[#allocation8 + $0xd00] sm:$0xff]
    %v3233 = vld [vmem:[#allocation8 + $0xd08] sm:$0xff]
    %v3234 = vld [vmem:[#allocation8 + $0xd10] sm:$0xff]
    %v3235 = vld [vmem:[#allocation8 + $0xd18] sm:$0xff]
    %v3236 = vld [vmem:[#allocation8 + $0xd20] sm:$0xff]
    %v3237 = vld [vmem:[#allocation8 + $0xd28] sm:$0xff]
    %v3238 = vld [vmem:[#allocation8 + $0xd30] sm:$0xff]
    %v3239 = vld [vmem:[#allocation8 + $0xd38] sm:$0xff]
    %v3240 = vld [vmem:[#allocation8 + $0xd40] sm:$0xff]
    %v3241 = vld [vmem:[#allocation8 + $0xd48] sm:$0xff]
    %v3242 = vld [vmem:[#allocation8 + $0xd50] sm:$0xff]
    %v3243 = vld [vmem:[#allocation8 + $0xd58] sm:$0xff]
    %v3244 = vld [vmem:[#allocation8 + $0xd60] sm:$0xff]
    %v3245 = vld [vmem:[#allocation8 + $0xd68] sm:$0xff]
    %v3246 = vld [vmem:[#allocation8 + $0xd70] sm:$0xff]
    %v3247 = vld [vmem:[#allocation8 + $0xd78] sm:$0xff]
    %v3248 = vld [vmem:[#allocation8 + $0xd80] sm:$0xff]
    %v3249 = vld [vmem:[#allocation8 + $0xd88] sm:$0xff]
    %v3250 = vld [vmem:[#allocation8 + $0xd90] sm:$0xff]
    %v3251 = vld [vmem:[#allocation8 + $0xd98] sm:$0xff]
    %v3252 = vld [vmem:[#allocation8 + $0xda0] sm:$0xff]
    %v3253 = vld [vmem:[#allocation8 + $0xda8] sm:$0xff]
    %v3254 = vld [vmem:[#allocation8 + $0xdb0] sm:$0xff]
    %v3255 = vld [vmem:[#allocation8 + $0xdb8] sm:$0xff]
    %v3256 = vld [vmem:[#allocation8 + $0xdc0] sm:$0xff]
    %v3257 = vld [vmem:[#allocation8 + $0xdc8] sm:$0xff]
    %v3258 = vld [vmem:[#allocation8 + $0xdd0] sm:$0xff]
    %v3259 = vld [vmem:[#allocation8 + $0xdd8] sm:$0xff]
    %v3260 = vld [vmem:[#allocation8 + $0xde0] sm:$0xff]
    %v3261 = vld [vmem:[#allocation8 + $0xde8] sm:$0xff]
    %v3262 = vld [vmem:[#allocation8 + $0xdf0] sm:$0xff]
    %v3263 = vld [vmem:[#allocation8 + $0xdf8] sm:$0xff]
    %v3264 = vld [vmem:[#allocation8 + $0xe00] sm:$0xff]
    %v3265 = vld [vmem:[#allocation8 + $0xe08] sm:$0xff]
    %v3266 = vld [vmem:[#allocation8 + $0xe10] sm:$0xff]
    %v3267 = vld [vmem:[#allocation8 + $0xe18] sm:$0xff]
    %v3268 = vld [vmem:[#allocation8 + $0xe20] sm:$0xff]
    %v3269 = vld [vmem:[#allocation8 + $0xe28] sm:$0xff]
    %v3270 = vld [vmem:[#allocation8 + $0xe30] sm:$0xff]
    %v3271 = vld [vmem:[#allocation8 + $0xe38] sm:$0xff]
    %v3272 = vld [vmem:[#allocation8 + $0xe40] sm:$0xff]
    %v3273 = vld [vmem:[#allocation8 + $0xe48] sm:$0xff]
    %v3274 = vld [vmem:[#allocation8 + $0xe50] sm:$0xff]
    %v3275 = vld [vmem:[#allocation8 + $0xe58] sm:$0xff]
    %v3276 = vld [vmem:[#allocation8 + $0xe60] sm:$0xff]
    %v3277 = vld [vmem:[#allocation8 + $0xe68] sm:$0xff]
    %v3278 = vld [vmem:[#allocation8 + $0xe70] sm:$0xff]
    %v3279 = vld [vmem:[#allocation8 + $0xe78] sm:$0xff]
    %v3280 = vld [vmem:[#allocation8 + $0xe80] sm:$0xff]
    %v3281 = vld [vmem:[#allocation8 + $0xe88] sm:$0xff]
    %v3282 = vld [vmem:[#allocation8 + $0xe90] sm:$0xff]
    %v3283 = vld [vmem:[#allocation8 + $0xe98] sm:$0xff]
    %v3284 = vld [vmem:[#allocation8 + $0xea0] sm:$0xff]
    %v3285 = vld [vmem:[#allocation8 + $0xea8] sm:$0xff]
    %v3286 = vld [vmem:[#allocation8 + $0xeb0] sm:$0xff]
    %v3287 = vld [vmem:[#allocation8 + $0xeb8] sm:$0xff]
    %v3288 = vld [vmem:[#allocation8 + $0xec0] sm:$0xff]
    %v3289 = vld [vmem:[#allocation8 + $0xec8] sm:$0xff]
    %v3290 = vld [vmem:[#allocation8 + $0xed0] sm:$0xff]
    %v3291 = vld [vmem:[#allocation8 + $0xed8] sm:$0xff]
    %v3292 = vld [vmem:[#allocation8 + $0xee0] sm:$0xff]
    %v3293 = vld [vmem:[#allocation8 + $0xee8] sm:$0xff]
    %v3294 = vld [vmem:[#allocation8 + $0xef0] sm:$0xff]
    %v3295 = vld [vmem:[#allocation8 + $0xef8] sm:$0xff]
    %v3296 = vld [vmem:[#allocation8 + $0xf00] sm:$0xff]
    %v3297 = vld [vmem:[#allocation8 + $0xf08] sm:$0xff]
    %v3298 = vld [vmem:[#allocation8 + $0xf10] sm:$0xff]
    %v3299 = vld [vmem:[#allocation8 + $0xf18] sm:$0xff]
    %v3300 = vld [vmem:[#allocation8 + $0xf20] sm:$0xff]
    %v3301 = vld [vmem:[#allocation8 + $0xf28] sm:$0xff]
    %v3302 = vld [vmem:[#allocation8 + $0xf30] sm:$0xff]
    %v3303 = vld [vmem:[#allocation8 + $0xf38] sm:$0xff]
    %v3304 = vld [vmem:[#allocation8 + $0xf40] sm:$0xff]
    %v3305 = vld [vmem:[#allocation8 + $0xf48] sm:$0xff]
    %v3306 = vld [vmem:[#allocation8 + $0xf50] sm:$0xff]
    %v3307 = vld [vmem:[#allocation8 + $0xf58] sm:$0xff]
    %v3308 = vld [vmem:[#allocation8 + $0xf60] sm:$0xff]
    %v3309 = vld [vmem:[#allocation8 + $0xf68] sm:$0xff]
    %v3310 = vld [vmem:[#allocation8 + $0xf70] sm:$0xff]
    %v3311 = vld [vmem:[#allocation8 + $0xf78] sm:$0xff]
    %v3312 = vld [vmem:[#allocation8 + $0xf80] sm:$0xff]
    %v3313 = vld [vmem:[#allocation8 + $0xf88] sm:$0xff]
    %v3314 = vld [vmem:[#allocation8 + $0xf90] sm:$0xff]
    %v3315 = vld [vmem:[#allocation8 + $0xf98] sm:$0xff]
    %v3316 = vld [vmem:[#allocation8 + $0xfa0] sm:$0xff]
    %v3317 = vld [vmem:[#allocation8 + $0xfa8] sm:$0xff]
    %v3318 = vld [vmem:[#allocation8 + $0xfb0] sm:$0xff]
    %v3319 = vld [vmem:[#allocation8 + $0xfb8] sm:$0xff]
    %v3320 = vld [vmem:[#allocation8 + $0xfc0] sm:$0xff]
    %v3321 = vld [vmem:[#allocation8 + $0xfc8] sm:$0xff]
    %v3322 = vld [vmem:[#allocation8 + $0xfd0] sm:$0xff]
    %v3323 = vld [vmem:[#allocation8 + $0xfd8] sm:$0xff]
    %v3324 = vld [vmem:[#allocation8 + $0xfe0] sm:$0xff]
    %v3325 = vld [vmem:[#allocation8 + $0xfe8] sm:$0xff]
    %v3326 = vld [vmem:[#allocation8 + $0xff0] sm:$0xff]
    %v3327 = vld [vmem:[#allocation8 + $0xff8] sm:$0xff]
    %v3328 = vld [vmem:[#allocation8 + $0x1000] sm:$0xff]
    %v3329 = vld [vmem:[#allocation8 + $0x1008] sm:$0xff]
    %v3330 = vld [vmem:[#allocation8 + $0x1010] sm:$0xff]
    %v3331 = vld [vmem:[#allocation8 + $0x1018] sm:$0xff]
    %v3332 = vld [vmem:[#allocation8 + $0x1020] sm:$0xff]
    %v3333 = vld [vmem:[#allocation8 + $0x1028] sm:$0xff]
    %v3334 = vld [vmem:[#allocation8 + $0x1030] sm:$0xff]
    %v3335 = vld [vmem:[#allocation8 + $0x1038] sm:$0xff]
    %v3336 = vld [vmem:[#allocation8 + $0x1040] sm:$0xff]
    %v3337 = vld [vmem:[#allocation8 + $0x1048] sm:$0xff]
    %v3338 = vld [vmem:[#allocation8 + $0x1050] sm:$0xff]
    %v3339 = vld [vmem:[#allocation8 + $0x1058] sm:$0xff]
    %v3340 = vld [vmem:[#allocation8 + $0x1060] sm:$0xff]
    %v3341 = vld [vmem:[#allocation8 + $0x1068] sm:$0xff]
    %v3342 = vld [vmem:[#allocation8 + $0x1070] sm:$0xff]
    %v3343 = vld [vmem:[#allocation8 + $0x1078] sm:$0xff]
    %v3344 = vld [vmem:[#allocation8 + $0x1080] sm:$0xff]
    %v3345 = vld [vmem:[#allocation8 + $0x1088] sm:$0xff]
    %v3346 = vld [vmem:[#allocation8 + $0x1090] sm:$0xff]
    %v3347 = vld [vmem:[#allocation8 + $0x1098] sm:$0xff]
    %v3348 = vld [vmem:[#allocation8 + $0x10a0] sm:$0xff]
    %v3349 = vld [vmem:[#allocation8 + $0x10a8] sm:$0xff]
    %v3350 = vld [vmem:[#allocation8 + $0x10b0] sm:$0xff]
    %v3351 = vld [vmem:[#allocation8 + $0x10b8] sm:$0xff]
    %v3352 = vld [vmem:[#allocation8 + $0x10c0] sm:$0xff]
    %v3353 = vld [vmem:[#allocation8 + $0x10c8] sm:$0xff]
    %v3354 = vld [vmem:[#allocation8 + $0x10d0] sm:$0xff]
    %v3355 = vld [vmem:[#allocation8 + $0x10d8] sm:$0xff]
    %v3356 = vld [vmem:[#allocation8 + $0x10e0] sm:$0xff]
    %v3357 = vld [vmem:[#allocation8 + $0x10e8] sm:$0xff]
    %v3358 = vld [vmem:[#allocation8 + $0x10f0] sm:$0xff]
    %v3359 = vld [vmem:[#allocation8 + $0x10f8] sm:$0xff]
    %v3360 = vld [vmem:[#allocation8 + $0x1100] sm:$0xff]
    %v3361 = vld [vmem:[#allocation8 + $0x1108] sm:$0xff]
    %v3362 = vld [vmem:[#allocation8 + $0x1110] sm:$0xff]
    %v3363 = vld [vmem:[#allocation8 + $0x1118] sm:$0xff]
    %v3364 = vld [vmem:[#allocation8 + $0x1120] sm:$0xff]
    %v3365 = vld [vmem:[#allocation8 + $0x1128] sm:$0xff]
    %v3366 = vld [vmem:[#allocation8 + $0x1130] sm:$0xff]
    %v3367 = vld [vmem:[#allocation8 + $0x1138] sm:$0xff]
    %v3368 = vld [vmem:[#allocation8 + $0x1140] sm:$0xff]
    %v3369 = vld [vmem:[#allocation8 + $0x1148] sm:$0xff]
    %v3370 = vld [vmem:[#allocation8 + $0x1150] sm:$0xff]
    %v3371 = vld [vmem:[#allocation8 + $0x1158] sm:$0xff]
    %v3372 = vld [vmem:[#allocation8 + $0x1160] sm:$0xff]
    %v3373 = vld [vmem:[#allocation8 + $0x1168] sm:$0xff]
    %v3374 = vld [vmem:[#allocation8 + $0x1170] sm:$0xff]
    %v3375 = vld [vmem:[#allocation8 + $0x1178] sm:$0xff]
    %v3376 = vld [vmem:[#allocation8 + $0x1180] sm:$0xff]
    %v3377 = vld [vmem:[#allocation8 + $0x1188] sm:$0xff]
    %v3378 = vld [vmem:[#allocation8 + $0x1190] sm:$0xff]
    %v3379 = vld [vmem:[#allocation8 + $0x1198] sm:$0xff]
    %v3380 = vld [vmem:[#allocation8 + $0x11a0] sm:$0xff]
    %v3381 = vld [vmem:[#allocation8 + $0x11a8] sm:$0xff]
    %v3382 = vld [vmem:[#allocation8 + $0x11b0] sm:$0xff]
    %v3383 = vld [vmem:[#allocation8 + $0x11b8] sm:$0xff]
    %v3384 = vld [vmem:[#allocation8 + $0x11c0] sm:$0xff]
    %v3385 = vld [vmem:[#allocation8 + $0x11c8] sm:$0xff]
    %v3386 = vld [vmem:[#allocation8 + $0x11d0] sm:$0xff]
    %v3387 = vld [vmem:[#allocation8 + $0x11d8] sm:$0xff]
    %v3388 = vld [vmem:[#allocation8 + $0x11e0] sm:$0xff]
    %v3389 = vld [vmem:[#allocation8 + $0x11e8] sm:$0xff]
    %v3390 = vld [vmem:[#allocation8 + $0x11f0] sm:$0xff]
    %v3391 = vld [vmem:[#allocation8 + $0x11f8] sm:$0xff]
    %v3392 = vld [vmem:[#allocation8 + $0x1200] sm:$0xff]
    %v3393 = vld [vmem:[#allocation8 + $0x1208] sm:$0xff]
    %v3394 = vld [vmem:[#allocation8 + $0x1210] sm:$0xff]
    %v3395 = vld [vmem:[#allocation8 + $0x1218] sm:$0xff]
    %v3396 = vld [vmem:[#allocation8 + $0x1220] sm:$0xff]
    %v3397 = vld [vmem:[#allocation8 + $0x1228] sm:$0xff]
    %v3398 = vld [vmem:[#allocation8 + $0x1230] sm:$0xff]
    %v3399 = vld [vmem:[#allocation8 + $0x1238] sm:$0xff]
    %v3400 = vld [vmem:[#allocation8 + $0x1240] sm:$0xff]
    %v3401 = vld [vmem:[#allocation8 + $0x1248] sm:$0xff]
    %v3402 = vld [vmem:[#allocation8 + $0x1250] sm:$0xff]
    %v3403 = vld [vmem:[#allocation8 + $0x1258] sm:$0xff]
    %v3404 = vld [vmem:[#allocation8 + $0x1260] sm:$0xff]
    %v3405 = vld [vmem:[#allocation8 + $0x1268] sm:$0xff]
    %v3406 = vld [vmem:[#allocation8 + $0x1270] sm:$0xff]
    %v3407 = vld [vmem:[#allocation8 + $0x1278] sm:$0xff]
    %v3408 = vld [vmem:[#allocation8 + $0x1280] sm:$0xff]
    %v3409 = vld [vmem:[#allocation8 + $0x1288] sm:$0xff]
    %v3410 = vld [vmem:[#allocation8 + $0x1290] sm:$0xff]
    %v3411 = vld [vmem:[#allocation8 + $0x1298] sm:$0xff]
    %v3412 = vld [vmem:[#allocation8 + $0x12a0] sm:$0xff]
    %v3413 = vld [vmem:[#allocation8 + $0x12a8] sm:$0xff]
    %v3414 = vld [vmem:[#allocation8 + $0x12b0] sm:$0xff]
    %v3415 = vld [vmem:[#allocation8 + $0x12b8] sm:$0xff]
    %v3416 = vld [vmem:[#allocation8 + $0x12c0] sm:$0xff]
    %v3417 = vld [vmem:[#allocation8 + $0x12c8] sm:$0xff]
    %v3418 = vld [vmem:[#allocation8 + $0x12d0] sm:$0xff]
    %v3419 = vld [vmem:[#allocation8 + $0x12d8] sm:$0xff]
    %v3420 = vld [vmem:[#allocation8 + $0x12e0] sm:$0xff]
    %v3421 = vld [vmem:[#allocation8 + $0x12e8] sm:$0xff]
    %v3422 = vld [vmem:[#allocation8 + $0x12f0] sm:$0xff]
    %v3423 = vld [vmem:[#allocation8 + $0x12f8] sm:$0xff]
    %v3424 = vld [vmem:[#allocation8 + $0x1300] sm:$0xff]
    %v3425 = vld [vmem:[#allocation8 + $0x1308] sm:$0xff]
    %v3426 = vld [vmem:[#allocation8 + $0x1310] sm:$0xff]
    %v3427 = vld [vmem:[#allocation8 + $0x1318] sm:$0xff]
    %v3428 = vld [vmem:[#allocation8 + $0x1320] sm:$0xff]
    %v3429 = vld [vmem:[#allocation8 + $0x1328] sm:$0xff]
    %v3430 = vld [vmem:[#allocation8 + $0x1330] sm:$0xff]
    %v3431 = vld [vmem:[#allocation8 + $0x1338] sm:$0xff]
    %v3432 = vld [vmem:[#allocation8 + $0x1340] sm:$0xff]
    %v3433 = vld [vmem:[#allocation8 + $0x1348] sm:$0xff]
    %v3434 = vld [vmem:[#allocation8 + $0x1350] sm:$0xff]
    %v3435 = vld [vmem:[#allocation8 + $0x1358] sm:$0xff]
    %v3436 = vld [vmem:[#allocation8 + $0x1360] sm:$0xff]
    %v3437 = vld [vmem:[#allocation8 + $0x1368] sm:$0xff]
    %v3438 = vld [vmem:[#allocation8 + $0x1370] sm:$0xff]
    %v3439 = vld [vmem:[#allocation8 + $0x1378] sm:$0xff]
    %v3440 = vld [vmem:[#allocation8 + $0x1380] sm:$0xff]
    %v3441 = vld [vmem:[#allocation8 + $0x1388] sm:$0xff]
    %v3442 = vld [vmem:[#allocation8 + $0x1390] sm:$0xff]
    %v3443 = vld [vmem:[#allocation8 + $0x1398] sm:$0xff]
    %v3444 = vld [vmem:[#allocation8 + $0x13a0] sm:$0xff]
    %v3445 = vld [vmem:[#allocation8 + $0x13a8] sm:$0xff]
    %v3446 = vld [vmem:[#allocation8 + $0x13b0] sm:$0xff]
    %v3447 = vld [vmem:[#allocation8 + $0x13b8] sm:$0xff]
    %v3448 = vld [vmem:[#allocation8 + $0x13c0] sm:$0xff]
    %v3449 = vld [vmem:[#allocation8 + $0x13c8] sm:$0xff]
    %v3450 = vld [vmem:[#allocation8 + $0x13d0] sm:$0xff]
    %v3451 = vld [vmem:[#allocation8 + $0x13d8] sm:$0xff]
    %v3452 = vld [vmem:[#allocation8 + $0x13e0] sm:$0xff]
    %v3453 = vld [vmem:[#allocation8 + $0x13e8] sm:$0xff]
    %v3454 = vld [vmem:[#allocation8 + $0x13f0] sm:$0xff]
    %v3455 = vld [vmem:[#allocation8 + $0x13f8] sm:$0xff]
    %v3456 = vld [vmem:[#allocation8 + $0x1400] sm:$0xff]
    %v3457 = vld [vmem:[#allocation8 + $0x1408] sm:$0xff]
    %v3458 = vld [vmem:[#allocation8 + $0x1410] sm:$0xff]
    %v3459 = vld [vmem:[#allocation8 + $0x1418] sm:$0xff]
    %v3460 = vld [vmem:[#allocation8 + $0x1420] sm:$0xff]
    %v3461 = vld [vmem:[#allocation8 + $0x1428] sm:$0xff]
    %v3462 = vld [vmem:[#allocation8 + $0x1430] sm:$0xff]
    %v3463 = vld [vmem:[#allocation8 + $0x1438] sm:$0xff]
    %v3464 = vld [vmem:[#allocation8 + $0x1440] sm:$0xff]
    %v3465 = vld [vmem:[#allocation8 + $0x1448] sm:$0xff]
    %v3466 = vld [vmem:[#allocation8 + $0x1450] sm:$0xff]
    %v3467 = vld [vmem:[#allocation8 + $0x1458] sm:$0xff]
    %v3468 = vld [vmem:[#allocation8 + $0x1460] sm:$0xff]
    %v3469 = vld [vmem:[#allocation8 + $0x1468] sm:$0xff]
    %v3470 = vld [vmem:[#allocation8 + $0x1470] sm:$0xff]
    %v3471 = vld [vmem:[#allocation8 + $0x1478] sm:$0xff]
    %v3472 = vld [vmem:[#allocation8 + $0x1480] sm:$0xff]
    %v3473 = vld [vmem:[#allocation8 + $0x1488] sm:$0xff]
    %v3474 = vld [vmem:[#allocation8 + $0x1490] sm:$0xff]
    %v3475 = vld [vmem:[#allocation8 + $0x1498] sm:$0xff]
    %v3476 = vld [vmem:[#allocation8 + $0x14a0] sm:$0xff]
    %v3477 = vld [vmem:[#allocation8 + $0x14a8] sm:$0xff]
    %v3478 = vld [vmem:[#allocation8 + $0x14b0] sm:$0xff]
    %v3479 = vld [vmem:[#allocation8 + $0x14b8] sm:$0xff]
    %v3480 = vld [vmem:[#allocation8 + $0x14c0] sm:$0xff]
    %v3481 = vld [vmem:[#allocation8 + $0x14c8] sm:$0xff]
    %v3482 = vld [vmem:[#allocation8 + $0x14d0] sm:$0xff]
    %v3483 = vld [vmem:[#allocation8 + $0x14d8] sm:$0xff]
    %v3484 = vld [vmem:[#allocation8 + $0x14e0] sm:$0xff]
    %v3485 = vld [vmem:[#allocation8 + $0x14e8] sm:$0xff]
    %v3486 = vld [vmem:[#allocation8 + $0x14f0] sm:$0xff]
    %v3487 = vld [vmem:[#allocation8 + $0x14f8] sm:$0xff]
    %v3488 = vld [vmem:[#allocation8 + $0x1500] sm:$0xff]
    %v3489 = vld [vmem:[#allocation8 + $0x1508] sm:$0xff]
    %v3490 = vld [vmem:[#allocation8 + $0x1510] sm:$0xff]
    %v3491 = vld [vmem:[#allocation8 + $0x1518] sm:$0xff]
    %v3492 = vld [vmem:[#allocation8 + $0x1520] sm:$0xff]
    %v3493 = vld [vmem:[#allocation8 + $0x1528] sm:$0xff]
    %v3494 = vld [vmem:[#allocation8 + $0x1530] sm:$0xff]
    %v3495 = vld [vmem:[#allocation8 + $0x1538] sm:$0xff]
    %v3496 = vld [vmem:[#allocation8 + $0x1540] sm:$0xff]
    %v3497 = vld [vmem:[#allocation8 + $0x1548] sm:$0xff]
    %v3498 = vld [vmem:[#allocation8 + $0x1550] sm:$0xff]
    %v3499 = vld [vmem:[#allocation8 + $0x1558] sm:$0xff]
    %v3500 = vld [vmem:[#allocation8 + $0x1560] sm:$0xff]
    %v3501 = vld [vmem:[#allocation8 + $0x1568] sm:$0xff]
    %v3502 = vld [vmem:[#allocation8 + $0x1570] sm:$0xff]
    %v3503 = vld [vmem:[#allocation8 + $0x1578] sm:$0xff]
    %v3504 = vld [vmem:[#allocation8 + $0x1580] sm:$0xff]
    %v3505 = vld [vmem:[#allocation8 + $0x1588] sm:$0xff]
    %v3506 = vld [vmem:[#allocation8 + $0x1590] sm:$0xff]
    %v3507 = vld [vmem:[#allocation8 + $0x1598] sm:$0xff]
    %v3508 = vld [vmem:[#allocation8 + $0x15a0] sm:$0xff]
    %v3509 = vld [vmem:[#allocation8 + $0x15a8] sm:$0xff]
    %v3510 = vld [vmem:[#allocation8 + $0x15b0] sm:$0xff]
    %v3511 = vld [vmem:[#allocation8 + $0x15b8] sm:$0xff]
    %v3512 = vld [vmem:[#allocation8 + $0x15c0] sm:$0xff]
    %v3513 = vld [vmem:[#allocation8 + $0x15c8] sm:$0xff]
    %v3514 = vld [vmem:[#allocation8 + $0x15d0] sm:$0xff]
    %v3515 = vld [vmem:[#allocation8 + $0x15d8] sm:$0xff]
    %v3516 = vld [vmem:[#allocation8 + $0x15e0] sm:$0xff]
    %v3517 = vld [vmem:[#allocation8 + $0x15e8] sm:$0xff]
    %v3518 = vld [vmem:[#allocation8 + $0x15f0] sm:$0xff]
    %v3519 = vld [vmem:[#allocation8 + $0x15f8] sm:$0xff]
    %v3520 = vld [vmem:[#allocation8 + $0x1600] sm:$0xff]
    %v3521 = vld [vmem:[#allocation8 + $0x1608] sm:$0xff]
    %v3522 = vld [vmem:[#allocation8 + $0x1610] sm:$0xff]
    %v3523 = vld [vmem:[#allocation8 + $0x1618] sm:$0xff]
    %v3524 = vld [vmem:[#allocation8 + $0x1620] sm:$0xff]
    %v3525 = vld [vmem:[#allocation8 + $0x1628] sm:$0xff]
    %v3526 = vld [vmem:[#allocation8 + $0x1630] sm:$0xff]
    %v3527 = vld [vmem:[#allocation8 + $0x1638] sm:$0xff]
    %v3528 = vld [vmem:[#allocation8 + $0x1640] sm:$0xff]
    %v3529 = vld [vmem:[#allocation8 + $0x1648] sm:$0xff]
    %v3530 = vld [vmem:[#allocation8 + $0x1650] sm:$0xff]
    %v3531 = vld [vmem:[#allocation8 + $0x1658] sm:$0xff]
    %v3532 = vld [vmem:[#allocation8 + $0x1660] sm:$0xff]
    %v3533 = vld [vmem:[#allocation8 + $0x1668] sm:$0xff]
    %v3534 = vld [vmem:[#allocation8 + $0x1670] sm:$0xff]
    %v3535 = vld [vmem:[#allocation8 + $0x1678] sm:$0xff]
    %v3536 = vld [vmem:[#allocation8 + $0x1680] sm:$0xff]
    %v3537 = vld [vmem:[#allocation8 + $0x1688] sm:$0xff]
    %v3538 = vld [vmem:[#allocation8 + $0x1690] sm:$0xff]
    %v3539 = vld [vmem:[#allocation8 + $0x1698] sm:$0xff]
    %v3540 = vld [vmem:[#allocation8 + $0x16a0] sm:$0xff]
    %v3541 = vld [vmem:[#allocation8 + $0x16a8] sm:$0xff]
    %v3542 = vld [vmem:[#allocation8 + $0x16b0] sm:$0xff]
    %v3543 = vld [vmem:[#allocation8 + $0x16b8] sm:$0xff]
    %v3544 = vld [vmem:[#allocation8 + $0x16c0] sm:$0xff]
    %v3545 = vld [vmem:[#allocation8 + $0x16c8] sm:$0xff]
    %v3546 = vld [vmem:[#allocation8 + $0x16d0] sm:$0xff]
    %v3547 = vld [vmem:[#allocation8 + $0x16d8] sm:$0xff]
    %v3548 = vld [vmem:[#allocation8 + $0x16e0] sm:$0xff]
    %v3549 = vld [vmem:[#allocation8 + $0x16e8] sm:$0xff]
    %v3550 = vld [vmem:[#allocation8 + $0x16f0] sm:$0xff]
    %v3551 = vld [vmem:[#allocation8 + $0x16f8] sm:$0xff]
    %v3552 = vld [vmem:[#allocation8 + $0x1700] sm:$0xff]
    %v3553 = vld [vmem:[#allocation8 + $0x1708] sm:$0xff]
    %v3554 = vld [vmem:[#allocation8 + $0x1710] sm:$0xff]
    %v3555 = vld [vmem:[#allocation8 + $0x1718] sm:$0xff]
    %v3556 = vld [vmem:[#allocation8 + $0x1720] sm:$0xff]
    %v3557 = vld [vmem:[#allocation8 + $0x1728] sm:$0xff]
    %v3558 = vld [vmem:[#allocation8 + $0x1730] sm:$0xff]
    %v3559 = vld [vmem:[#allocation8 + $0x1738] sm:$0xff]
    %v3560 = vld [vmem:[#allocation8 + $0x1740] sm:$0xff]
    %v3561 = vld [vmem:[#allocation8 + $0x1748] sm:$0xff]
    %v3562 = vld [vmem:[#allocation8 + $0x1750] sm:$0xff]
    %v3563 = vld [vmem:[#allocation8 + $0x1758] sm:$0xff]
    %v3564 = vld [vmem:[#allocation8 + $0x1760] sm:$0xff]
    %v3565 = vld [vmem:[#allocation8 + $0x1768] sm:$0xff]
    %v3566 = vld [vmem:[#allocation8 + $0x1770] sm:$0xff]
    %v3567 = vld [vmem:[#allocation8 + $0x1778] sm:$0xff]
    %v3568 = vld [vmem:[#allocation8 + $0x1780] sm:$0xff]
    %v3569 = vld [vmem:[#allocation8 + $0x1788] sm:$0xff]
    %v3570 = vld [vmem:[#allocation8 + $0x1790] sm:$0xff]
    %v3571 = vld [vmem:[#allocation8 + $0x1798] sm:$0xff]
    %v3572 = vld [vmem:[#allocation8 + $0x17a0] sm:$0xff]
    %v3573 = vld [vmem:[#allocation8 + $0x17a8] sm:$0xff]
    %v3574 = vld [vmem:[#allocation8 + $0x17b0] sm:$0xff]
    %v3575 = vld [vmem:[#allocation8 + $0x17b8] sm:$0xff]
    %v3576 = vld [vmem:[#allocation8 + $0x17c0] sm:$0xff]
    %v3577 = vld [vmem:[#allocation8 + $0x17c8] sm:$0xff]
    %v3578 = vld [vmem:[#allocation8 + $0x17d0] sm:$0xff]
    %v3579 = vld [vmem:[#allocation8 + $0x17d8] sm:$0xff]
    %v3580 = vld [vmem:[#allocation8 + $0x17e0] sm:$0xff]
    %v3581 = vld [vmem:[#allocation8 + $0x17e8] sm:$0xff]
    %v3582 = vld [vmem:[#allocation8 + $0x17f0] sm:$0xff]
    %v3583 = vld [vmem:[#allocation8 + $0x17f8] sm:$0xff]
    %v3584 = vld [vmem:[#allocation8 + $0x1800] sm:$0xff]
    %v3585 = vld [vmem:[#allocation8 + $0x1808] sm:$0xff]
    %v3586 = vld [vmem:[#allocation8 + $0x1810] sm:$0xff]
    %v3587 = vld [vmem:[#allocation8 + $0x1818] sm:$0xff]
    %v3588 = vld [vmem:[#allocation8 + $0x1820] sm:$0xff]
    %v3589 = vld [vmem:[#allocation8 + $0x1828] sm:$0xff]
    %v3590 = vld [vmem:[#allocation8 + $0x1830] sm:$0xff]
    %v3591 = vld [vmem:[#allocation8 + $0x1838] sm:$0xff]
    %v3592 = vld [vmem:[#allocation8 + $0x1840] sm:$0xff]
    %v3593 = vld [vmem:[#allocation8 + $0x1848] sm:$0xff]
    %v3594 = vld [vmem:[#allocation8 + $0x1850] sm:$0xff]
    %v3595 = vld [vmem:[#allocation8 + $0x1858] sm:$0xff]
    %v3596 = vld [vmem:[#allocation8 + $0x1860] sm:$0xff]
    %v3597 = vld [vmem:[#allocation8 + $0x1868] sm:$0xff]
    %v3598 = vld [vmem:[#allocation8 + $0x1870] sm:$0xff]
    %v3599 = vld [vmem:[#allocation8 + $0x1878] sm:$0xff]
    %v3600 = vld [vmem:[#allocation8 + $0x1880] sm:$0xff]
    %v3601 = vld [vmem:[#allocation8 + $0x1888] sm:$0xff]
    %v3602 = vld [vmem:[#allocation8 + $0x1890] sm:$0xff]
    %v3603 = vld [vmem:[#allocation8 + $0x1898] sm:$0xff]
    %v3604 = vld [vmem:[#allocation8 + $0x18a0] sm:$0xff]
    %v3605 = vld [vmem:[#allocation8 + $0x18a8] sm:$0xff]
    %v3606 = vld [vmem:[#allocation8 + $0x18b0] sm:$0xff]
    %v3607 = vld [vmem:[#allocation8 + $0x18b8] sm:$0xff]
    %v3608 = vld [vmem:[#allocation8 + $0x18c0] sm:$0xff]
    %v3609 = vld [vmem:[#allocation8 + $0x18c8] sm:$0xff]
    %v3610 = vld [vmem:[#allocation8 + $0x18d0] sm:$0xff]
    %v3611 = vld [vmem:[#allocation8 + $0x18d8] sm:$0xff]
    %v3612 = vld [vmem:[#allocation8 + $0x18e0] sm:$0xff]
    %v3613 = vld [vmem:[#allocation8 + $0x18e8] sm:$0xff]
    %v3614 = vld [vmem:[#allocation8 + $0x18f0] sm:$0xff]
    %v3615 = vld [vmem:[#allocation8 + $0x18f8] sm:$0xff]
    %v3616 = vld [vmem:[#allocation8 + $0x1900] sm:$0xff]
    %v3617 = vld [vmem:[#allocation8 + $0x1908] sm:$0xff]
    %v3618 = vld [vmem:[#allocation8 + $0x1910] sm:$0xff]
    %v3619 = vld [vmem:[#allocation8 + $0x1918] sm:$0xff]
    %v3620 = vld [vmem:[#allocation8 + $0x1920] sm:$0xff]
    %v3621 = vld [vmem:[#allocation8 + $0x1928] sm:$0xff]
    %v3622 = vld [vmem:[#allocation8 + $0x1930] sm:$0xff]
    %v3623 = vld [vmem:[#allocation8 + $0x1938] sm:$0xff]
    %v3624 = vld [vmem:[#allocation8 + $0x1940] sm:$0xff]
    %v3625 = vld [vmem:[#allocation8 + $0x1948] sm:$0xff]
    %v3626 = vld [vmem:[#allocation8 + $0x1950] sm:$0xff]
    %v3627 = vld [vmem:[#allocation8 + $0x1958] sm:$0xff]
    %v3628 = vld [vmem:[#allocation8 + $0x1960] sm:$0xff]
    %v3629 = vld [vmem:[#allocation8 + $0x1968] sm:$0xff]
    %v3630 = vld [vmem:[#allocation8 + $0x1970] sm:$0xff]
    %v3631 = vld [vmem:[#allocation8 + $0x1978] sm:$0xff]
    %v3632 = vld [vmem:[#allocation8 + $0x1980] sm:$0xff]
    %v3633 = vld [vmem:[#allocation8 + $0x1988] sm:$0xff]
    %v3634 = vld [vmem:[#allocation8 + $0x1990] sm:$0xff]
    %v3635 = vld [vmem:[#allocation8 + $0x1998] sm:$0xff]
    %v3636 = vld [vmem:[#allocation8 + $0x19a0] sm:$0xff]
    %v3637 = vld [vmem:[#allocation8 + $0x19a8] sm:$0xff]
    %v3638 = vld [vmem:[#allocation8 + $0x19b0] sm:$0xff]
    %v3639 = vld [vmem:[#allocation8 + $0x19b8] sm:$0xff]
    %v3640 = vld [vmem:[#allocation8 + $0x19c0] sm:$0xff]
    %v3641 = vld [vmem:[#allocation8 + $0x19c8] sm:$0xff]
    %v3642 = vld [vmem:[#allocation8 + $0x19d0] sm:$0xff]
    %v3643 = vld [vmem:[#allocation8 + $0x19d8] sm:$0xff]
    %v3644 = vld [vmem:[#allocation8 + $0x19e0] sm:$0xff]
    %v3645 = vld [vmem:[#allocation8 + $0x19e8] sm:$0xff]
    %v3646 = vld [vmem:[#allocation8 + $0x19f0] sm:$0xff]
    %v3647 = vld [vmem:[#allocation8 + $0x19f8] sm:$0xff]
    %v3648 = vld [vmem:[#allocation8 + $0x1a00] sm:$0xff]
    %v3649 = vld [vmem:[#allocation8 + $0x1a08] sm:$0xff]
    %v3650 = vld [vmem:[#allocation8 + $0x1a10] sm:$0xff]
    %v3651 = vld [vmem:[#allocation8 + $0x1a18] sm:$0xff]
    %v3652 = vld [vmem:[#allocation8 + $0x1a20] sm:$0xff]
    %v3653 = vld [vmem:[#allocation8 + $0x1a28] sm:$0xff]
    %v3654 = vld [vmem:[#allocation8 + $0x1a30] sm:$0xff]
    %v3655 = vld [vmem:[#allocation8 + $0x1a38] sm:$0xff]
    %v3656 = vld [vmem:[#allocation8 + $0x1a40] sm:$0xff]
    %v3657 = vld [vmem:[#allocation8 + $0x1a48] sm:$0xff]
    %v3658 = vld [vmem:[#allocation8 + $0x1a50] sm:$0xff]
    %v3659 = vld [vmem:[#allocation8 + $0x1a58] sm:$0xff]
    %v3660 = vld [vmem:[#allocation8 + $0x1a60] sm:$0xff]
    %v3661 = vld [vmem:[#allocation8 + $0x1a68] sm:$0xff]
    %v3662 = vld [vmem:[#allocation8 + $0x1a70] sm:$0xff]
    %v3663 = vld [vmem:[#allocation8 + $0x1a78] sm:$0xff]
    %v3664 = vld [vmem:[#allocation8 + $0x1a80] sm:$0xff]
    %v3665 = vld [vmem:[#allocation8 + $0x1a88] sm:$0xff]
    %v3666 = vld [vmem:[#allocation8 + $0x1a90] sm:$0xff]
    %v3667 = vld [vmem:[#allocation8 + $0x1a98] sm:$0xff]
    %v3668 = vld [vmem:[#allocation8 + $0x1aa0] sm:$0xff]
    %v3669 = vld [vmem:[#allocation8 + $0x1aa8] sm:$0xff]
    %v3670 = vld [vmem:[#allocation8 + $0x1ab0] sm:$0xff]
    %v3671 = vld [vmem:[#allocation8 + $0x1ab8] sm:$0xff]
    %v3672 = vld [vmem:[#allocation8 + $0x1ac0] sm:$0xff]
    %v3673 = vld [vmem:[#allocation8 + $0x1ac8] sm:$0xff]
    %v3674 = vld [vmem:[#allocation8 + $0x1ad0] sm:$0xff]
    %v3675 = vld [vmem:[#allocation8 + $0x1ad8] sm:$0xff]
    %v3676 = vld [vmem:[#allocation8 + $0x1ae0] sm:$0xff]
    %v3677 = vld [vmem:[#allocation8 + $0x1ae8] sm:$0xff]
    %v3678 = vld [vmem:[#allocation8 + $0x1af0] sm:$0xff]
    %v3679 = vld [vmem:[#allocation8 + $0x1af8] sm:$0xff]
    %v3680 = vld [vmem:[#allocation8 + $0x1b00] sm:$0xff]
    %v3681 = vld [vmem:[#allocation8 + $0x1b08] sm:$0xff]
    %v3682 = vld [vmem:[#allocation8 + $0x1b10] sm:$0xff]
    %v3683 = vld [vmem:[#allocation8 + $0x1b18] sm:$0xff]
    %v3684 = vld [vmem:[#allocation8 + $0x1b20] sm:$0xff]
    %v3685 = vld [vmem:[#allocation8 + $0x1b28] sm:$0xff]
    %v3686 = vld [vmem:[#allocation8 + $0x1b30] sm:$0xff]
    %v3687 = vld [vmem:[#allocation8 + $0x1b38] sm:$0xff]
    %v3688 = vld [vmem:[#allocation8 + $0x1b40] sm:$0xff]
    %v3689 = vld [vmem:[#allocation8 + $0x1b48] sm:$0xff]
    %v3690 = vld [vmem:[#allocation8 + $0x1b50] sm:$0xff]
    %v3691 = vld [vmem:[#allocation8 + $0x1b58] sm:$0xff]
    %v3692 = vld [vmem:[#allocation8 + $0x1b60] sm:$0xff]
    %v3693 = vld [vmem:[#allocation8 + $0x1b68] sm:$0xff]
    %v3694 = vld [vmem:[#allocation8 + $0x1b70] sm:$0xff]
    %v3695 = vld [vmem:[#allocation8 + $0x1b78] sm:$0xff]
    %v3696 = vld [vmem:[#allocation8 + $0x1b80] sm:$0xff]
    %v3697 = vld [vmem:[#allocation8 + $0x1b88] sm:$0xff]
    %v3698 = vld [vmem:[#allocation8 + $0x1b90] sm:$0xff]
    %v3699 = vld [vmem:[#allocation8 + $0x1b98] sm:$0xff]
    %v3700 = vld [vmem:[#allocation8 + $0x1ba0] sm:$0xff]
    %v3701 = vld [vmem:[#allocation8 + $0x1ba8] sm:$0xff]
    %v3702 = vld [vmem:[#allocation8 + $0x1bb0] sm:$0xff]
    %v3703 = vld [vmem:[#allocation8 + $0x1bb8] sm:$0xff]
    %v3704 = vld [vmem:[#allocation8 + $0x1bc0] sm:$0xff]
    %v3705 = vld [vmem:[#allocation8 + $0x1bc8] sm:$0xff]
    %v3706 = vld [vmem:[#allocation8 + $0x1bd0] sm:$0xff]
    %v3707 = vld [vmem:[#allocation8 + $0x1bd8] sm:$0xff]
    %v3708 = vld [vmem:[#allocation8 + $0x1be0] sm:$0xff]
    %v3709 = vld [vmem:[#allocation8 + $0x1be8] sm:$0xff]
    %v3710 = vld [vmem:[#allocation8 + $0x1bf0] sm:$0xff]
    %v3711 = vld [vmem:[#allocation8 + $0x1bf8] sm:$0xff]
    %v3712 = vld [vmem:[#allocation8 + $0x1c00] sm:$0xff]
    %v3713 = vld [vmem:[#allocation8 + $0x1c08] sm:$0xff]
    %v3714 = vld [vmem:[#allocation8 + $0x1c10] sm:$0xff]
    %v3715 = vld [vmem:[#allocation8 + $0x1c18] sm:$0xff]
    %v3716 = vld [vmem:[#allocation8 + $0x1c20] sm:$0xff]
    %v3717 = vld [vmem:[#allocation8 + $0x1c28] sm:$0xff]
    %v3718 = vld [vmem:[#allocation8 + $0x1c30] sm:$0xff]
    %v3719 = vld [vmem:[#allocation8 + $0x1c38] sm:$0xff]
    %v3720 = vld [vmem:[#allocation8 + $0x1c40] sm:$0xff]
    %v3721 = vld [vmem:[#allocation8 + $0x1c48] sm:$0xff]
    %v3722 = vld [vmem:[#allocation8 + $0x1c50] sm:$0xff]
    %v3723 = vld [vmem:[#allocation8 + $0x1c58] sm:$0xff]
    %v3724 = vld [vmem:[#allocation8 + $0x1c60] sm:$0xff]
    %v3725 = vld [vmem:[#allocation8 + $0x1c68] sm:$0xff]
    %v3726 = vld [vmem:[#allocation8 + $0x1c70] sm:$0xff]
    %v3727 = vld [vmem:[#allocation8 + $0x1c78] sm:$0xff]
    %v3728 = vld [vmem:[#allocation8 + $0x1c80] sm:$0xff]
    %v3729 = vld [vmem:[#allocation8 + $0x1c88] sm:$0xff]
    %v3730 = vld [vmem:[#allocation8 + $0x1c90] sm:$0xff]
    %v3731 = vld [vmem:[#allocation8 + $0x1c98] sm:$0xff]
    %v3732 = vld [vmem:[#allocation8 + $0x1ca0] sm:$0xff]
    %v3733 = vld [vmem:[#allocation8 + $0x1ca8] sm:$0xff]
    %v3734 = vld [vmem:[#allocation8 + $0x1cb0] sm:$0xff]
    %v3735 = vld [vmem:[#allocation8 + $0x1cb8] sm:$0xff]
    %v3736 = vld [vmem:[#allocation8 + $0x1cc0] sm:$0xff]
    %v3737 = vld [vmem:[#allocation8 + $0x1cc8] sm:$0xff]
    %v3738 = vld [vmem:[#allocation8 + $0x1cd0] sm:$0xff]
    %v3739 = vld [vmem:[#allocation8 + $0x1cd8] sm:$0xff]
    %v3740 = vld [vmem:[#allocation8 + $0x1ce0] sm:$0xff]
    %v3741 = vld [vmem:[#allocation8 + $0x1ce8] sm:$0xff]
    %v3742 = vld [vmem:[#allocation8 + $0x1cf0] sm:$0xff]
    %v3743 = vld [vmem:[#allocation8 + $0x1cf8] sm:$0xff]
    %v3744 = vld [vmem:[#allocation8 + $0x1d00] sm:$0xff]
    %v3745 = vld [vmem:[#allocation8 + $0x1d08] sm:$0xff]
    %v3746 = vld [vmem:[#allocation8 + $0x1d10] sm:$0xff]
    %v3747 = vld [vmem:[#allocation8 + $0x1d18] sm:$0xff]
    %v3748 = vld [vmem:[#allocation8 + $0x1d20] sm:$0xff]
    %v3749 = vld [vmem:[#allocation8 + $0x1d28] sm:$0xff]
    %v3750 = vld [vmem:[#allocation8 + $0x1d30] sm:$0xff]
    %v3751 = vld [vmem:[#allocation8 + $0x1d38] sm:$0xff]
    %v3752 = vld [vmem:[#allocation8 + $0x1d40] sm:$0xff]
    %v3753 = vld [vmem:[#allocation8 + $0x1d48] sm:$0xff]
    %v3754 = vld [vmem:[#allocation8 + $0x1d50] sm:$0xff]
    %v3755 = vld [vmem:[#allocation8 + $0x1d58] sm:$0xff]
    %v3756 = vld [vmem:[#allocation8 + $0x1d60] sm:$0xff]
    %v3757 = vld [vmem:[#allocation8 + $0x1d68] sm:$0xff]
    %v3758 = vld [vmem:[#allocation8 + $0x1d70] sm:$0xff]
    %v3759 = vld [vmem:[#allocation8 + $0x1d78] sm:$0xff]
    %v3760 = vld [vmem:[#allocation8 + $0x1d80] sm:$0xff]
    %v3761 = vld [vmem:[#allocation8 + $0x1d88] sm:$0xff]
    %v3762 = vld [vmem:[#allocation8 + $0x1d90] sm:$0xff]
    %v3763 = vld [vmem:[#allocation8 + $0x1d98] sm:$0xff]
    %v3764 = vld [vmem:[#allocation8 + $0x1da0] sm:$0xff]
    %v3765 = vld [vmem:[#allocation8 + $0x1da8] sm:$0xff]
    %v3766 = vld [vmem:[#allocation8 + $0x1db0] sm:$0xff]
    %v3767 = vld [vmem:[#allocation8 + $0x1db8] sm:$0xff]
    %v3768 = vld [vmem:[#allocation8 + $0x1dc0] sm:$0xff]
    %v3769 = vld [vmem:[#allocation8 + $0x1dc8] sm:$0xff]
    %v3770 = vld [vmem:[#allocation8 + $0x1dd0] sm:$0xff]
    %v3771 = vld [vmem:[#allocation8 + $0x1dd8] sm:$0xff]
    %v3772 = vld [vmem:[#allocation8 + $0x1de0] sm:$0xff]
    %v3773 = vld [vmem:[#allocation8 + $0x1de8] sm:$0xff]
    %v3774 = vld [vmem:[#allocation8 + $0x1df0] sm:$0xff]
    %v3775 = vld [vmem:[#allocation8 + $0x1df8] sm:$0xff]
    %v3776 = vld [vmem:[#allocation8 + $0x1e00] sm:$0xff]
    %v3777 = vld [vmem:[#allocation8 + $0x1e08] sm:$0xff]
    %v3778 = vld [vmem:[#allocation8 + $0x1e10] sm:$0xff]
    %v3779 = vld [vmem:[#allocation8 + $0x1e18] sm:$0xff]
    %v3780 = vld [vmem:[#allocation8 + $0x1e20] sm:$0xff]
    %v3781 = vld [vmem:[#allocation8 + $0x1e28] sm:$0xff]
    %v3782 = vld [vmem:[#allocation8 + $0x1e30] sm:$0xff]
    %v3783 = vld [vmem:[#allocation8 + $0x1e38] sm:$0xff]
    %v3784 = vld [vmem:[#allocation8 + $0x1e40] sm:$0xff]
    %v3785 = vld [vmem:[#allocation8 + $0x1e48] sm:$0xff]
    %v3786 = vld [vmem:[#allocation8 + $0x1e50] sm:$0xff]
    %v3787 = vld [vmem:[#allocation8 + $0x1e58] sm:$0xff]
    %v3788 = vld [vmem:[#allocation8 + $0x1e60] sm:$0xff]
    %v3789 = vld [vmem:[#allocation8 + $0x1e68] sm:$0xff]
    %v3790 = vld [vmem:[#allocation8 + $0x1e70] sm:$0xff]
    %v3791 = vld [vmem:[#allocation8 + $0x1e78] sm:$0xff]
    %v3792 = vld [vmem:[#allocation8 + $0x1e80] sm:$0xff]
    %v3793 = vld [vmem:[#allocation8 + $0x1e88] sm:$0xff]
    %v3794 = vld [vmem:[#allocation8 + $0x1e90] sm:$0xff]
    %v3795 = vld [vmem:[#allocation8 + $0x1e98] sm:$0xff]
    %v3796 = vld [vmem:[#allocation8 + $0x1ea0] sm:$0xff]
    %v3797 = vld [vmem:[#allocation8 + $0x1ea8] sm:$0xff]
    %v3798 = vld [vmem:[#allocation8 + $0x1eb0] sm:$0xff]
    %v3799 = vld [vmem:[#allocation8 + $0x1eb8] sm:$0xff]
    %v3800 = vld [vmem:[#allocation8 + $0x1ec0] sm:$0xff]
    %v3801 = vld [vmem:[#allocation8 + $0x1ec8] sm:$0xff]
    %v3802 = vld [vmem:[#allocation8 + $0x1ed0] sm:$0xff]
    %v3803 = vld [vmem:[#allocation8 + $0x1ed8] sm:$0xff]
    %v3804 = vld [vmem:[#allocation8 + $0x1ee0] sm:$0xff]
    %v3805 = vld [vmem:[#allocation8 + $0x1ee8] sm:$0xff]
    %v3806 = vld [vmem:[#allocation8 + $0x1ef0] sm:$0xff]
    %v3807 = vld [vmem:[#allocation8 + $0x1ef8] sm:$0xff]
    %v3808 = vld [vmem:[#allocation8 + $0x1f00] sm:$0xff]
    %v3809 = vld [vmem:[#allocation8 + $0x1f08] sm:$0xff]
    %v3810 = vld [vmem:[#allocation8 + $0x1f10] sm:$0xff]
    %v3811 = vld [vmem:[#allocation8 + $0x1f18] sm:$0xff]
    %v3812 = vld [vmem:[#allocation8 + $0x1f20] sm:$0xff]
    %v3813 = vld [vmem:[#allocation8 + $0x1f28] sm:$0xff]
    %v3814 = vld [vmem:[#allocation8 + $0x1f30] sm:$0xff]
    %v3815 = vld [vmem:[#allocation8 + $0x1f38] sm:$0xff]
    %v3816 = vld [vmem:[#allocation8 + $0x1f40] sm:$0xff]
    %v3817 = vld [vmem:[#allocation8 + $0x1f48] sm:$0xff]
    %v3818 = vld [vmem:[#allocation8 + $0x1f50] sm:$0xff]
    %v3819 = vld [vmem:[#allocation8 + $0x1f58] sm:$0xff]
    %v3820 = vld [vmem:[#allocation8 + $0x1f60] sm:$0xff]
    %v3821 = vld [vmem:[#allocation8 + $0x1f68] sm:$0xff]
    %v3822 = vld [vmem:[#allocation8 + $0x1f70] sm:$0xff]
    %v3823 = vld [vmem:[#allocation8 + $0x1f78] sm:$0xff]
    %v3824 = vld [vmem:[#allocation8 + $0x1f80] sm:$0xff]
    %v3825 = vld [vmem:[#allocation8 + $0x1f88] sm:$0xff]
    %v3826 = vld [vmem:[#allocation8 + $0x1f90] sm:$0xff]
    %v3827 = vld [vmem:[#allocation8 + $0x1f98] sm:$0xff]
    %v3828 = vld [vmem:[#allocation8 + $0x1fa0] sm:$0xff]
    %v3829 = vld [vmem:[#allocation8 + $0x1fa8] sm:$0xff]
    %v3830 = vld [vmem:[#allocation8 + $0x1fb0] sm:$0xff]
    %v3831 = vld [vmem:[#allocation8 + $0x1fb8] sm:$0xff]
    %v3832 = vld [vmem:[#allocation8 + $0x1fc0] sm:$0xff]
    %v3833 = vld [vmem:[#allocation8 + $0x1fc8] sm:$0xff]
    %v3834 = vld [vmem:[#allocation8 + $0x1fd0] sm:$0xff]
    %v3835 = vld [vmem:[#allocation8 + $0x1fd8] sm:$0xff]
    %v3836 = vld [vmem:[#allocation8 + $0x1fe0] sm:$0xff]
    %v3837 = vld [vmem:[#allocation8 + $0x1fe8] sm:$0xff]
    %v3838 = vld [vmem:[#allocation8 + $0x1ff0] sm:$0xff]
    %v3839 = vld [vmem:[#allocation8 + $0x1ff8] sm:$0xff]
    %v3840 = vld [vmem:[#allocation10] sm:$0xff]
    %v3841 = vld [vmem:[#allocation10 + $0x8] sm:$0xff]
    %v3844 = vlaneseq
    %v3845 = vshrl.u32 %v3844, 7
    %v3846 = vsub.s32 0, %v3845
    %v3847 = vrot.slane %v3840, %v3846
    %v3848 = vlaneseq
    %v3849 = vshrl.u32 %v3848, 7
    %v3850 = vsub.s32 1, %v3849
    %v3851 = vrot.slane %v3840, %v3850
    %v3852 = vlaneseq
    %v3853 = vshrl.u32 %v3852, 7
    %v3854 = vsub.s32 2, %v3853
    %v3855 = vrot.slane %v3840, %v3854
    %v3856 = vlaneseq
    %v3857 = vshrl.u32 %v3856, 7
    %v3858 = vsub.s32 3, %v3857
    %v3859 = vrot.slane %v3840, %v3858
    %v3860 = vlaneseq
    %v3861 = vshrl.u32 %v3860, 7
    %v3862 = vsub.s32 4, %v3861
    %v3863 = vrot.slane %v3840, %v3862
    %v3864 = vlaneseq
    %v3865 = vshrl.u32 %v3864, 7
    %v3866 = vsub.s32 5, %v3865
    %v3867 = vrot.slane %v3840, %v3866
    %v3868 = vlaneseq
    %v3869 = vshrl.u32 %v3868, 7
    %v3870 = vsub.s32 6, %v3869
    %v3871 = vrot.slane %v3840, %v3870
    %v3872 = vlaneseq
    %v3873 = vshrl.u32 %v3872, 7
    %v3874 = vsub.s32 7, %v3873
    %v3875 = vrot.slane %v3840, %v3874
    %v3876 = vlaneseq
    %v3877 = vshrl.u32 %v3876, 7
    %v3878 = vsub.s32 0, %v3877
    %v3879 = vrot.slane %v3841, %v3878
    %v3880 = vlaneseq
    %v3881 = vshrl.u32 %v3880, 7
    %v3882 = vsub.s32 1, %v3881
    %v3883 = vrot.slane %v3841, %v3882
    %v3884 = vlaneseq
    %v3885 = vshrl.u32 %v3884, 7
    %v3886 = vsub.s32 2, %v3885
    %v3887 = vrot.slane %v3841, %v3886
    %v3888 = vlaneseq
    %v3889 = vshrl.u32 %v3888, 7
    %v3890 = vsub.s32 3, %v3889
    %v3891 = vrot.slane %v3841, %v3890
    %v3892 = vlaneseq
    %v3893 = vshrl.u32 %v3892, 7
    %v3894 = vsub.s32 4, %v3893
    %v3895 = vrot.slane %v3841, %v3894
    %v3896 = vlaneseq
    %v3897 = vshrl.u32 %v3896, 7
    %v3898 = vsub.s32 5, %v3897
    %v3899 = vrot.slane %v3841, %v3898
    %v3900 = vlaneseq
    %v3901 = vshrl.u32 %v3900, 7
    %v3902 = vsub.s32 6, %v3901
    %v3903 = vrot.slane %v3841, %v3902
    %v3904 = vlaneseq
    %v3905 = vshrl.u32 %v3904, 7
    %v3906 = vsub.s32 7, %v3905
    %v3907 = vrot.slane %v3841, %v3906
    %3924 = vmatprep.subr.mxu0 %v3057
    %3925 = vmatpush1.msra.mxu0 %v3056
    %3926 = vmatprep.subr.mxu0 %v3041
    %3927 = vmatpush1.msra.mxu0 %v3040
    %3928 = vmatprep.subr.mxu0 %v3025
    %3929 = vmatpush1.msra.mxu0 %v3024
    %3930 = vmatprep.subr.mxu0 %v3009
    %3931 = vmatpush1.msra.mxu0 %v3008
    %3932 = vmatprep.subr.mxu0 %v2993
    %3933 = vmatpush1.msra.mxu0 %v2992
    %3934 = vmatprep.subr.mxu0 %v2977
    %3935 = vmatpush1.msra.mxu0 %v2976
    %3936 = vmatprep.subr.mxu0 %v2961
    %3937 = vmatpush1.msra.mxu0 %v2960
    %3938 = vmatprep.subr.mxu0 %v2945
    %3939 = vmatpush1.msra.mxu0 %v2944
    %3940 = vmatprep.subr.mxu0 %v2929
    %3941 = vmatpush1.msra.mxu0 %v2928
    %3942 = vmatprep.subr.mxu0 %v2913
    %3943 = vmatpush1.msra.mxu0 %v2912
    %3944 = vmatprep.subr.mxu0 %v2897
    %3945 = vmatpush1.msra.mxu0 %v2896
    %3946 = vmatprep.subr.mxu0 %v2881
    %3947 = vmatpush1.msra.mxu0 %v2880
    %3948 = vmatprep.subr.mxu0 %v2865
    %3949 = vmatpush1.msra.mxu0 %v2864
    %3950 = vmatprep.subr.mxu0 %v2849
    %3951 = vmatpush1.msra.mxu0 %v2848
    %3952 = vmatprep.subr.mxu0 %v2833
    %3953 = vmatpush1.msra.mxu0 %v2832
    %3954 = vmatprep.subr.mxu0 %v2817
    %3955 = vmatpush1.msra.mxu0 %v2816
    %3956 = vmatprep.subr.mxu0 %v3313
    %3957 = vmatpush2.msra.mxu0 %v3312
    %3958 = vmatprep.subr.mxu0 %v3297
    %3959 = vmatpush2.msra.mxu0 %v3296
    %3960 = vmatprep.subr.mxu0 %v3281
    %3961 = vmatpush2.msra.mxu0 %v3280
    %3962 = vmatprep.subr.mxu0 %v3265
    %3963 = vmatpush2.msra.mxu0 %v3264
    %3964 = vmatprep.subr.mxu0 %v3249
    %3965 = vmatpush2.msra.mxu0 %v3248
    %3966 = vmatprep.subr.mxu0 %v3233
    %3967 = vmatpush2.msra.mxu0 %v3232
    %3968 = vmatprep.subr.mxu0 %v3217
    %3969 = vmatpush2.msra.mxu0 %v3216
    %3970 = vmatprep.subr.mxu0 %v3201
    %3971 = vmatpush2.msra.mxu0 %v3200
    %3972 = vmatprep.subr.mxu0 %v3185
    %3973 = vmatpush2.msra.mxu0 %v3184
    %3974 = vmatprep.subr.mxu0 %v3169
    %3975 = vmatpush2.msra.mxu0 %v3168
    %3976 = vmatprep.subr.mxu0 %v3153
    %3977 = vmatpush2.msra.mxu0 %v3152
    %3978 = vmatprep.subr.mxu0 %v3137
    %3979 = vmatpush2.msra.mxu0 %v3136
    %3980 = vmatprep.subr.mxu0 %v3121
    %3981 = vmatpush2.msra.mxu0 %v3120
    %3982 = vmatprep.subr.mxu0 %v3105
    %3983 = vmatpush2.msra.mxu0 %v3104
    %3984 = vmatprep.subr.mxu0 %v3089
    %3985 = vmatpush2.msra.mxu0 %v3088
    %3986 = vmatprep.subr.mxu0 %v3073
    %3987 = vmatpush2.msra.mxu0 %v3072
    %3988 = vmatprep.mubr.f32.mxu0 %v2104
    %3989 = vmatmul.mubr.f32.gmra.mxu0 %v2102
    %v3990 = vpop.f32.mrf.mxu0
    %v3991 = vadd.f32 %v3847, %v3990
    %v3992 = vpop.f32.mrf.mxu0
    %v3993 = vadd.f32 %v3851, %v3992
    %3994 = vdwg.mxu0
    %3995 = vmatprep.subr.mxu0 %v3569
    %3996 = vmatpush1.msra.mxu0 %v3568
    %3997 = vmatprep.subr.mxu0 %v3553
    %3998 = vmatpush1.msra.mxu0 %v3552
    %3999 = vmatprep.subr.mxu0 %v3537
    %4000 = vmatpush1.msra.mxu0 %v3536
    %4001 = vmatprep.subr.mxu0 %v3521
    %4002 = vmatpush1.msra.mxu0 %v3520
    %4003 = vmatprep.subr.mxu0 %v3505
    %4004 = vmatpush1.msra.mxu0 %v3504
    %4005 = vmatprep.subr.mxu0 %v3489
    %4006 = vmatpush1.msra.mxu0 %v3488
    %4007 = vmatprep.subr.mxu0 %v3473
    %4008 = vmatpush1.msra.mxu0 %v3472
    %4009 = vmatprep.subr.mxu0 %v3457
    %4010 = vmatpush1.msra.mxu0 %v3456
    %4011 = vmatprep.subr.mxu0 %v3441
    %4012 = vmatpush1.msra.mxu0 %v3440
    %4013 = vmatprep.subr.mxu0 %v3425
    %4014 = vmatpush1.msra.mxu0 %v3424
    %4015 = vmatprep.subr.mxu0 %v3409
    %4016 = vmatpush1.msra.mxu0 %v3408
    %4017 = vmatprep.subr.mxu0 %v3393
    %4018 = vmatpush1.msra.mxu0 %v3392
    %4019 = vmatprep.subr.mxu0 %v3377
    %4020 = vmatpush1.msra.mxu0 %v3376
    %4021 = vmatprep.subr.mxu0 %v3361
    %4022 = vmatpush1.msra.mxu0 %v3360
    %4023 = vmatprep.subr.mxu0 %v3345
    %4024 = vmatpush1.msra.mxu0 %v3344
    %4025 = vmatprep.subr.mxu0 %v3329
    %4026 = vmatpush1.msra.mxu0 %v3328
    %4027 = vmatprep.subr.mxu0 %v3825
    %4028 = vmatpush2.msra.mxu0 %v3824
    %4029 = vmatprep.subr.mxu0 %v3809
    %4030 = vmatpush2.msra.mxu0 %v3808
    %4031 = vmatprep.subr.mxu0 %v3793
    %4032 = vmatpush2.msra.mxu0 %v3792
    %4033 = vmatprep.subr.mxu0 %v3777
    %4034 = vmatpush2.msra.mxu0 %v3776
    %4035 = vmatprep.subr.mxu0 %v3761
    %4036 = vmatpush2.msra.mxu0 %v3760
    %4037 = vmatprep.subr.mxu0 %v3745
    %4038 = vmatpush2.msra.mxu0 %v3744
    %4039 = vmatprep.subr.mxu0 %v3729
    %4040 = vmatpush2.msra.mxu0 %v3728
    %4041 = vmatprep.subr.mxu0 %v3713
    %4042 = vmatpush2.msra.mxu0 %v3712
    %4043 = vmatprep.subr.mxu0 %v3697
    %4044 = vmatpush2.msra.mxu0 %v3696
    %4045 = vmatprep.subr.mxu0 %v3681
    %4046 = vmatpush2.msra.mxu0 %v3680
    %4047 = vmatprep.subr.mxu0 %v3665
    %4048 = vmatpush2.msra.mxu0 %v3664
    %4049 = vmatprep.subr.mxu0 %v3649
    %4050 = vmatpush2.msra.mxu0 %v3648
    %4051 = vmatprep.subr.mxu0 %v3633
    %4052 = vmatpush2.msra.mxu0 %v3632
    %4053 = vmatprep.subr.mxu0 %v3617
    %4054 = vmatpush2.msra.mxu0 %v3616
    %4055 = vmatprep.subr.mxu0 %v3601
    %4056 = vmatpush2.msra.mxu0 %v3600
    %4057 = vmatprep.subr.mxu0 %v3585
    %4058 = vmatpush2.msra.mxu0 %v3584
    %4059 = vmatprep.mubr.f32.mxu0 %v2814
    %4060 = vmatmul.mubr.f32.gmra.mxu0 %v2812
    %v4061 = vpop.f32.mrf.mxu0
    %v4062 = vadd.f32 %v3991, %v4061
    %v4063 = vpop.f32.mrf.mxu0
    %v4064 = vadd.f32 %v3993, %v4063
    %4065 = vdwg.mxu0
    %4066 = vmatprep.subr.mxu0 %v3059
    %4067 = vmatpush1.msra.mxu0 %v3058
    %4068 = vmatprep.subr.mxu0 %v3043
    %4069 = vmatpush1.msra.mxu0 %v3042
    %4070 = vmatprep.subr.mxu0 %v3027
    %4071 = vmatpush1.msra.mxu0 %v3026
    %4072 = vmatprep.subr.mxu0 %v3011
    %4073 = vmatpush1.msra.mxu0 %v3010
    %4074 = vmatprep.subr.mxu0 %v2995
    %4075 = vmatpush1.msra.mxu0 %v2994
    %4076 = vmatprep.subr.mxu0 %v2979
    %4077 = vmatpush1.msra.mxu0 %v2978
    %4078 = vmatprep.subr.mxu0 %v2963
    %4079 = vmatpush1.msra.mxu0 %v2962
    %4080 = vmatprep.subr.mxu0 %v2947
    %4081 = vmatpush1.msra.mxu0 %v2946
    %4082 = vmatprep.subr.mxu0 %v2931
    %4083 = vmatpush1.msra.mxu0 %v2930
    %4084 = vmatprep.subr.mxu0 %v2915
    %4085 = vmatpush1.msra.mxu0 %v2914
    %4086 = vmatprep.subr.mxu0 %v2899
    %4087 = vmatpush1.msra.mxu0 %v2898
    %4088 = vmatprep.subr.mxu0 %v2883
    %4089 = vmatpush1.msra.mxu0 %v2882
    %4090 = vmatprep.subr.mxu0 %v2867
    %4091 = vmatpush1.msra.mxu0 %v2866
    %4092 = vmatprep.subr.mxu0 %v2851
    %4093 = vmatpush1.msra.mxu0 %v2850
    %4094 = vmatprep.subr.mxu0 %v2835
    %4095 = vmatpush1.msra.mxu0 %v2834
    %4096 = vmatprep.subr.mxu0 %v2819
    %4097 = vmatpush1.msra.mxu0 %v2818
    %4098 = vmatprep.subr.mxu0 %v3315
    %4099 = vmatpush2.msra.mxu0 %v3314
    %4100 = vmatprep.subr.mxu0 %v3299
    %4101 = vmatpush2.msra.mxu0 %v3298
    %4102 = vmatprep.subr.mxu0 %v3283
    %4103 = vmatpush2.msra.mxu0 %v3282
    %4104 = vmatprep.subr.mxu0 %v3267
    %4105 = vmatpush2.msra.mxu0 %v3266
    %4106 = vmatprep.subr.mxu0 %v3251
    %4107 = vmatpush2.msra.mxu0 %v3250
    %4108 = vmatprep.subr.mxu0 %v3235
    %4109 = vmatpush2.msra.mxu0 %v3234
    %4110 = vmatprep.subr.mxu0 %v3219
    %4111 = vmatpush2.msra.mxu0 %v3218
    %4112 = vmatprep.subr.mxu0 %v3203
    %4113 = vmatpush2.msra.mxu0 %v3202
    %4114 = vmatprep.subr.mxu0 %v3187
    %4115 = vmatpush2.msra.mxu0 %v3186
    %4116 = vmatprep.subr.mxu0 %v3171
    %4117 = vmatpush2.msra.mxu0 %v3170
    %4118 = vmatprep.subr.mxu0 %v3155
    %4119 = vmatpush2.msra.mxu0 %v3154
    %4120 = vmatprep.subr.mxu0 %v3139
    %4121 = vmatpush2.msra.mxu0 %v3138
    %4122 = vmatprep.subr.mxu0 %v3123
    %4123 = vmatpush2.msra.mxu0 %v3122
    %4124 = vmatprep.subr.mxu0 %v3107
    %4125 = vmatpush2.msra.mxu0 %v3106
    %4126 = vmatprep.subr.mxu0 %v3091
    %4127 = vmatpush2.msra.mxu0 %v3090
    %4128 = vmatprep.subr.mxu0 %v3075
    %4129 = vmatpush2.msra.mxu0 %v3074
    %4130 = vmatprep.mubr.f32.mxu0 %v2104
    %4131 = vmatmul.mubr.f32.gmra.mxu0 %v2102
    %v4132 = vpop.f32.mrf.mxu0
    %v4133 = vadd.f32 %v3855, %v4132
    %v4134 = vpop.f32.mrf.mxu0
    %v4135 = vadd.f32 %v3859, %v4134
    %4136 = vdwg.mxu0
    %4137 = vmatprep.subr.mxu0 %v3571
    %4138 = vmatpush1.msra.mxu0 %v3570
    %4139 = vmatprep.subr.mxu0 %v3555
    %4140 = vmatpush1.msra.mxu0 %v3554
    %4141 = vmatprep.subr.mxu0 %v3539
    %4142 = vmatpush1.msra.mxu0 %v3538
    %4143 = vmatprep.subr.mxu0 %v3523
    %4144 = vmatpush1.msra.mxu0 %v3522
    %4145 = vmatprep.subr.mxu0 %v3507
    %4146 = vmatpush1.msra.mxu0 %v3506
    %4147 = vmatprep.subr.mxu0 %v3491
    %4148 = vmatpush1.msra.mxu0 %v3490
    %4149 = vmatprep.subr.mxu0 %v3475
    %4150 = vmatpush1.msra.mxu0 %v3474
    %4151 = vmatprep.subr.mxu0 %v3459
    %4152 = vmatpush1.msra.mxu0 %v3458
    %4153 = vmatprep.subr.mxu0 %v3443
    %4154 = vmatpush1.msra.mxu0 %v3442
    %4155 = vmatprep.subr.mxu0 %v3427
    %4156 = vmatpush1.msra.mxu0 %v3426
    %4157 = vmatprep.subr.mxu0 %v3411
    %4158 = vmatpush1.msra.mxu0 %v3410
    %4159 = vmatprep.subr.mxu0 %v3395
    %4160 = vmatpush1.msra.mxu0 %v3394
    %4161 = vmatprep.subr.mxu0 %v3379
    %4162 = vmatpush1.msra.mxu0 %v3378
    %4163 = vmatprep.subr.mxu0 %v3363
    %4164 = vmatpush1.msra.mxu0 %v3362
    %4165 = vmatprep.subr.mxu0 %v3347
    %4166 = vmatpush1.msra.mxu0 %v3346
    %4167 = vmatprep.subr.mxu0 %v3331
    %4168 = vmatpush1.msra.mxu0 %v3330
    %4169 = vmatprep.subr.mxu0 %v3827
    %4170 = vmatpush2.msra.mxu0 %v3826
    %4171 = vmatprep.subr.mxu0 %v3811
    %4172 = vmatpush2.msra.mxu0 %v3810
    %4173 = vmatprep.subr.mxu0 %v3795
    %4174 = vmatpush2.msra.mxu0 %v3794
    %4175 = vmatprep.subr.mxu0 %v3779
    %4176 = vmatpush2.msra.mxu0 %v3778
    %4177 = vmatprep.subr.mxu0 %v3763
    %4178 = vmatpush2.msra.mxu0 %v3762
    %4179 = vmatprep.subr.mxu0 %v3747
    %4180 = vmatpush2.msra.mxu0 %v3746
    %4181 = vmatprep.subr.mxu0 %v3731
    %4182 = vmatpush2.msra.mxu0 %v3730
    %4183 = vmatprep.subr.mxu0 %v3715
    %4184 = vmatpush2.msra.mxu0 %v3714
    %4185 = vmatprep.subr.mxu0 %v3699
    %4186 = vmatpush2.msra.mxu0 %v3698
    %4187 = vmatprep.subr.mxu0 %v3683
    %4188 = vmatpush2.msra.mxu0 %v3682
    %4189 = vmatprep.subr.mxu0 %v3667
    %4190 = vmatpush2.msra.mxu0 %v3666
    %4191 = vmatprep.subr.mxu0 %v3651
    %4192 = vmatpush2.msra.mxu0 %v3650
    %4193 = vmatprep.subr.mxu0 %v3635
    %4194 = vmatpush2.msra.mxu0 %v3634
    %4195 = vmatprep.subr.mxu0 %v3619
    %4196 = vmatpush2.msra.mxu0 %v3618
    %4197 = vmatprep.subr.mxu0 %v3603
    %4198 = vmatpush2.msra.mxu0 %v3602
    %4199 = vmatprep.subr.mxu0 %v3587
    %4200 = vmatpush2.msra.mxu0 %v3586
    %4201 = vmatprep.mubr.f32.mxu0 %v2814
    %4202 = vmatmul.mubr.f32.gmra.mxu0 %v2812
    %v4203 = vpop.f32.mrf.mxu0
    %v4204 = vadd.f32 %v4133, %v4203
    %v4205 = vpop.f32.mrf.mxu0
    %v4206 = vadd.f32 %v4135, %v4205
    %4207 = vdwg.mxu0
    %4208 = vmatprep.subr.mxu0 %v3061
    %4209 = vmatpush1.msra.mxu0 %v3060
    %4210 = vmatprep.subr.mxu0 %v3045
    %4211 = vmatpush1.msra.mxu0 %v3044
    %4212 = vmatprep.subr.mxu0 %v3029
    %4213 = vmatpush1.msra.mxu0 %v3028
    %4214 = vmatprep.subr.mxu0 %v3013
    %4215 = vmatpush1.msra.mxu0 %v3012
    %4216 = vmatprep.subr.mxu0 %v2997
    %4217 = vmatpush1.msra.mxu0 %v2996
    %4218 = vmatprep.subr.mxu0 %v2981
    %4219 = vmatpush1.msra.mxu0 %v2980
    %4220 = vmatprep.subr.mxu0 %v2965
    %4221 = vmatpush1.msra.mxu0 %v2964
    %4222 = vmatprep.subr.mxu0 %v2949
    %4223 = vmatpush1.msra.mxu0 %v2948
    %4224 = vmatprep.subr.mxu0 %v2933
    %4225 = vmatpush1.msra.mxu0 %v2932
    %4226 = vmatprep.subr.mxu0 %v2917
    %4227 = vmatpush1.msra.mxu0 %v2916
    %4228 = vmatprep.subr.mxu0 %v2901
    %4229 = vmatpush1.msra.mxu0 %v2900
    %4230 = vmatprep.subr.mxu0 %v2885
    %4231 = vmatpush1.msra.mxu0 %v2884
    %4232 = vmatprep.subr.mxu0 %v2869
    %4233 = vmatpush1.msra.mxu0 %v2868
    %4234 = vmatprep.subr.mxu0 %v2853
    %4235 = vmatpush1.msra.mxu0 %v2852
    %4236 = vmatprep.subr.mxu0 %v2837
    %4237 = vmatpush1.msra.mxu0 %v2836
    %4238 = vmatprep.subr.mxu0 %v2821
    %4239 = vmatpush1.msra.mxu0 %v2820
    %4240 = vmatprep.subr.mxu0 %v3317
    %4241 = vmatpush2.msra.mxu0 %v3316
    %4242 = vmatprep.subr.mxu0 %v3301
    %4243 = vmatpush2.msra.mxu0 %v3300
    %4244 = vmatprep.subr.mxu0 %v3285
    %4245 = vmatpush2.msra.mxu0 %v3284
    %4246 = vmatprep.subr.mxu0 %v3269
    %4247 = vmatpush2.msra.mxu0 %v3268
    %4248 = vmatprep.subr.mxu0 %v3253
    %4249 = vmatpush2.msra.mxu0 %v3252
    %4250 = vmatprep.subr.mxu0 %v3237
    %4251 = vmatpush2.msra.mxu0 %v3236
    %4252 = vmatprep.subr.mxu0 %v3221
    %4253 = vmatpush2.msra.mxu0 %v3220
    %4254 = vmatprep.subr.mxu0 %v3205
    %4255 = vmatpush2.msra.mxu0 %v3204
    %4256 = vmatprep.subr.mxu0 %v3189
    %4257 = vmatpush2.msra.mxu0 %v3188
    %4258 = vmatprep.subr.mxu0 %v3173
    %4259 = vmatpush2.msra.mxu0 %v3172
    %4260 = vmatprep.subr.mxu0 %v3157
    %4261 = vmatpush2.msra.mxu0 %v3156
    %4262 = vmatprep.subr.mxu0 %v3141
    %4263 = vmatpush2.msra.mxu0 %v3140
    %4264 = vmatprep.subr.mxu0 %v3125
    %4265 = vmatpush2.msra.mxu0 %v3124
    %4266 = vmatprep.subr.mxu0 %v3109
    %4267 = vmatpush2.msra.mxu0 %v3108
    %4268 = vmatprep.subr.mxu0 %v3093
    %4269 = vmatpush2.msra.mxu0 %v3092
    %4270 = vmatprep.subr.mxu0 %v3077
    %4271 = vmatpush2.msra.mxu0 %v3076
    %4272 = vmatprep.mubr.f32.mxu0 %v2104
    %4273 = vmatmul.mubr.f32.gmra.mxu0 %v2102
    %v4274 = vpop.f32.mrf.mxu0
    %v4275 = vadd.f32 %v3863, %v4274
    %v4276 = vpop.f32.mrf.mxu0
    %v4277 = vadd.f32 %v3867, %v4276
    %4278 = vdwg.mxu0
    %4279 = vmatprep.subr.mxu0 %v3573
    %4280 = vmatpush1.msra.mxu0 %v3572
    %4281 = vmatprep.subr.mxu0 %v3557
    %4282 = vmatpush1.msra.mxu0 %v3556
    %4283 = vmatprep.subr.mxu0 %v3541
    %4284 = vmatpush1.msra.mxu0 %v3540
    %4285 = vmatprep.subr.mxu0 %v3525
    %4286 = vmatpush1.msra.mxu0 %v3524
    %4287 = vmatprep.subr.mxu0 %v3509
    %4288 = vmatpush1.msra.mxu0 %v3508
    %4289 = vmatprep.subr.mxu0 %v3493
    %4290 = vmatpush1.msra.mxu0 %v3492
    %4291 = vmatprep.subr.mxu0 %v3477
    %4292 = vmatpush1.msra.mxu0 %v3476
    %4293 = vmatprep.subr.mxu0 %v3461
    %4294 = vmatpush1.msra.mxu0 %v3460
    %4295 = vmatprep.subr.mxu0 %v3445
    %4296 = vmatpush1.msra.mxu0 %v3444
    %4297 = vmatprep.subr.mxu0 %v3429
    %4298 = vmatpush1.msra.mxu0 %v3428
    %4299 = vmatprep.subr.mxu0 %v3413
    %4300 = vmatpush1.msra.mxu0 %v3412
    %4301 = vmatprep.subr.mxu0 %v3397
    %4302 = vmatpush1.msra.mxu0 %v3396
    %4303 = vmatprep.subr.mxu0 %v3381
    %4304 = vmatpush1.msra.mxu0 %v3380
    %4305 = vmatprep.subr.mxu0 %v3365
    %4306 = vmatpush1.msra.mxu0 %v3364
    %4307 = vmatprep.subr.mxu0 %v3349
    %4308 = vmatpush1.msra.mxu0 %v3348
    %4309 = vmatprep.subr.mxu0 %v3333
    %4310 = vmatpush1.msra.mxu0 %v3332
    %4311 = vmatprep.subr.mxu0 %v3829
    %4312 = vmatpush2.msra.mxu0 %v3828
    %4313 = vmatprep.subr.mxu0 %v3813
    %4314 = vmatpush2.msra.mxu0 %v3812
    %4315 = vmatprep.subr.mxu0 %v3797
    %4316 = vmatpush2.msra.mxu0 %v3796
    %4317 = vmatprep.subr.mxu0 %v3781
    %4318 = vmatpush2.msra.mxu0 %v3780
    %4319 = vmatprep.subr.mxu0 %v3765
    %4320 = vmatpush2.msra.mxu0 %v3764
    %4321 = vmatprep.subr.mxu0 %v3749
    %4322 = vmatpush2.msra.mxu0 %v3748
    %4323 = vmatprep.subr.mxu0 %v3733
    %4324 = vmatpush2.msra.mxu0 %v3732
    %4325 = vmatprep.subr.mxu0 %v3717
    %4326 = vmatpush2.msra.mxu0 %v3716
    %4327 = vmatprep.subr.mxu0 %v3701
    %4328 = vmatpush2.msra.mxu0 %v3700
    %4329 = vmatprep.subr.mxu0 %v3685
    %4330 = vmatpush2.msra.mxu0 %v3684
    %4331 = vmatprep.subr.mxu0 %v3669
    %4332 = vmatpush2.msra.mxu0 %v3668
    %4333 = vmatprep.subr.mxu0 %v3653
    %4334 = vmatpush2.msra.mxu0 %v3652
    %4335 = vmatprep.subr.mxu0 %v3637
    %4336 = vmatpush2.msra.mxu0 %v3636
    %4337 = vmatprep.subr.mxu0 %v3621
    %4338 = vmatpush2.msra.mxu0 %v3620
    %4339 = vmatprep.subr.mxu0 %v3605
    %4340 = vmatpush2.msra.mxu0 %v3604
    %4341 = vmatprep.subr.mxu0 %v3589
    %4342 = vmatpush2.msra.mxu0 %v3588
    %4343 = vmatprep.mubr.f32.mxu0 %v2814
    %4344 = vmatmul.mubr.f32.gmra.mxu0 %v2812
    %v4345 = vpop.f32.mrf.mxu0
    %v4346 = vadd.f32 %v4275, %v4345
    %v4347 = vpop.f32.mrf.mxu0
    %v4348 = vadd.f32 %v4277, %v4347
    %4349 = vdwg.mxu0
    %4350 = vmatprep.subr.mxu0 %v3063
    %4351 = vmatpush1.msra.mxu0 %v3062
    %4352 = vmatprep.subr.mxu0 %v3047
    %4353 = vmatpush1.msra.mxu0 %v3046
    %4354 = vmatprep.subr.mxu0 %v3031
    %4355 = vmatpush1.msra.mxu0 %v3030
    %4356 = vmatprep.subr.mxu0 %v3015
    %4357 = vmatpush1.msra.mxu0 %v3014
    %4358 = vmatprep.subr.mxu0 %v2999
    %4359 = vmatpush1.msra.mxu0 %v2998
    %4360 = vmatprep.subr.mxu0 %v2983
    %4361 = vmatpush1.msra.mxu0 %v2982
    %4362 = vmatprep.subr.mxu0 %v2967
    %4363 = vmatpush1.msra.mxu0 %v2966
    %4364 = vmatprep.subr.mxu0 %v2951
    %4365 = vmatpush1.msra.mxu0 %v2950
    %4366 = vmatprep.subr.mxu0 %v2935
    %4367 = vmatpush1.msra.mxu0 %v2934
    %4368 = vmatprep.subr.mxu0 %v2919
    %4369 = vmatpush1.msra.mxu0 %v2918
    %4370 = vmatprep.subr.mxu0 %v2903
    %4371 = vmatpush1.msra.mxu0 %v2902
    %4372 = vmatprep.subr.mxu0 %v2887
    %4373 = vmatpush1.msra.mxu0 %v2886
    %4374 = vmatprep.subr.mxu0 %v2871
    %4375 = vmatpush1.msra.mxu0 %v2870
    %4376 = vmatprep.subr.mxu0 %v2855
    %4377 = vmatpush1.msra.mxu0 %v2854
    %4378 = vmatprep.subr.mxu0 %v2839
    %4379 = vmatpush1.msra.mxu0 %v2838
    %4380 = vmatprep.subr.mxu0 %v2823
    %4381 = vmatpush1.msra.mxu0 %v2822
    %4382 = vmatprep.subr.mxu0 %v3319
    %4383 = vmatpush2.msra.mxu0 %v3318
    %4384 = vmatprep.subr.mxu0 %v3303
    %4385 = vmatpush2.msra.mxu0 %v3302
    %4386 = vmatprep.subr.mxu0 %v3287
    %4387 = vmatpush2.msra.mxu0 %v3286
    %4388 = vmatprep.subr.mxu0 %v3271
    %4389 = vmatpush2.msra.mxu0 %v3270
    %4390 = vmatprep.subr.mxu0 %v3255
    %4391 = vmatpush2.msra.mxu0 %v3254
    %4392 = vmatprep.subr.mxu0 %v3239
    %4393 = vmatpush2.msra.mxu0 %v3238
    %4394 = vmatprep.subr.mxu0 %v3223
    %4395 = vmatpush2.msra.mxu0 %v3222
    %4396 = vmatprep.subr.mxu0 %v3207
    %4397 = vmatpush2.msra.mxu0 %v3206
    %4398 = vmatprep.subr.mxu0 %v3191
    %4399 = vmatpush2.msra.mxu0 %v3190
    %4400 = vmatprep.subr.mxu0 %v3175
    %4401 = vmatpush2.msra.mxu0 %v3174
    %4402 = vmatprep.subr.mxu0 %v3159
    %4403 = vmatpush2.msra.mxu0 %v3158
    %4404 = vmatprep.subr.mxu0 %v3143
    %4405 = vmatpush2.msra.mxu0 %v3142
    %4406 = vmatprep.subr.mxu0 %v3127
    %4407 = vmatpush2.msra.mxu0 %v3126
    %4408 = vmatprep.subr.mxu0 %v3111
    %4409 = vmatpush2.msra.mxu0 %v3110
    %4410 = vmatprep.subr.mxu0 %v3095
    %4411 = vmatpush2.msra.mxu0 %v3094
    %4412 = vmatprep.subr.mxu0 %v3079
    %4413 = vmatpush2.msra.mxu0 %v3078
    %4414 = vmatprep.mubr.f32.mxu0 %v2104
    %4415 = vmatmul.mubr.f32.gmra.mxu0 %v2102
    %v4416 = vpop.f32.mrf.mxu0
    %v4417 = vadd.f32 %v3871, %v4416
    %v4418 = vpop.f32.mrf.mxu0
    %v4419 = vadd.f32 %v3875, %v4418
    %4420 = vdwg.mxu0
    %4421 = vmatprep.subr.mxu0 %v3575
    %4422 = vmatpush1.msra.mxu0 %v3574
    %4423 = vmatprep.subr.mxu0 %v3559
    %4424 = vmatpush1.msra.mxu0 %v3558
    %4425 = vmatprep.subr.mxu0 %v3543
    %4426 = vmatpush1.msra.mxu0 %v3542
    %4427 = vmatprep.subr.mxu0 %v3527
    %4428 = vmatpush1.msra.mxu0 %v3526
    %4429 = vmatprep.subr.mxu0 %v3511
    %4430 = vmatpush1.msra.mxu0 %v3510
    %4431 = vmatprep.subr.mxu0 %v3495
    %4432 = vmatpush1.msra.mxu0 %v3494
    %4433 = vmatprep.subr.mxu0 %v3479
    %4434 = vmatpush1.msra.mxu0 %v3478
    %4435 = vmatprep.subr.mxu0 %v3463
    %4436 = vmatpush1.msra.mxu0 %v3462
    %4437 = vmatprep.subr.mxu0 %v3447
    %4438 = vmatpush1.msra.mxu0 %v3446
    %4439 = vmatprep.subr.mxu0 %v3431
    %4440 = vmatpush1.msra.mxu0 %v3430
    %4441 = vmatprep.subr.mxu0 %v3415
    %4442 = vmatpush1.msra.mxu0 %v3414
    %4443 = vmatprep.subr.mxu0 %v3399
    %4444 = vmatpush1.msra.mxu0 %v3398
    %4445 = vmatprep.subr.mxu0 %v3383
    %4446 = vmatpush1.msra.mxu0 %v3382
    %4447 = vmatprep.subr.mxu0 %v3367
    %4448 = vmatpush1.msra.mxu0 %v3366
    %4449 = vmatprep.subr.mxu0 %v3351
    %4450 = vmatpush1.msra.mxu0 %v3350
    %4451 = vmatprep.subr.mxu0 %v3335
    %4452 = vmatpush1.msra.mxu0 %v3334
    %4453 = vmatprep.subr.mxu0 %v3831
    %4454 = vmatpush2.msra.mxu0 %v3830
    %4455 = vmatprep.subr.mxu0 %v3815
    %4456 = vmatpush2.msra.mxu0 %v3814
    %4457 = vmatprep.subr.mxu0 %v3799
    %4458 = vmatpush2.msra.mxu0 %v3798
    %4459 = vmatprep.subr.mxu0 %v3783
    %4460 = vmatpush2.msra.mxu0 %v3782
    %4461 = vmatprep.subr.mxu0 %v3767
    %4462 = vmatpush2.msra.mxu0 %v3766
    %4463 = vmatprep.subr.mxu0 %v3751
    %4464 = vmatpush2.msra.mxu0 %v3750
    %4465 = vmatprep.subr.mxu0 %v3735
    %4466 = vmatpush2.msra.mxu0 %v3734
    %4467 = vmatprep.subr.mxu0 %v3719
    %4468 = vmatpush2.msra.mxu0 %v3718
    %4469 = vmatprep.subr.mxu0 %v3703
    %4470 = vmatpush2.msra.mxu0 %v3702
    %4471 = vmatprep.subr.mxu0 %v3687
    %4472 = vmatpush2.msra.mxu0 %v3686
    %4473 = vmatprep.subr.mxu0 %v3671
    %4474 = vmatpush2.msra.mxu0 %v3670
    %4475 = vmatprep.subr.mxu0 %v3655
    %4476 = vmatpush2.msra.mxu0 %v3654
    %4477 = vmatprep.subr.mxu0 %v3639
    %4478 = vmatpush2.msra.mxu0 %v3638
    %4479 = vmatprep.subr.mxu0 %v3623
    %4480 = vmatpush2.msra.mxu0 %v3622
    %4481 = vmatprep.subr.mxu0 %v3607
    %4482 = vmatpush2.msra.mxu0 %v3606
    %4483 = vmatprep.subr.mxu0 %v3591
    %4484 = vmatpush2.msra.mxu0 %v3590
    %4485 = vmatprep.mubr.f32.mxu0 %v2814
    %4486 = vmatmul.mubr.f32.gmra.mxu0 %v2812
    %v4487 = vpop.f32.mrf.mxu0
    %v4488 = vadd.f32 %v4417, %v4487
    %v4489 = vpop.f32.mrf.mxu0
    %v4490 = vadd.f32 %v4419, %v4489
    %4491 = vdwg.mxu0
    %4492 = vmatprep.subr.mxu0 %v3065
    %4493 = vmatpush1.msra.mxu0 %v3064
    %4494 = vmatprep.subr.mxu0 %v3049
    %4495 = vmatpush1.msra.mxu0 %v3048
    %4496 = vmatprep.subr.mxu0 %v3033
    %4497 = vmatpush1.msra.mxu0 %v3032
    %4498 = vmatprep.subr.mxu0 %v3017
    %4499 = vmatpush1.msra.mxu0 %v3016
    %4500 = vmatprep.subr.mxu0 %v3001
    %4501 = vmatpush1.msra.mxu0 %v3000
    %4502 = vmatprep.subr.mxu0 %v2985
    %4503 = vmatpush1.msra.mxu0 %v2984
    %4504 = vmatprep.subr.mxu0 %v2969
    %4505 = vmatpush1.msra.mxu0 %v2968
    %4506 = vmatprep.subr.mxu0 %v2953
    %4507 = vmatpush1.msra.mxu0 %v2952
    %4508 = vmatprep.subr.mxu0 %v2937
    %4509 = vmatpush1.msra.mxu0 %v2936
    %4510 = vmatprep.subr.mxu0 %v2921
    %4511 = vmatpush1.msra.mxu0 %v2920
    %4512 = vmatprep.subr.mxu0 %v2905
    %4513 = vmatpush1.msra.mxu0 %v2904
    %4514 = vmatprep.subr.mxu0 %v2889
    %4515 = vmatpush1.msra.mxu0 %v2888
    %4516 = vmatprep.subr.mxu0 %v2873
    %4517 = vmatpush1.msra.mxu0 %v2872
    %4518 = vmatprep.subr.mxu0 %v2857
    %4519 = vmatpush1.msra.mxu0 %v2856
    %4520 = vmatprep.subr.mxu0 %v2841
    %4521 = vmatpush1.msra.mxu0 %v2840
    %4522 = vmatprep.subr.mxu0 %v2825
    %4523 = vmatpush1.msra.mxu0 %v2824
    %4524 = vmatprep.subr.mxu0 %v3321
    %4525 = vmatpush2.msra.mxu0 %v3320
    %4526 = vmatprep.subr.mxu0 %v3305
    %4527 = vmatpush2.msra.mxu0 %v3304
    %4528 = vmatprep.subr.mxu0 %v3289
    %4529 = vmatpush2.msra.mxu0 %v3288
    %4530 = vmatprep.subr.mxu0 %v3273
    %4531 = vmatpush2.msra.mxu0 %v3272
    %4532 = vmatprep.subr.mxu0 %v3257
    %4533 = vmatpush2.msra.mxu0 %v3256
    %4534 = vmatprep.subr.mxu0 %v3241
    %4535 = vmatpush2.msra.mxu0 %v3240
    %4536 = vmatprep.subr.mxu0 %v3225
    %4537 = vmatpush2.msra.mxu0 %v3224
    %4538 = vmatprep.subr.mxu0 %v3209
    %4539 = vmatpush2.msra.mxu0 %v3208
    %4540 = vmatprep.subr.mxu0 %v3193
    %4541 = vmatpush2.msra.mxu0 %v3192
    %4542 = vmatprep.subr.mxu0 %v3177
    %4543 = vmatpush2.msra.mxu0 %v3176
    %4544 = vmatprep.subr.mxu0 %v3161
    %4545 = vmatpush2.msra.mxu0 %v3160
    %4546 = vmatprep.subr.mxu0 %v3145
    %4547 = vmatpush2.msra.mxu0 %v3144
    %4548 = vmatprep.subr.mxu0 %v3129
    %4549 = vmatpush2.msra.mxu0 %v3128
    %4550 = vmatprep.subr.mxu0 %v3113
    %4551 = vmatpush2.msra.mxu0 %v3112
    %4552 = vmatprep.subr.mxu0 %v3097
    %4553 = vmatpush2.msra.mxu0 %v3096
    %4554 = vmatprep.subr.mxu0 %v3081
    %4555 = vmatpush2.msra.mxu0 %v3080
    %4556 = vmatprep.mubr.f32.mxu0 %v2104
    %4557 = vmatmul.mubr.f32.gmra.mxu0 %v2102
    %v4558 = vpop.f32.mrf.mxu0
    %v4559 = vadd.f32 %v3879, %v4558
    %v4560 = vpop.f32.mrf.mxu0
    %v4561 = vadd.f32 %v3883, %v4560
    %4562 = vdwg.mxu0
    %4563 = vmatprep.subr.mxu0 %v3577
    %4564 = vmatpush1.msra.mxu0 %v3576
    %4565 = vmatprep.subr.mxu0 %v3561
    %4566 = vmatpush1.msra.mxu0 %v3560
    %4567 = vmatprep.subr.mxu0 %v3545
    %4568 = vmatpush1.msra.mxu0 %v3544
    %4569 = vmatprep.subr.mxu0 %v3529
    %4570 = vmatpush1.msra.mxu0 %v3528
    %4571 = vmatprep.subr.mxu0 %v3513
    %4572 = vmatpush1.msra.mxu0 %v3512
    %4573 = vmatprep.subr.mxu0 %v3497
    %4574 = vmatpush1.msra.mxu0 %v3496
    %4575 = vmatprep.subr.mxu0 %v3481
    %4576 = vmatpush1.msra.mxu0 %v3480
    %4577 = vmatprep.subr.mxu0 %v3465
    %4578 = vmatpush1.msra.mxu0 %v3464
    %4579 = vmatprep.subr.mxu0 %v3449
    %4580 = vmatpush1.msra.mxu0 %v3448
    %4581 = vmatprep.subr.mxu0 %v3433
    %4582 = vmatpush1.msra.mxu0 %v3432
    %4583 = vmatprep.subr.mxu0 %v3417
    %4584 = vmatpush1.msra.mxu0 %v3416
    %4585 = vmatprep.subr.mxu0 %v3401
    %4586 = vmatpush1.msra.mxu0 %v3400
    %4587 = vmatprep.subr.mxu0 %v3385
    %4588 = vmatpush1.msra.mxu0 %v3384
    %4589 = vmatprep.subr.mxu0 %v3369
    %4590 = vmatpush1.msra.mxu0 %v3368
    %4591 = vmatprep.subr.mxu0 %v3353
    %4592 = vmatpush1.msra.mxu0 %v3352
    %4593 = vmatprep.subr.mxu0 %v3337
    %4594 = vmatpush1.msra.mxu0 %v3336
    %4595 = vmatprep.subr.mxu0 %v3833
    %4596 = vmatpush2.msra.mxu0 %v3832
    %4597 = vmatprep.subr.mxu0 %v3817
    %4598 = vmatpush2.msra.mxu0 %v3816
    %4599 = vmatprep.subr.mxu0 %v3801
    %4600 = vmatpush2.msra.mxu0 %v3800
    %4601 = vmatprep.subr.mxu0 %v3785
    %4602 = vmatpush2.msra.mxu0 %v3784
    %4603 = vmatprep.subr.mxu0 %v3769
    %4604 = vmatpush2.msra.mxu0 %v3768
    %4605 = vmatprep.subr.mxu0 %v3753
    %4606 = vmatpush2.msra.mxu0 %v3752
    %4607 = vmatprep.subr.mxu0 %v3737
    %4608 = vmatpush2.msra.mxu0 %v3736
    %4609 = vmatprep.subr.mxu0 %v3721
    %4610 = vmatpush2.msra.mxu0 %v3720
    %4611 = vmatprep.subr.mxu0 %v3705
    %4612 = vmatpush2.msra.mxu0 %v3704
    %4613 = vmatprep.subr.mxu0 %v3689
    %4614 = vmatpush2.msra.mxu0 %v3688
    %4615 = vmatprep.subr.mxu0 %v3673
    %4616 = vmatpush2.msra.mxu0 %v3672
    %4617 = vmatprep.subr.mxu0 %v3657
    %4618 = vmatpush2.msra.mxu0 %v3656
    %4619 = vmatprep.subr.mxu0 %v3641
    %4620 = vmatpush2.msra.mxu0 %v3640
    %4621 = vmatprep.subr.mxu0 %v3625
    %4622 = vmatpush2.msra.mxu0 %v3624
    %4623 = vmatprep.subr.mxu0 %v3609
    %4624 = vmatpush2.msra.mxu0 %v3608
    %4625 = vmatprep.subr.mxu0 %v3593
    %4626 = vmatpush2.msra.mxu0 %v3592
    %4627 = vmatprep.mubr.f32.mxu0 %v2814
    %4628 = vmatmul.mubr.f32.gmra.mxu0 %v2812
    %v4629 = vpop.f32.mrf.mxu0
    %v4630 = vadd.f32 %v4559, %v4629
    %v4631 = vpop.f32.mrf.mxu0
    %v4632 = vadd.f32 %v4561, %v4631
    %4633 = vdwg.mxu0
    %4634 = vmatprep.subr.mxu0 %v3067
    %4635 = vmatpush1.msra.mxu0 %v3066
    %4636 = vmatprep.subr.mxu0 %v3051
    %4637 = vmatpush1.msra.mxu0 %v3050
    %4638 = vmatprep.subr.mxu0 %v3035
    %4639 = vmatpush1.msra.mxu0 %v3034
    %4640 = vmatprep.subr.mxu0 %v3019
    %4641 = vmatpush1.msra.mxu0 %v3018
    %4642 = vmatprep.subr.mxu0 %v3003
    %4643 = vmatpush1.msra.mxu0 %v3002
    %4644 = vmatprep.subr.mxu0 %v2987
    %4645 = vmatpush1.msra.mxu0 %v2986
    %4646 = vmatprep.subr.mxu0 %v2971
    %4647 = vmatpush1.msra.mxu0 %v2970
    %4648 = vmatprep.subr.mxu0 %v2955
    %4649 = vmatpush1.msra.mxu0 %v2954
    %4650 = vmatprep.subr.mxu0 %v2939
    %4651 = vmatpush1.msra.mxu0 %v2938
    %4652 = vmatprep.subr.mxu0 %v2923
    %4653 = vmatpush1.msra.mxu0 %v2922
    %4654 = vmatprep.subr.mxu0 %v2907
    %4655 = vmatpush1.msra.mxu0 %v2906
    %4656 = vmatprep.subr.mxu0 %v2891
    %4657 = vmatpush1.msra.mxu0 %v2890
    %4658 = vmatprep.subr.mxu0 %v2875
    %4659 = vmatpush1.msra.mxu0 %v2874
    %4660 = vmatprep.subr.mxu0 %v2859
    %4661 = vmatpush1.msra.mxu0 %v2858
    %4662 = vmatprep.subr.mxu0 %v2843
    %4663 = vmatpush1.msra.mxu0 %v2842
    %4664 = vmatprep.subr.mxu0 %v2827
    %4665 = vmatpush1.msra.mxu0 %v2826
    %4666 = vmatprep.subr.mxu0 %v3323
    %4667 = vmatpush2.msra.mxu0 %v3322
    %4668 = vmatprep.subr.mxu0 %v3307
    %4669 = vmatpush2.msra.mxu0 %v3306
    %4670 = vmatprep.subr.mxu0 %v3291
    %4671 = vmatpush2.msra.mxu0 %v3290
    %4672 = vmatprep.subr.mxu0 %v3275
    %4673 = vmatpush2.msra.mxu0 %v3274
    %4674 = vmatprep.subr.mxu0 %v3259
    %4675 = vmatpush2.msra.mxu0 %v3258
    %4676 = vmatprep.subr.mxu0 %v3243
    %4677 = vmatpush2.msra.mxu0 %v3242
    %4678 = vmatprep.subr.mxu0 %v3227
    %4679 = vmatpush2.msra.mxu0 %v3226
    %4680 = vmatprep.subr.mxu0 %v3211
    %4681 = vmatpush2.msra.mxu0 %v3210
    %4682 = vmatprep.subr.mxu0 %v3195
    %4683 = vmatpush2.msra.mxu0 %v3194
    %4684 = vmatprep.subr.mxu0 %v3179
    %4685 = vmatpush2.msra.mxu0 %v3178
    %4686 = vmatprep.subr.mxu0 %v3163
    %4687 = vmatpush2.msra.mxu0 %v3162
    %4688 = vmatprep.subr.mxu0 %v3147
    %4689 = vmatpush2.msra.mxu0 %v3146
    %4690 = vmatprep.subr.mxu0 %v3131
    %4691 = vmatpush2.msra.mxu0 %v3130
    %4692 = vmatprep.subr.mxu0 %v3115
    %4693 = vmatpush2.msra.mxu0 %v3114
    %4694 = vmatprep.subr.mxu0 %v3099
    %4695 = vmatpush2.msra.mxu0 %v3098
    %4696 = vmatprep.subr.mxu0 %v3083
    %4697 = vmatpush2.msra.mxu0 %v3082
    %4698 = vmatprep.mubr.f32.mxu0 %v2104
    %4699 = vmatmul.mubr.f32.gmra.mxu0 %v2102
    %v4700 = vpop.f32.mrf.mxu0
    %v4701 = vadd.f32 %v3887, %v4700
    %v4702 = vpop.f32.mrf.mxu0
    %v4703 = vadd.f32 %v3891, %v4702
    %4704 = vdwg.mxu0
    %4705 = vmatprep.subr.mxu0 %v3579
    %4706 = vmatpush1.msra.mxu0 %v3578
    %4707 = vmatprep.subr.mxu0 %v3563
    %4708 = vmatpush1.msra.mxu0 %v3562
    %4709 = vmatprep.subr.mxu0 %v3547
    %4710 = vmatpush1.msra.mxu0 %v3546
    %4711 = vmatprep.subr.mxu0 %v3531
    %4712 = vmatpush1.msra.mxu0 %v3530
    %4713 = vmatprep.subr.mxu0 %v3515
    %4714 = vmatpush1.msra.mxu0 %v3514
    %4715 = vmatprep.subr.mxu0 %v3499
    %4716 = vmatpush1.msra.mxu0 %v3498
    %4717 = vmatprep.subr.mxu0 %v3483
    %4718 = vmatpush1.msra.mxu0 %v3482
    %4719 = vmatprep.subr.mxu0 %v3467
    %4720 = vmatpush1.msra.mxu0 %v3466
    %4721 = vmatprep.subr.mxu0 %v3451
    %4722 = vmatpush1.msra.mxu0 %v3450
    %4723 = vmatprep.subr.mxu0 %v3435
    %4724 = vmatpush1.msra.mxu0 %v3434
    %4725 = vmatprep.subr.mxu0 %v3419
    %4726 = vmatpush1.msra.mxu0 %v3418
    %4727 = vmatprep.subr.mxu0 %v3403
    %4728 = vmatpush1.msra.mxu0 %v3402
    %4729 = vmatprep.subr.mxu0 %v3387
    %4730 = vmatpush1.msra.mxu0 %v3386
    %4731 = vmatprep.subr.mxu0 %v3371
    %4732 = vmatpush1.msra.mxu0 %v3370
    %4733 = vmatprep.subr.mxu0 %v3355
    %4734 = vmatpush1.msra.mxu0 %v3354
    %4735 = vmatprep.subr.mxu0 %v3339
    %4736 = vmatpush1.msra.mxu0 %v3338
    %4737 = vmatprep.subr.mxu0 %v3835
    %4738 = vmatpush2.msra.mxu0 %v3834
    %4739 = vmatprep.subr.mxu0 %v3819
    %4740 = vmatpush2.msra.mxu0 %v3818
    %4741 = vmatprep.subr.mxu0 %v3803
    %4742 = vmatpush2.msra.mxu0 %v3802
    %4743 = vmatprep.subr.mxu0 %v3787
    %4744 = vmatpush2.msra.mxu0 %v3786
    %4745 = vmatprep.subr.mxu0 %v3771
    %4746 = vmatpush2.msra.mxu0 %v3770
    %4747 = vmatprep.subr.mxu0 %v3755
    %4748 = vmatpush2.msra.mxu0 %v3754
    %4749 = vmatprep.subr.mxu0 %v3739
    %4750 = vmatpush2.msra.mxu0 %v3738
    %4751 = vmatprep.subr.mxu0 %v3723
    %4752 = vmatpush2.msra.mxu0 %v3722
    %4753 = vmatprep.subr.mxu0 %v3707
    %4754 = vmatpush2.msra.mxu0 %v3706
    %4755 = vmatprep.subr.mxu0 %v3691
    %4756 = vmatpush2.msra.mxu0 %v3690
    %4757 = vmatprep.subr.mxu0 %v3675
    %4758 = vmatpush2.msra.mxu0 %v3674
    %4759 = vmatprep.subr.mxu0 %v3659
    %4760 = vmatpush2.msra.mxu0 %v3658
    %4761 = vmatprep.subr.mxu0 %v3643
    %4762 = vmatpush2.msra.mxu0 %v3642
    %4763 = vmatprep.subr.mxu0 %v3627
    %4764 = vmatpush2.msra.mxu0 %v3626
    %4765 = vmatprep.subr.mxu0 %v3611
    %4766 = vmatpush2.msra.mxu0 %v3610
    %4767 = vmatprep.subr.mxu0 %v3595
    %4768 = vmatpush2.msra.mxu0 %v3594
    %4769 = vmatprep.mubr.f32.mxu0 %v2814
    %4770 = vmatmul.mubr.f32.gmra.mxu0 %v2812
    %v4771 = vpop.f32.mrf.mxu0
    %v4772 = vadd.f32 %v4701, %v4771
    %v4773 = vpop.f32.mrf.mxu0
    %v4774 = vadd.f32 %v4703, %v4773
    %4775 = vdwg.mxu0
    %4776 = vmatprep.subr.mxu0 %v3069
    %4777 = vmatpush1.msra.mxu0 %v3068
    %4778 = vmatprep.subr.mxu0 %v3053
    %4779 = vmatpush1.msra.mxu0 %v3052
    %4780 = vmatprep.subr.mxu0 %v3037
    %4781 = vmatpush1.msra.mxu0 %v3036
    %4782 = vmatprep.subr.mxu0 %v3021
    %4783 = vmatpush1.msra.mxu0 %v3020
    %4784 = vmatprep.subr.mxu0 %v3005
    %4785 = vmatpush1.msra.mxu0 %v3004
    %4786 = vmatprep.subr.mxu0 %v2989
    %4787 = vmatpush1.msra.mxu0 %v2988
    %4788 = vmatprep.subr.mxu0 %v2973
    %4789 = vmatpush1.msra.mxu0 %v2972
    %4790 = vmatprep.subr.mxu0 %v2957
    %4791 = vmatpush1.msra.mxu0 %v2956
    %4792 = vmatprep.subr.mxu0 %v2941
    %4793 = vmatpush1.msra.mxu0 %v2940
    %4794 = vmatprep.subr.mxu0 %v2925
    %4795 = vmatpush1.msra.mxu0 %v2924
    %4796 = vmatprep.subr.mxu0 %v2909
    %4797 = vmatpush1.msra.mxu0 %v2908
    %4798 = vmatprep.subr.mxu0 %v2893
    %4799 = vmatpush1.msra.mxu0 %v2892
    %4800 = vmatprep.subr.mxu0 %v2877
    %4801 = vmatpush1.msra.mxu0 %v2876
    %4802 = vmatprep.subr.mxu0 %v2861
    %4803 = vmatpush1.msra.mxu0 %v2860
    %4804 = vmatprep.subr.mxu0 %v2845
    %4805 = vmatpush1.msra.mxu0 %v2844
    %4806 = vmatprep.subr.mxu0 %v2829
    %4807 = vmatpush1.msra.mxu0 %v2828
    %4808 = vmatprep.subr.mxu0 %v3325
    %4809 = vmatpush2.msra.mxu0 %v3324
    %4810 = vmatprep.subr.mxu0 %v3309
    %4811 = vmatpush2.msra.mxu0 %v3308
    %4812 = vmatprep.subr.mxu0 %v3293
    %4813 = vmatpush2.msra.mxu0 %v3292
    %4814 = vmatprep.subr.mxu0 %v3277
    %4815 = vmatpush2.msra.mxu0 %v3276
    %4816 = vmatprep.subr.mxu0 %v3261
    %4817 = vmatpush2.msra.mxu0 %v3260
    %4818 = vmatprep.subr.mxu0 %v3245
    %4819 = vmatpush2.msra.mxu0 %v3244
    %4820 = vmatprep.subr.mxu0 %v3229
    %4821 = vmatpush2.msra.mxu0 %v3228
    %4822 = vmatprep.subr.mxu0 %v3213
    %4823 = vmatpush2.msra.mxu0 %v3212
    %4824 = vmatprep.subr.mxu0 %v3197
    %4825 = vmatpush2.msra.mxu0 %v3196
    %4826 = vmatprep.subr.mxu0 %v3181
    %4827 = vmatpush2.msra.mxu0 %v3180
    %4828 = vmatprep.subr.mxu0 %v3165
    %4829 = vmatpush2.msra.mxu0 %v3164
    %4830 = vmatprep.subr.mxu0 %v3149
    %4831 = vmatpush2.msra.mxu0 %v3148
    %4832 = vmatprep.subr.mxu0 %v3133
    %4833 = vmatpush2.msra.mxu0 %v3132
    %4834 = vmatprep.subr.mxu0 %v3117
    %4835 = vmatpush2.msra.mxu0 %v3116
    %4836 = vmatprep.subr.mxu0 %v3101
    %4837 = vmatpush2.msra.mxu0 %v3100
    %4838 = vmatprep.subr.mxu0 %v3085
    %4839 = vmatpush2.msra.mxu0 %v3084
    %4840 = vmatprep.mubr.f32.mxu0 %v2104
    %4841 = vmatmul.mubr.f32.gmra.mxu0 %v2102
    %v4842 = vpop.f32.mrf.mxu0
    %v4843 = vadd.f32 %v3895, %v4842
    %v4844 = vpop.f32.mrf.mxu0
    %v4845 = vadd.f32 %v3899, %v4844
    %4846 = vdwg.mxu0
    %4847 = vmatprep.subr.mxu0 %v3581
    %4848 = vmatpush1.msra.mxu0 %v3580
    %4849 = vmatprep.subr.mxu0 %v3565
    %4850 = vmatpush1.msra.mxu0 %v3564
    %4851 = vmatprep.subr.mxu0 %v3549
    %4852 = vmatpush1.msra.mxu0 %v3548
    %4853 = vmatprep.subr.mxu0 %v3533
    %4854 = vmatpush1.msra.mxu0 %v3532
    %4855 = vmatprep.subr.mxu0 %v3517
    %4856 = vmatpush1.msra.mxu0 %v3516
    %4857 = vmatprep.subr.mxu0 %v3501
    %4858 = vmatpush1.msra.mxu0 %v3500
    %4859 = vmatprep.subr.mxu0 %v3485
    %4860 = vmatpush1.msra.mxu0 %v3484
    %4861 = vmatprep.subr.mxu0 %v3469
    %4862 = vmatpush1.msra.mxu0 %v3468
    %4863 = vmatprep.subr.mxu0 %v3453
    %4864 = vmatpush1.msra.mxu0 %v3452
    %4865 = vmatprep.subr.mxu0 %v3437
    %4866 = vmatpush1.msra.mxu0 %v3436
    %4867 = vmatprep.subr.mxu0 %v3421
    %4868 = vmatpush1.msra.mxu0 %v3420
    %4869 = vmatprep.subr.mxu0 %v3405
    %4870 = vmatpush1.msra.mxu0 %v3404
    %4871 = vmatprep.subr.mxu0 %v3389
    %4872 = vmatpush1.msra.mxu0 %v3388
    %4873 = vmatprep.subr.mxu0 %v3373
    %4874 = vmatpush1.msra.mxu0 %v3372
    %4875 = vmatprep.subr.mxu0 %v3357
    %4876 = vmatpush1.msra.mxu0 %v3356
    %4877 = vmatprep.subr.mxu0 %v3341
    %4878 = vmatpush1.msra.mxu0 %v3340
    %4879 = vmatprep.subr.mxu0 %v3837
    %4880 = vmatpush2.msra.mxu0 %v3836
    %4881 = vmatprep.subr.mxu0 %v3821
    %4882 = vmatpush2.msra.mxu0 %v3820
    %4883 = vmatprep.subr.mxu0 %v3805
    %4884 = vmatpush2.msra.mxu0 %v3804
    %4885 = vmatprep.subr.mxu0 %v3789
    %4886 = vmatpush2.msra.mxu0 %v3788
    %4887 = vmatprep.subr.mxu0 %v3773
    %4888 = vmatpush2.msra.mxu0 %v3772
    %4889 = vmatprep.subr.mxu0 %v3757
    %4890 = vmatpush2.msra.mxu0 %v3756
    %4891 = vmatprep.subr.mxu0 %v3741
    %4892 = vmatpush2.msra.mxu0 %v3740
    %4893 = vmatprep.subr.mxu0 %v3725
    %4894 = vmatpush2.msra.mxu0 %v3724
    %4895 = vmatprep.subr.mxu0 %v3709
    %4896 = vmatpush2.msra.mxu0 %v3708
    %4897 = vmatprep.subr.mxu0 %v3693
    %4898 = vmatpush2.msra.mxu0 %v3692
    %4899 = vmatprep.subr.mxu0 %v3677
    %4900 = vmatpush2.msra.mxu0 %v3676
    %4901 = vmatprep.subr.mxu0 %v3661
    %4902 = vmatpush2.msra.mxu0 %v3660
    %4903 = vmatprep.subr.mxu0 %v3645
    %4904 = vmatpush2.msra.mxu0 %v3644
    %4905 = vmatprep.subr.mxu0 %v3629
    %4906 = vmatpush2.msra.mxu0 %v3628
    %4907 = vmatprep.subr.mxu0 %v3613
    %4908 = vmatpush2.msra.mxu0 %v3612
    %4909 = vmatprep.subr.mxu0 %v3597
    %4910 = vmatpush2.msra.mxu0 %v3596
    %4911 = vmatprep.mubr.f32.mxu0 %v2814
    %4912 = vmatmul.mubr.f32.gmra.mxu0 %v2812
    %v4913 = vpop.f32.mrf.mxu0
    %v4914 = vadd.f32 %v4843, %v4913
    %v4915 = vpop.f32.mrf.mxu0
    %v4916 = vadd.f32 %v4845, %v4915
    %4917 = vdwg.mxu0
    %4918 = vmatprep.subr.mxu0 %v3071
    %4919 = vmatpush1.msra.mxu0 %v3070
    %4920 = vmatprep.subr.mxu0 %v3055
    %4921 = vmatpush1.msra.mxu0 %v3054
    %4922 = vmatprep.subr.mxu0 %v3039
    %4923 = vmatpush1.msra.mxu0 %v3038
    %4924 = vmatprep.subr.mxu0 %v3023
    %4925 = vmatpush1.msra.mxu0 %v3022
    %4926 = vmatprep.subr.mxu0 %v3007
    %4927 = vmatpush1.msra.mxu0 %v3006
    %4928 = vmatprep.subr.mxu0 %v2991
    %4929 = vmatpush1.msra.mxu0 %v2990
    %4930 = vmatprep.subr.mxu0 %v2975
    %4931 = vmatpush1.msra.mxu0 %v2974
    %4932 = vmatprep.subr.mxu0 %v2959
    %4933 = vmatpush1.msra.mxu0 %v2958
    %4934 = vmatprep.subr.mxu0 %v2943
    %4935 = vmatpush1.msra.mxu0 %v2942
    %4936 = vmatprep.subr.mxu0 %v2927
    %4937 = vmatpush1.msra.mxu0 %v2926
    %4938 = vmatprep.subr.mxu0 %v2911
    %4939 = vmatpush1.msra.mxu0 %v2910
    %4940 = vmatprep.subr.mxu0 %v2895
    %4941 = vmatpush1.msra.mxu0 %v2894
    %4942 = vmatprep.subr.mxu0 %v2879
    %4943 = vmatpush1.msra.mxu0 %v2878
    %4944 = vmatprep.subr.mxu0 %v2863
    %4945 = vmatpush1.msra.mxu0 %v2862
    %4946 = vmatprep.subr.mxu0 %v2847
    %4947 = vmatpush1.msra.mxu0 %v2846
    %4948 = vmatprep.subr.mxu0 %v2831
    %4949 = vmatpush1.msra.mxu0 %v2830
    %4950 = vmatprep.subr.mxu0 %v3327
    %4951 = vmatpush2.msra.mxu0 %v3326
    %4952 = vmatprep.subr.mxu0 %v3311
    %4953 = vmatpush2.msra.mxu0 %v3310
    %4954 = vmatprep.subr.mxu0 %v3295
    %4955 = vmatpush2.msra.mxu0 %v3294
    %4956 = vmatprep.subr.mxu0 %v3279
    %4957 = vmatpush2.msra.mxu0 %v3278
    %4958 = vmatprep.subr.mxu0 %v3263
    %4959 = vmatpush2.msra.mxu0 %v3262
    %4960 = vmatprep.subr.mxu0 %v3247
    %4961 = vmatpush2.msra.mxu0 %v3246
    %4962 = vmatprep.subr.mxu0 %v3231
    %4963 = vmatpush2.msra.mxu0 %v3230
    %4964 = vmatprep.subr.mxu0 %v3215
    %4965 = vmatpush2.msra.mxu0 %v3214
    %4966 = vmatprep.subr.mxu0 %v3199
    %4967 = vmatpush2.msra.mxu0 %v3198
    %4968 = vmatprep.subr.mxu0 %v3183
    %4969 = vmatpush2.msra.mxu0 %v3182
    %4970 = vmatprep.subr.mxu0 %v3167
    %4971 = vmatpush2.msra.mxu0 %v3166
    %4972 = vmatprep.subr.mxu0 %v3151
    %4973 = vmatpush2.msra.mxu0 %v3150
    %4974 = vmatprep.subr.mxu0 %v3135
    %4975 = vmatpush2.msra.mxu0 %v3134
    %4976 = vmatprep.subr.mxu0 %v3119
    %4977 = vmatpush2.msra.mxu0 %v3118
    %4978 = vmatprep.subr.mxu0 %v3103
    %4979 = vmatpush2.msra.mxu0 %v3102
    %4980 = vmatprep.subr.mxu0 %v3087
    %4981 = vmatpush2.msra.mxu0 %v3086
    %4982 = vmatprep.mubr.f32.mxu0 %v2104
    %4983 = vmatmul.mubr.f32.gmra.mxu0 %v2102
    %v4984 = vpop.f32.mrf.mxu0
    %v4985 = vadd.f32 %v3903, %v4984
    %v4986 = vpop.f32.mrf.mxu0
    %v4987 = vadd.f32 %v3907, %v4986
    %4988 = vdwg.mxu0
    %4989 = vmatprep.subr.mxu0 %v3583
    %4990 = vmatpush1.msra.mxu0 %v3582
    %4991 = vmatprep.subr.mxu0 %v3567
    %4992 = vmatpush1.msra.mxu0 %v3566
    %4993 = vmatprep.subr.mxu0 %v3551
    %4994 = vmatpush1.msra.mxu0 %v3550
    %4995 = vmatprep.subr.mxu0 %v3535
    %4996 = vmatpush1.msra.mxu0 %v3534
    %4997 = vmatprep.subr.mxu0 %v3519
    %4998 = vmatpush1.msra.mxu0 %v3518
    %4999 = vmatprep.subr.mxu0 %v3503
    %5000 = vmatpush1.msra.mxu0 %v3502
    %5001 = vmatprep.subr.mxu0 %v3487
    %5002 = vmatpush1.msra.mxu0 %v3486
    %5003 = vmatprep.subr.mxu0 %v3471
    %5004 = vmatpush1.msra.mxu0 %v3470
    %5005 = vmatprep.subr.mxu0 %v3455
    %5006 = vmatpush1.msra.mxu0 %v3454
    %5007 = vmatprep.subr.mxu0 %v3439
    %5008 = vmatpush1.msra.mxu0 %v3438
    %5009 = vmatprep.subr.mxu0 %v3423
    %5010 = vmatpush1.msra.mxu0 %v3422
    %5011 = vmatprep.subr.mxu0 %v3407
    %5012 = vmatpush1.msra.mxu0 %v3406
    %5013 = vmatprep.subr.mxu0 %v3391
    %5014 = vmatpush1.msra.mxu0 %v3390
    %5015 = vmatprep.subr.mxu0 %v3375
    %5016 = vmatpush1.msra.mxu0 %v3374
    %5017 = vmatprep.subr.mxu0 %v3359
    %5018 = vmatpush1.msra.mxu0 %v3358
    %5019 = vmatprep.subr.mxu0 %v3343
    %5020 = vmatpush1.msra.mxu0 %v3342
    %5021 = vmatprep.subr.mxu0 %v3839
    %5022 = vmatpush2.msra.mxu0 %v3838
    %5023 = vmatprep.subr.mxu0 %v3823
    %5024 = vmatpush2.msra.mxu0 %v3822
    %5025 = vmatprep.subr.mxu0 %v3807
    %5026 = vmatpush2.msra.mxu0 %v3806
    %5027 = vmatprep.subr.mxu0 %v3791
    %5028 = vmatpush2.msra.mxu0 %v3790
    %5029 = vmatprep.subr.mxu0 %v3775
    %5030 = vmatpush2.msra.mxu0 %v3774
    %5031 = vmatprep.subr.mxu0 %v3759
    %5032 = vmatpush2.msra.mxu0 %v3758
    %5033 = vmatprep.subr.mxu0 %v3743
    %5034 = vmatpush2.msra.mxu0 %v3742
    %5035 = vmatprep.subr.mxu0 %v3727
    %5036 = vmatpush2.msra.mxu0 %v3726
    %5037 = vmatprep.subr.mxu0 %v3711
    %5038 = vmatpush2.msra.mxu0 %v3710
    %5039 = vmatprep.subr.mxu0 %v3695
    %5040 = vmatpush2.msra.mxu0 %v3694
    %5041 = vmatprep.subr.mxu0 %v3679
    %5042 = vmatpush2.msra.mxu0 %v3678
    %5043 = vmatprep.subr.mxu0 %v3663
    %5044 = vmatpush2.msra.mxu0 %v3662
    %5045 = vmatprep.subr.mxu0 %v3647
    %5046 = vmatpush2.msra.mxu0 %v3646
    %5047 = vmatprep.subr.mxu0 %v3631
    %5048 = vmatpush2.msra.mxu0 %v3630
    %5049 = vmatprep.subr.mxu0 %v3615
    %5050 = vmatpush2.msra.mxu0 %v3614
    %5051 = vmatprep.subr.mxu0 %v3599
    %5052 = vmatpush2.msra.mxu0 %v3598
    %5053 = vmatprep.mubr.f32.mxu0 %v2814
    %5054 = vmatmul.mubr.f32.gmra.mxu0 %v2812
    %v5055 = vpop.f32.mrf.mxu0
    %v5056 = vadd.f32 %v4985, %v5055
    %v5057 = vpop.f32.mrf.mxu0
    %v5058 = vadd.f32 %v4987, %v5057
    %5059 = vdwg.mxu0
    %v5060 = vmax.f32 %v4062, 0.0
    %v5061 = vmax.f32 %v4064, 0.0
    %v5062 = vmax.f32 %v4204, 0.0
    %v5063 = vmax.f32 %v4206, 0.0
    %v5064 = vmax.f32 %v4346, 0.0
    %v5065 = vmax.f32 %v4348, 0.0
    %v5066 = vmax.f32 %v4488, 0.0
    %v5067 = vmax.f32 %v4490, 0.0
    %v5068 = vmax.f32 %v4630, 0.0
    %v5069 = vmax.f32 %v4632, 0.0
    %v5070 = vmax.f32 %v4772, 0.0
    %v5071 = vmax.f32 %v4774, 0.0
    %v5072 = vmax.f32 %v4914, 0.0
    %v5073 = vmax.f32 %v4916, 0.0
    %v5074 = vmax.f32 %v5056, 0.0
    %v5075 = vmax.f32 %v5058, 0.0
    %v5092 = vcombine.low %v5060, %v5061
    %v5093 = vcombine.low %v5062, %v5063
    %v5095 = vunpack.c.l.s4 1983009808
    %v5096 = vunpack.c.0.s8 %v5095
    %v5097 = vlaneseq
    %v5098 = vshrl.u32 %v5097, 7
    %v5099 = vsub.s32 %v5096, %v5098
    %v5100 = vrot.slane %v5092, %v5099
    %v5102 = vunpack.c.l.s4 1983009808
    %v5103 = vunpack.c.0.s8 %v5102
    %v5104 = vlaneseq
    %v5105 = vshrl.u32 %v5104, 7
    %v5106 = vsub.s32 %v5103, %v5105
    %v5107 = vrot.slane %v5093, %v5106
    %v5108 = vcombine.low %v5100, %v5107
    %v5109 = vcombine.low %v5064, %v5065
    %v5110 = vcombine.low %v5066, %v5067
    %v5112 = vunpack.c.l.s4 1983009808
    %v5113 = vunpack.c.0.s8 %v5112
    %v5114 = vlaneseq
    %v5115 = vshrl.u32 %v5114, 7
    %v5116 = vsub.s32 %v5113, %v5115
    %v5117 = vrot.slane %v5109, %v5116
    %v5119 = vunpack.c.l.s4 1983009808
    %v5120 = vunpack.c.0.s8 %v5119
    %v5121 = vlaneseq
    %v5122 = vshrl.u32 %v5121, 7
    %v5123 = vsub.s32 %v5120, %v5122
    %v5124 = vrot.slane %v5110, %v5123
    %v5125 = vcombine.low %v5117, %v5124
    %v5126 = vcombine.low %v5068, %v5069
    %v5127 = vcombine.low %v5070, %v5071
    %v5129 = vunpack.c.l.s4 1983009808
    %v5130 = vunpack.c.0.s8 %v5129
    %v5131 = vlaneseq
    %v5132 = vshrl.u32 %v5131, 7
    %v5133 = vsub.s32 %v5130, %v5132
    %v5134 = vrot.slane %v5126, %v5133
    %v5136 = vunpack.c.l.s4 1983009808
    %v5137 = vunpack.c.0.s8 %v5136
    %v5138 = vlaneseq
    %v5139 = vshrl.u32 %v5138, 7
    %v5140 = vsub.s32 %v5137, %v5139
    %v5141 = vrot.slane %v5127, %v5140
    %v5142 = vcombine.low %v5134, %v5141
    %v5143 = vcombine.low %v5072, %v5073
    %v5144 = vcombine.low %v5074, %v5075
    %v5146 = vunpack.c.l.s4 1983009808
    %v5147 = vunpack.c.0.s8 %v5146
    %v5148 = vlaneseq
    %v5149 = vshrl.u32 %v5148, 7
    %v5150 = vsub.s32 %v5147, %v5149
    %v5151 = vrot.slane %v5143, %v5150
    %v5153 = vunpack.c.l.s4 1983009808
    %v5154 = vunpack.c.0.s8 %v5153
    %v5155 = vlaneseq
    %v5156 = vshrl.u32 %v5155, 7
    %v5157 = vsub.s32 %v5154, %v5156
    %v5158 = vrot.slane %v5144, %v5157
    %v5159 = vcombine.low %v5151, %v5158
    %5164 = vst [vmem:[#allocation11] sm:$0xff] %v5108
    %5165 = vst [vmem:[#allocation11 + $0x8] sm:$0xff] %v5125
    %5166 = vst [vmem:[#allocation11 + $0x10] sm:$0xff] %v5142
    %5167 = vst [vmem:[#allocation11 + $0x18] sm:$0xff] %v5159
    // Predicated region
    $region42: #{tpu_custom_call.1} parent=1 // pred_check
      _
    $region43: #{tpu_custom_call.1} parent=1 // pred_check_branch
      %5169 = sbr.rel (0) target = $region45
    $region44: #{tpu_custom_call.1} parent=1 // pred_region
      %s5171 = ssub.s32 512, 512
      %5172 = vsyncadd [#allocation4], %s5171
      %s5174 = sshll.u32 [#allocation11], 4
      %s5175 = int_to_ptr.vmem [resolvable:$true] %s5174
      %5177 = dma.vmem_to_hbm [thread:$0]  %s5175, 512, %s5, [#allocation4]
    $region45: #{tpu_custom_call.1} parent=1 // pred_fallthru
      _
    // Predicated region
    $region46: #{tpu_custom_call.1} parent=1 // pred_check
      _
    $region47: #{tpu_custom_call.1} parent=1 // pred_check_branch
      %5179 = sbr.rel (0) target = $region49
    $region48: #{tpu_custom_call.1} parent=1 // pred_region
      %5180 = dma.done [#allocation4], 512
    $region49: #{tpu_custom_call.1} parent=1 // pred_fallthru
      _
    %5181 = vsyncpa [#allocation3], 1
    %5182 = vsyncpa [#allocation6], 1
    %5183 = vsyncpa [#allocation9], 1
    %5184 = vsyncpa [#allocation4], 1

</llo_original>
